<compile_context>
chip_gen: v6e
topology: v6e:2x2x1
jax: 0.10.0
libtpu: 0.0.40
codegen_flags: <defaults>
</compile_context>

<pallas_src>
import jax
import jax.numpy as jnp
import numpy as np
from jax.experimental import pallas as pl
from jax.experimental.pallas import tpu as pltpu

INPUT_SIZE = 24       # module global input_size
HIDDEN_SIZE = 56      # module global hidden_size
NUM_LAYERS = 2        # module global num_layers
OUTPUT_SIZE = 3       # module global output_size
NUM_EXTRA_PASSES = 5  # the `for _ in range(5)` loop in forward
NUM_PASSES = 1 + NUM_EXTRA_PASSES

HP = 128              # per-direction hidden width padded to one lane tile
H2 = 2 * HP           # fused-direction hidden width [fwd | bwd]
GATE_W = 6 * HP       # fused gate width, lanes [r_f | r_b | z_f | z_b | n_f | n_b]
OUTP = 128            # fc output padded to one lane tile
XPAD = 32             # input_size padded to a multiple of 16 (bf16 sublane tile)

# Packed bf16 weight-slab row offsets (all multiples of 16 -> tile-aligned views).
_R_IH0 = 0
_R_HH0 = XPAD
_R_IH1 = XPAD + H2
_R_HH1 = XPAD + 2 * H2
_W_ROWS = XPAD + 3 * H2            # 800


# ----------------------------------------------------------------------------
# Pallas kernel: whole BiGRU2 forward (6 bidirectional GRU passes over the
# length-1 sequence, batched fc + LeakyReLU head, lane-dense h_n packing).
# ----------------------------------------------------------------------------
def _bigru2_kernel(x_ref, w_ref, fcw_ref, bias_ref, out_ref, hn_ref, y_ref):
    B = x_ref.shape[0]
    f32, bf16 = jnp.float32, jnp.bfloat16
    G4 = 4 * HP

    # Static, bf16-tile-aligned views into the packed weight slab (no copies).
    w_ih0 = w_ref[_R_IH0:_R_HH0, :]
    w_hh0 = w_ref[_R_HH0:_R_IH1, :]      # block-diag: fwd rows 0:128, bwd rows 128:256
    w_ih1 = w_ref[_R_IH1:_R_HH1, :]
    w_hh1 = w_ref[_R_HH1:_W_ROWS, :]

    # Hoisted (1,·)->(B,·) bias broadcasts, non-zero segments only
    # (JAX does not CSE broadcast_in_dim, so hoist out of the unrolled loop).
    bx0 = jnp.broadcast_to(bias_ref[0:1, :], (B, GATE_W))
    bx1 = jnp.broadcast_to(bias_ref[1:2, :], (B, GATE_W))
    bhn0 = jnp.broadcast_to(bias_ref[2:3, :H2], (B, H2))
    bhn1 = jnp.broadcast_to(bias_ref[3:4, :H2], (B, H2))
    fcb = jnp.broadcast_to(bias_ref[4:5, :OUTP], (NUM_PASSES * B, OUTP))

    # Loop-invariant layer-0 input-side gates (x shared across all 6 passes),
    # both directions fused on lanes: one dot, computed once.
    gx0 = jnp.dot(x_ref[...].astype(bf16), w_ih0, preferred_element_type=f32) + bx0

    def gru_update(gx, gh, bhn, h_prev):
        # Lane layout [r_f | r_b | z_f | z_b | n_f | n_b]; gx carries
        # (b_ih + b_hh) for r/z and b_ih_n; bhn carries b_hh_n only.
        # sigmoid(s) == 0.5*(tanh(0.5*s)+1): one EUP op on the critical path.
        rz = 0.5 * (jnp.tanh(0.5 * (gx[:, :G4] + gh[:, :G4])) + 1.0)
        r, z = rz[:, :H2], rz[:, H2:]
        n = jnp.tanh(gx[:, G4:] + r * (gh[:, G4:] + bhn))
        return (1.0 - z) * n + z * h_prev

    # Per-layer state carried lane-fused: [h_fwd | h_bwd]; padded lanes stay 0
    # because padded weight cols / bias lanes are exactly zero.
    h0 = jnp.zeros((B, H2), f32)
    h1 = jnp.zeros((B, H2), f32)
    for p in range(NUM_PASSES):                      # output, h_n = self.gru(x[, h_n])
        gh0 = jnp.dot(h0.astype(bf16), w_hh0, preferred_element_type=f32)
        h0 = gru_update(gx0, gh0, bhn0, h0)
        gx1 = jnp.dot(h0.astype(bf16), w_ih1, preferred_element_type=f32) + bx1
        gh1 = jnp.dot(h1.astype(bf16), w_hh1, preferred_element_type=f32)
        h1 = gru_update(gx1, gh1, bhn1, h1)
        y_ref[p * B:(p + 1) * B, :] = h1             # output[:, -1, :] of this pass (T == 1)

    # Batched fc + LeakyReLU(0.01) head over all 6 passes: one dot,
    # one lane-dense (NUM_PASSES*B, 128) store.
    o = jnp.dot(y_ref[...].astype(bf16), fcw_ref[...], preferred_element_type=f32) + fcb
    out_ref[...] = jnp.where(o >= 0.0, o, 0.01 * o)

    # Final hidden state packed lane-major at 128-aligned offsets; single store.
    hn_ref[...] = jnp.concatenate([h0, h1], axis=1)  # [h0f | h0b | h1f | h1b]


# ----------------------------------------------------------------------------
# Parameter setup (deterministic, PyTorch-style uniform init).
# ----------------------------------------------------------------------------
def init_params(key):
    H, I, O = HIDDEN_SIZE, INPUT_SIZE, OUTPUT_SIZE
    keys = iter(jax.random.split(key, 20))

    def u(shape, bound):
        return jax.random.uniform(next(keys), shape, jnp.float32, -bound, bound)

    k = 1.0 / np.sqrt(H)
    cells = []
    for in_dim in (I, I, 2 * H, 2 * H):              # l0 fwd, l0 bwd, l1 fwd, l1 bwd
        cells.append((u((3 * H, in_dim), k),         # weight_ih (rows: r, z, n)
                      u((3 * H, H), k),              # weight_hh
                      u((3 * H,), k),                # bias_ih
                      u((3 * H,), k)))               # bias_hh
    kfc = 1.0 / np.sqrt(2 * H)
    fc_w = u((O, 2 * H), kfc)
    fc_b = u((O,), kfc)
    return cells, fc_w, fc_b


# ----------------------------------------------------------------------------
# Wrapper-side packing: fuse gates/directions, block-diag hh, fold biases,
# zero-pad to lane tiles, cast weights to bf16, and build contiguous slabs.
# ----------------------------------------------------------------------------
def _pack_params(cells, fc_w, fc_b):
    H, O = HIDDEN_SIZE, OUTPUT_SIZE
    c = [[np.asarray(a, np.float32) for a in cell] for cell in cells]
    fc_w = np.asarray(fc_w, np.float32)
    fc_b = np.asarray(fc_b, np.float32)

    def gcol(g, d):                     # lane offset of (gate g, direction d) block
        return (2 * g + d) * HP         # [r_f, r_b, z_f, z_b, n_f, n_b]

    def fill_w(dst, w_t, row_off, d):   # w_t: (in_dim, 3H), cols [r | z | n]
        in_dim = w_t.shape[0]
        for g in range(3):
            dst[row_off:row_off + in_dim, gcol(g, d):gcol(g, d) + H] = w_t[:, g * H:(g + 1) * H]

    # Layer 0 input weights (both directions share x): (XPAD, 768).
    w_ih0 = np.zeros((XPAD, GATE_W), np.float32)
    fill_w(w_ih0, c[0][0].T, 0, 0)
    fill_w(w_ih0, c[1][0].T, 0, 1)

    # Layer 0 recurrent, block-diagonal over directions: (256, 768).
    w_hh0 = np.zeros((H2, GATE_W), np.float32)
    fill_w(w_hh0, c[0][1].T, 0, 0)              # h_fwd rows -> fwd gate cols
    fill_w(w_hh0, c[1][1].T, HP, 1)             # h_bwd rows -> bwd gate cols

    # Layer 1 input weights on the lane-fused [h0f | h0b] state: (256, 768).
    w_ih1 = np.zeros((H2, GATE_W), np.float32)
    w1f_t, w1b_t = c[2][0].T, c[3][0].T         # (2H, 3H): rows 0:H from h0f, H:2H from h0b
    fill_w(w_ih1, w1f_t[:H, :], 0, 0)
    fill_w(w_ih1, w1f_t[H:, :], HP, 0)
    fill_w(w_ih1, w1b_t[:H, :], 0, 1)
    fill_w(w_ih1, w1b_t[H:, :], HP, 1)

    # Layer 1 recurrent, block-diagonal: (256, 768).
    w_hh1 = np.zeros((H2, GATE_W), np.float32)
    fill_w(w_hh1, c[2][1].T, 0, 0)
    fill_w(w_hh1, c[3][1].T, HP, 1)

    w_slab = np.concatenate([w_ih0, w_hh0, w_ih1, w_hh1], axis=0)     # (800, 768)

    # fc head on the lane-fused [h1f | h1b] state: (256, 128).
    fcw = np.zeros((H2, OUTP), np.float32)
    fcw[:H, :O] = fc_w[:, :H].T
    fcw[HP:HP + H, :O] = fc_w[:, H:].T

    # Bias slab (f32, tiny): row0 = bx0, row1 = bx1 (r/z carry b_ih+b_hh, n carries
    # b_ih only), row2/3 = b_hh_n per layer ([fwd | bwd]), row4 = fc bias.
    bias = np.zeros((8, GATE_W), np.float32)

    def gx_bias(b_ih, b_hh, d, row):
        for g in range(3):
            seg = b_ih[g * H:(g + 1) * H] + (b_hh[g * H:(g + 1) * H] if g < 2 else 0.0)
            bias[row, gcol(g, d):gcol(g, d) + H] = seg

    gx_bias(c[0][2], c[0][3], 0, 0)
    gx_bias(c[1][2], c[1][3], 1, 0)
    gx_bias(c[2][2], c[2][3], 0, 1)
    gx_bias(c[3][2], c[3][3], 1, 1)
    bias[2, :H] = c[0][3][2 * H:]               # layer-0 fwd b_hh_n
    bias[2, HP:HP + H] = c[1][3][2 * H:]        # layer-0 bwd b_hh_n
    bias[3, :H] = c[2][3][2 * H:]               # layer-1 fwd b_hh_n
    bias[3, HP:HP + H] = c[3][3][2 * H:]        # layer-1 bwd b_hh_n
    bias[4, :O] = fc_b

    return (jnp.asarray(w_slab, jnp.bfloat16),
            jnp.asarray(fcw, jnp.bfloat16),
            jnp.asarray(bias, jnp.float32))


def bigru2_forward(x, cells, fc_w, fc_b):
    B, T, I = x.shape
    assert T == 1, "BiGRU2.forward semantics (squeeze(1)+stack) require seq_len == 1"
    H, O = HIDDEN_SIZE, OUTPUT_SIZE

    x2 = jnp.pad(x.reshape(B, I).astype(jnp.float32), ((0, 0), (0, XPAD - I)))
    w_slab, fcw, bias = _pack_params(cells, fc_w, fc_b)

    out_shapes = (
        jax.ShapeDtypeStruct((NUM_PASSES * B, OUTP), jnp.float32),   # lane-dense outputs slab
        jax.ShapeDtypeStruct((B, 4 * HP), jnp.float32),              # lane-dense h_n slab
    )
    vmem = pltpu.MemorySpace.VMEM
    out_flat, hn_flat = pl.pallas_call(
        _bigru2_kernel,
        out_shape=out_shapes,
        in_specs=[pl.BlockSpec(memory_space=vmem)] * 4,
        out_specs=tuple(pl.BlockSpec(memory_space=vmem) for _ in range(2)),
        scratch_shapes=[pltpu.VMEM((NUM_PASSES * B, H2), jnp.float32)],
    )(x2, w_slab, fcw, bias)

    # Un-pad / re-layout outside the kernel (plain XLA ops).
    outputs = out_flat[:, :O].reshape(NUM_PASSES, B, O).transpose(1, 0, 2)    # (B, 6, O)
    h_n = hn_flat.reshape(B, 4, HP)[:, :, :H].transpose(1, 0, 2)              # (4, B, H)
    # h_n layout is [l0_fwd, l0_bwd, l1_fwd, l1_bwd]; the module concatenates
    # h_n[num_layers - 1] (== l0_bwd) and h_n[-1] (== l1_bwd), exactly as written.
    hlast = jnp.concatenate([h_n[NUM_LAYERS - 1], h_n[-1]], axis=1)           # (B, 2H)
    return outputs, hlast, h_n


# ----------------------------------------------------------------------------
# Pure-JAX f32 reference for the correctness check.
# ----------------------------------------------------------------------------
def bigru2_reference(x, cells, fc_w, fc_b):
    B, H = x.shape[0], HIDDEN_SIZE
    xt = x[:, 0, :]

    def cell(inp, h, p):
        w_ih, w_hh, b_ih, b_hh = p
        gx = inp @ w_ih.T + b_ih
        gh = h @ w_hh.T + b_hh
        r = jax.nn.sigmoid(gx[:, :H] + gh[:, :H])
        z = jax.nn.sigmoid(gx[:, H:2 * H] + gh[:, H:2 * H])
        n = jnp.tanh(gx[:, 2 * H:] + r * gh[:, 2 * H:])
        return (1 - z) * n + z * h

    def gru_pass(h):
        h0f, h0b = cell(xt, h[0], cells[0]), cell(xt, h[1], cells[1])
        y0 = jnp.concatenate([h0f, h0b], 1)
        h1f, h1b = cell(y0, h[2], cells[2]), cell(y0, h[3], cells[3])
        return jnp.concatenate([h1f, h1b], 1), [h0f, h0b, h1f, h1b]

    def head(y):
        o = y @ fc_w.T + fc_b
        return jnp.where(o >= 0, o, 0.01 * o)

    h = [jnp.zeros((B, H), jnp.float32)] * 4
    outs = []
    y, h = gru_pass(h)
    outs.append(head(y))
    for _ in range(NUM_EXTRA_PASSES):
        y, h = gru_pass(h)
        outs.append(head(y))
    return (jnp.stack(outs, axis=1),
            jnp.concatenate([h[NUM_LAYERS - 1], h[-1]], axis=1),
            jnp.stack(h, axis=0))


if __name__ == "__main__":
    key = jax.random.PRNGKey(0)
    pkey, xkey = jax.random.split(key)
    cells, fc_w, fc_b = init_params(pkey)

    B = 2
    x = jax.random.normal(xkey, (B, 1, INPUT_SIZE), jnp.float32)

    outputs, hlast, h_n = jax.block_until_ready(bigru2_forward(x, cells, fc_w, fc_b))

    ref_outputs, ref_hlast, ref_hn = bigru2_reference(x, cells, fc_w, fc_b)
    # bf16 weights vs f32 reference: slightly relaxed absolute tolerance.
    np.testing.assert_allclose(np.asarray(outputs), np.asarray(ref_outputs), atol=2e-2, rtol=1e-2)
    np.testing.assert_allclose(np.asarray(hlast), np.asarray(ref_hlast), atol=2e-2, rtol=1e-2)
    np.testing.assert_allclose(np.asarray(h_n), np.asarray(ref_hn), atol=2e-2, rtol=1e-2)

    assert outputs.shape == (B, NUM_PASSES, OUTPUT_SIZE)
    assert hlast.shape == (B, 2 * HIDDEN_SIZE)
    assert h_n.shape == (2 * NUM_LAYERS, B, HIDDEN_SIZE)
    print("KERNEL_OK")
</pallas_src>

<mosaic_0001>
module attributes {stable_mosaic.version = 11 : i64} {
  func.func @_bigru2_kernel(%arg0: memref<2x32xf32, #tpu.memory_space<vmem>>, %arg1: memref<800x768xbf16, #tpu.memory_space<vmem>>, %arg2: memref<256x128xbf16, #tpu.memory_space<vmem>>, %arg3: memref<8x768xf32, #tpu.memory_space<vmem>>, %arg4: memref<12x128xf32, #tpu.memory_space<vmem>>, %arg5: memref<2x512xf32, #tpu.memory_space<vmem>>, %arg6: memref<12x256xf32, #tpu.memory_space<vmem>>) attributes {dimension_semantics = [], scalar_prefetch = 0 : i64, scratch_operands = 1 : i64, tpu.core_type = #tpu.core_type<tc>} {
    %c0 = arith.constant 0 : index
    %c0_0 = arith.constant 0 : index
    %0 = vector.load %arg1[%c0, %c0_0] : memref<800x768xbf16, #tpu.memory_space<vmem>>, vector<32x768xbf16>
    %c32 = arith.constant 32 : index
    %c0_1 = arith.constant 0 : index
    %1 = vector.load %arg1[%c32, %c0_1] : memref<800x768xbf16, #tpu.memory_space<vmem>>, vector<256x768xbf16>
    %c288 = arith.constant 288 : index
    %c0_2 = arith.constant 0 : index
    %2 = vector.load %arg1[%c288, %c0_2] : memref<800x768xbf16, #tpu.memory_space<vmem>>, vector<256x768xbf16>
    %c544 = arith.constant 544 : index
    %c0_3 = arith.constant 0 : index
    %3 = vector.load %arg1[%c544, %c0_3] : memref<800x768xbf16, #tpu.memory_space<vmem>>, vector<256x768xbf16>
    %c0_4 = arith.constant 0 : index
    %c0_5 = arith.constant 0 : index
    %4 = vector.load %arg3[%c0_4, %c0_5] : memref<8x768xf32, #tpu.memory_space<vmem>>, vector<1x768xf32>
    %5 = vector.shape_cast %4 : vector<1x768xf32> to vector<1x768xf32>
    %6 = vector.broadcast %5 : vector<1x768xf32> to vector<2x768xf32>
    %c1 = arith.constant 1 : index
    %c0_6 = arith.constant 0 : index
    %7 = vector.load %arg3[%c1, %c0_6] : memref<8x768xf32, #tpu.memory_space<vmem>>, vector<1x768xf32>
    %8 = vector.shape_cast %7 : vector<1x768xf32> to vector<1x768xf32>
    %9 = vector.broadcast %8 : vector<1x768xf32> to vector<2x768xf32>
    %c2 = arith.constant 2 : index
    %c0_7 = arith.constant 0 : index
    %10 = vector.load %arg3[%c2, %c0_7] : memref<8x768xf32, #tpu.memory_space<vmem>>, vector<1x256xf32>
    %11 = vector.shape_cast %10 : vector<1x256xf32> to vector<1x256xf32>
    %12 = vector.broadcast %11 : vector<1x256xf32> to vector<2x256xf32>
    %c3 = arith.constant 3 : index
    %c0_8 = arith.constant 0 : index
    %13 = vector.load %arg3[%c3, %c0_8] : memref<8x768xf32, #tpu.memory_space<vmem>>, vector<1x256xf32>
    %14 = vector.shape_cast %13 : vector<1x256xf32> to vector<1x256xf32>
    %15 = vector.broadcast %14 : vector<1x256xf32> to vector<2x256xf32>
    %c4 = arith.constant 4 : index
    %c0_9 = arith.constant 0 : index
    %16 = vector.load %arg3[%c4, %c0_9] : memref<8x768xf32, #tpu.memory_space<vmem>>, vector<1x128xf32>
    %17 = vector.shape_cast %16 : vector<1x128xf32> to vector<1x128xf32>
    %18 = vector.broadcast %17 : vector<1x128xf32> to vector<12x128xf32>
    %c0_10 = arith.constant 0 : index
    %c0_11 = arith.constant 0 : index
    %19 = vector.load %arg0[%c0_10, %c0_11] : memref<2x32xf32, #tpu.memory_space<vmem>>, vector<2x32xf32>
    %20 = arith.truncf %19 : vector<2x32xf32> to vector<2x32xbf16>
    %cst = arith.constant dense<0.000000e+00> : vector<2x768xf32>
    %21 = tpu.matmul %20, %0, %cst {dimension_numbers = #tpu.dot_dimension_numbers<[1], [0], [0], [1], [0, 0, 1, 1], [], []>} : vector<2x32xbf16>, vector<32x768xbf16>, vector<2x768xf32> -> vector<2x768xf32>
    %22 = arith.addf %21, %6 : vector<2x768xf32>
    %cst_12 = arith.constant 0.000000e+00 : f32
    %23 = vector.broadcast %cst_12 : f32 to vector<2x256xf32>
    %cst_13 = arith.constant 0.000000e+00 : f32
    %24 = vector.broadcast %cst_13 : f32 to vector<2x256xf32>
    %25 = arith.truncf %23 : vector<2x256xf32> to vector<2x256xbf16>
    %cst_14 = arith.constant dense<0.000000e+00> : vector<2x768xf32>
    %26 = tpu.matmul %25, %1, %cst_14 {dimension_numbers = #tpu.dot_dimension_numbers<[1], [0], [0], [1], [0, 0, 1, 1], [], []>} : vector<2x256xbf16>, vector<256x768xbf16>, vector<2x768xf32> -> vector<2x768xf32>
    %27 = vector.extract_strided_slice %22 {offsets = [0, 0], sizes = [2, 512], strides = [1, 1]} : vector<2x768xf32> to vector<2x512xf32>
    %28 = vector.extract_strided_slice %26 {offsets = [0, 0], sizes = [2, 512], strides = [1, 1]} : vector<2x768xf32> to vector<2x512xf32>
    %29 = arith.addf %27, %28 : vector<2x512xf32>
    %cst_15 = arith.constant 5.000000e-01 : f32
    %30 = vector.broadcast %cst_15 : f32 to vector<2x512xf32>
    %31 = arith.mulf %30, %29 : vector<2x512xf32>
    %32 = math.tanh %31 : vector<2x512xf32>
    %cst_16 = arith.constant 1.000000e+00 : f32
    %33 = vector.broadcast %cst_16 : f32 to vector<2x512xf32>
    %34 = arith.addf %32, %33 : vector<2x512xf32>
    %cst_17 = arith.constant 5.000000e-01 : f32
    %35 = vector.broadcast %cst_17 : f32 to vector<2x512xf32>
    %36 = arith.mulf %35, %34 : vector<2x512xf32>
    %37 = vector.extract_strided_slice %36 {offsets = [0, 0], sizes = [2, 256], strides = [1, 1]} : vector<2x512xf32> to vector<2x256xf32>
    %38 = vector.extract_strided_slice %36 {offsets = [0, 256], sizes = [2, 256], strides = [1, 1]} : vector<2x512xf32> to vector<2x256xf32>
    %39 = vector.extract_strided_slice %22 {offsets = [0, 512], sizes = [2, 256], strides = [1, 1]} : vector<2x768xf32> to vector<2x256xf32>
    %40 = vector.extract_strided_slice %26 {offsets = [0, 512], sizes = [2, 256], strides = [1, 1]} : vector<2x768xf32> to vector<2x256xf32>
    %41 = arith.addf %40, %12 : vector<2x256xf32>
    %42 = arith.mulf %37, %41 : vector<2x256xf32>
    %43 = arith.addf %39, %42 : vector<2x256xf32>
    %44 = math.tanh %43 : vector<2x256xf32>
    %cst_18 = arith.constant 1.000000e+00 : f32
    %45 = vector.broadcast %cst_18 : f32 to vector<2x256xf32>
    %46 = arith.subf %45, %38 : vector<2x256xf32>
    %47 = arith.mulf %46, %44 : vector<2x256xf32>
    %48 = arith.mulf %38, %23 : vector<2x256xf32>
    %49 = arith.addf %47, %48 : vector<2x256xf32>
    %50 = arith.truncf %49 : vector<2x256xf32> to vector<2x256xbf16>
    %cst_19 = arith.constant dense<0.000000e+00> : vector<2x768xf32>
    %51 = tpu.matmul %50, %2, %cst_19 {dimension_numbers = #tpu.dot_dimension_numbers<[1], [0], [0], [1], [0, 0, 1, 1], [], []>} : vector<2x256xbf16>, vector<256x768xbf16>, vector<2x768xf32> -> vector<2x768xf32>
    %52 = arith.addf %51, %9 : vector<2x768xf32>
    %53 = arith.truncf %24 : vector<2x256xf32> to vector<2x256xbf16>
    %cst_20 = arith.constant dense<0.000000e+00> : vector<2x768xf32>
    %54 = tpu.matmul %53, %3, %cst_20 {dimension_numbers = #tpu.dot_dimension_numbers<[1], [0], [0], [1], [0, 0, 1, 1], [], []>} : vector<2x256xbf16>, vector<256x768xbf16>, vector<2x768xf32> -> vector<2x768xf32>
    %55 = vector.extract_strided_slice %52 {offsets = [0, 0], sizes = [2, 512], strides = [1, 1]} : vector<2x768xf32> to vector<2x512xf32>
    %56 = vector.extract_strided_slice %54 {offsets = [0, 0], sizes = [2, 512], strides = [1, 1]} : vector<2x768xf32> to vector<2x512xf32>
    %57 = arith.addf %55, %56 : vector<2x512xf32>
    %cst_21 = arith.constant 5.000000e-01 : f32
    %58 = vector.broadcast %cst_21 : f32 to vector<2x512xf32>
    %59 = arith.mulf %58, %57 : vector<2x512xf32>
    %60 = math.tanh %59 : vector<2x512xf32>
    %cst_22 = arith.constant 1.000000e+00 : f32
    %61 = vector.broadcast %cst_22 : f32 to vector<2x512xf32>
    %62 = arith.addf %60, %61 : vector<2x512xf32>
    %cst_23 = arith.constant 5.000000e-01 : f32
    %63 = vector.broadcast %cst_23 : f32 to vector<2x512xf32>
    %64 = arith.mulf %63, %62 : vector<2x512xf32>
    %65 = vector.extract_strided_slice %64 {offsets = [0, 0], sizes = [2, 256], strides = [1, 1]} : vector<2x512xf32> to vector<2x256xf32>
    %66 = vector.extract_strided_slice %64 {offsets = [0, 256], sizes = [2, 256], strides = [1, 1]} : vector<2x512xf32> to vector<2x256xf32>
    %67 = vector.extract_strided_slice %52 {offsets = [0, 512], sizes = [2, 256], strides = [1, 1]} : vector<2x768xf32> to vector<2x256xf32>
    %68 = vector.extract_strided_slice %54 {offsets = [0, 512], sizes = [2, 256], strides = [1, 1]} : vector<2x768xf32> to vector<2x256xf32>
    %69 = arith.addf %68, %15 : vector<2x256xf32>
    %70 = arith.mulf %65, %69 : vector<2x256xf32>
    %71 = arith.addf %67, %70 : vector<2x256xf32>
    %72 = math.tanh %71 : vector<2x256xf32>
    %cst_24 = arith.constant 1.000000e+00 : f32
    %73 = vector.broadcast %cst_24 : f32 to vector<2x256xf32>
    %74 = arith.subf %73, %66 : vector<2x256xf32>
    %75 = arith.mulf %74, %72 : vector<2x256xf32>
    %76 = arith.mulf %66, %24 : vector<2x256xf32>
    %77 = arith.addf %75, %76 : vector<2x256xf32>
    %c0_25 = arith.constant 0 : index
    %c0_26 = arith.constant 0 : index
    %78 = vector.load %arg6[%c0_25, %c0_26] : memref<12x256xf32, #tpu.memory_space<vmem>>, vector<2x256xf32>
    tpu.vector_store %arg6[%c0_25, %c0_26], %77 {strides = array<i32>} : memref<12x256xf32, #tpu.memory_space<vmem>>, vector<2x256xf32>,
    %79 = arith.truncf %49 : vector<2x256xf32> to vector<2x256xbf16>
    %cst_27 = arith.constant dense<0.000000e+00> : vector<2x768xf32>
    %80 = tpu.matmul %79, %1, %cst_27 {dimension_numbers = #tpu.dot_dimension_numbers<[1], [0], [0], [1], [0, 0, 1, 1], [], []>} : vector<2x256xbf16>, vector<256x768xbf16>, vector<2x768xf32> -> vector<2x768xf32>
    %81 = vector.extract_strided_slice %22 {offsets = [0, 0], sizes = [2, 512], strides = [1, 1]} : vector<2x768xf32> to vector<2x512xf32>
    %82 = vector.extract_strided_slice %80 {offsets = [0, 0], sizes = [2, 512], strides = [1, 1]} : vector<2x768xf32> to vector<2x512xf32>
    %83 = arith.addf %81, %82 : vector<2x512xf32>
    %cst_28 = arith.constant 5.000000e-01 : f32
    %84 = vector.broadcast %cst_28 : f32 to vector<2x512xf32>
    %85 = arith.mulf %84, %83 : vector<2x512xf32>
    %86 = math.tanh %85 : vector<2x512xf32>
    %cst_29 = arith.constant 1.000000e+00 : f32
    %87 = vector.broadcast %cst_29 : f32 to vector<2x512xf32>
    %88 = arith.addf %86, %87 : vector<2x512xf32>
    %cst_30 = arith.constant 5.000000e-01 : f32
    %89 = vector.broadcast %cst_30 : f32 to vector<2x512xf32>
    %90 = arith.mulf %89, %88 : vector<2x512xf32>
    %91 = vector.extract_strided_slice %90 {offsets = [0, 0], sizes = [2, 256], strides = [1, 1]} : vector<2x512xf32> to vector<2x256xf32>
    %92 = vector.extract_strided_slice %90 {offsets = [0, 256], sizes = [2, 256], strides = [1, 1]} : vector<2x512xf32> to vector<2x256xf32>
    %93 = vector.extract_strided_slice %22 {offsets = [0, 512], sizes = [2, 256], strides = [1, 1]} : vector<2x768xf32> to vector<2x256xf32>
    %94 = vector.extract_strided_slice %80 {offsets = [0, 512], sizes = [2, 256], strides = [1, 1]} : vector<2x768xf32> to vector<2x256xf32>
    %95 = arith.addf %94, %12 : vector<2x256xf32>
    %96 = arith.mulf %91, %95 : vector<2x256xf32>
    %97 = arith.addf %93, %96 : vector<2x256xf32>
    %98 = math.tanh %97 : vector<2x256xf32>
    %cst_31 = arith.constant 1.000000e+00 : f32
    %99 = vector.broadcast %cst_31 : f32 to vector<2x256xf32>
    %100 = arith.subf %99, %92 : vector<2x256xf32>
    %101 = arith.mulf %100, %98 : vector<2x256xf32>
    %102 = arith.mulf %92, %49 : vector<2x256xf32>
    %103 = arith.addf %101, %102 : vector<2x256xf32>
    %104 = arith.truncf %103 : vector<2x256xf32> to vector<2x256xbf16>
    %cst_32 = arith.constant dense<0.000000e+00> : vector<2x768xf32>
    %105 = tpu.matmul %104, %2, %cst_32 {dimension_numbers = #tpu.dot_dimension_numbers<[1], [0], [0], [1], [0, 0, 1, 1], [], []>} : vector<2x256xbf16>, vector<256x768xbf16>, vector<2x768xf32> -> vector<2x768xf32>
    %106 = arith.addf %105, %9 : vector<2x768xf32>
    %107 = arith.truncf %77 : vector<2x256xf32> to vector<2x256xbf16>
    %cst_33 = arith.constant dense<0.000000e+00> : vector<2x768xf32>
    %108 = tpu.matmul %107, %3, %cst_33 {dimension_numbers = #tpu.dot_dimension_numbers<[1], [0], [0], [1], [0, 0, 1, 1], [], []>} : vector<2x256xbf16>, vector<256x768xbf16>, vector<2x768xf32> -> vector<2x768xf32>
    %109 = vector.extract_strided_slice %106 {offsets = [0, 0], sizes = [2, 512], strides = [1, 1]} : vector<2x768xf32> to vector<2x512xf32>
    %110 = vector.extract_strided_slice %108 {offsets = [0, 0], sizes = [2, 512], strides = [1, 1]} : vector<2x768xf32> to vector<2x512xf32>
    %111 = arith.addf %109, %110 : vector<2x512xf32>
    %cst_34 = arith.constant 5.000000e-01 : f32
    %112 = vector.broadcast %cst_34 : f32 to vector<2x512xf32>
    %113 = arith.mulf %112, %111 : vector<2x512xf32>
    %114 = math.tanh %113 : vector<2x512xf32>
    %cst_35 = arith.constant 1.000000e+00 : f32
    %115 = vector.broadcast %cst_35 : f32 to vector<2x512xf32>
    %116 = arith.addf %114, %115 : vector<2x512xf32>
    %cst_36 = arith.constant 5.000000e-01 : f32
    %117 = vector.broadcast %cst_36 : f32 to vector<2x512xf32>
    %118 = arith.mulf %117, %116 : vector<2x512xf32>
    %119 = vector.extract_strided_slice %118 {offsets = [0, 0], sizes = [2, 256], strides = [1, 1]} : vector<2x512xf32> to vector<2x256xf32>
    %120 = vector.extract_strided_slice %118 {offsets = [0, 256], sizes = [2, 256], strides = [1, 1]} : vector<2x512xf32> to vector<2x256xf32>
    %121 = vector.extract_strided_slice %106 {offsets = [0, 512], sizes = [2, 256], strides = [1, 1]} : vector<2x768xf32> to vector<2x256xf32>
    %122 = vector.extract_strided_slice %108 {offsets = [0, 512], sizes = [2, 256], strides = [1, 1]} : vector<2x768xf32> to vector<2x256xf32>
    %123 = arith.addf %122, %15 : vector<2x256xf32>
    %124 = arith.mulf %119, %123 : vector<2x256xf32>
    %125 = arith.addf %121, %124 : vector<2x256xf32>
    %126 = math.tanh %125 : vector<2x256xf32>
    %cst_37 = arith.constant 1.000000e+00 : f32
    %127 = vector.broadcast %cst_37 : f32 to vector<2x256xf32>
    %128 = arith.subf %127, %120 : vector<2x256xf32>
    %129 = arith.mulf %128, %126 : vector<2x256xf32>
    %130 = arith.mulf %120, %77 : vector<2x256xf32>
    %131 = arith.addf %129, %130 : vector<2x256xf32>
    %c2_38 = arith.constant 2 : index
    %c0_39 = arith.constant 0 : index
    %132 = vector.load %arg6[%c2_38, %c0_39] : memref<12x256xf32, #tpu.memory_space<vmem>>, vector<2x256xf32>
    tpu.vector_store %arg6[%c2_38, %c0_39], %131 {strides = array<i32>} : memref<12x256xf32, #tpu.memory_space<vmem>>, vector<2x256xf32>,
    %133 = arith.truncf %103 : vector<2x256xf32> to vector<2x256xbf16>
    %cst_40 = arith.constant dense<0.000000e+00> : vector<2x768xf32>
    %134 = tpu.matmul %133, %1, %cst_40 {dimension_numbers = #tpu.dot_dimension_numbers<[1], [0], [0], [1], [0, 0, 1, 1], [], []>} : vector<2x256xbf16>, vector<256x768xbf16>, vector<2x768xf32> -> vector<2x768xf32>
    %135 = vector.extract_strided_slice %22 {offsets = [0, 0], sizes = [2, 512], strides = [1, 1]} : vector<2x768xf32> to vector<2x512xf32>
    %136 = vector.extract_strided_slice %134 {offsets = [0, 0], sizes = [2, 512], strides = [1, 1]} : vector<2x768xf32> to vector<2x512xf32>
    %137 = arith.addf %135, %136 : vector<2x512xf32>
    %cst_41 = arith.constant 5.000000e-01 : f32
    %138 = vector.broadcast %cst_41 : f32 to vector<2x512xf32>
    %139 = arith.mulf %138, %137 : vector<2x512xf32>
    %140 = math.tanh %139 : vector<2x512xf32>
    %cst_42 = arith.constant 1.000000e+00 : f32
    %141 = vector.broadcast %cst_42 : f32 to vector<2x512xf32>
    %142 = arith.addf %140, %141 : vector<2x512xf32>
    %cst_43 = arith.constant 5.000000e-01 : f32
    %143 = vector.broadcast %cst_43 : f32 to vector<2x512xf32>
    %144 = arith.mulf %143, %142 : vector<2x512xf32>
    %145 = vector.extract_strided_slice %144 {offsets = [0, 0], sizes = [2, 256], strides = [1, 1]} : vector<2x512xf32> to vector<2x256xf32>
    %146 = vector.extract_strided_slice %144 {offsets = [0, 256], sizes = [2, 256], strides = [1, 1]} : vector<2x512xf32> to vector<2x256xf32>
    %147 = vector.extract_strided_slice %22 {offsets = [0, 512], sizes = [2, 256], strides = [1, 1]} : vector<2x768xf32> to vector<2x256xf32>
    %148 = vector.extract_strided_slice %134 {offsets = [0, 512], sizes = [2, 256], strides = [1, 1]} : vector<2x768xf32> to vector<2x256xf32>
    %149 = arith.addf %148, %12 : vector<2x256xf32>
    %150 = arith.mulf %145, %149 : vector<2x256xf32>
    %151 = arith.addf %147, %150 : vector<2x256xf32>
    %152 = math.tanh %151 : vector<2x256xf32>
    %cst_44 = arith.constant 1.000000e+00 : f32
    %153 = vector.broadcast %cst_44 : f32 to vector<2x256xf32>
    %154 = arith.subf %153, %146 : vector<2x256xf32>
    %155 = arith.mulf %154, %152 : vector<2x256xf32>
    %156 = arith.mulf %146, %103 : vector<2x256xf32>
    %157 = arith.addf %155, %156 : vector<2x256xf32>
    %158 = arith.truncf %157 : vector<2x256xf32> to vector<2x256xbf16>
    %cst_45 = arith.constant dense<0.000000e+00> : vector<2x768xf32>
    %159 = tpu.matmul %158, %2, %cst_45 {dimension_numbers = #tpu.dot_dimension_numbers<[1], [0], [0], [1], [0, 0, 1, 1], [], []>} : vector<2x256xbf16>, vector<256x768xbf16>, vector<2x768xf32> -> vector<2x768xf32>
    %160 = arith.addf %159, %9 : vector<2x768xf32>
    %161 = arith.truncf %131 : vector<2x256xf32> to vector<2x256xbf16>
    %cst_46 = arith.constant dense<0.000000e+00> : vector<2x768xf32>
    %162 = tpu.matmul %161, %3, %cst_46 {dimension_numbers = #tpu.dot_dimension_numbers<[1], [0], [0], [1], [0, 0, 1, 1], [], []>} : vector<2x256xbf16>, vector<256x768xbf16>, vector<2x768xf32> -> vector<2x768xf32>
    %163 = vector.extract_strided_slice %160 {offsets = [0, 0], sizes = [2, 512], strides = [1, 1]} : vector<2x768xf32> to vector<2x512xf32>
    %164 = vector.extract_strided_slice %162 {offsets = [0, 0], sizes = [2, 512], strides = [1, 1]} : vector<2x768xf32> to vector<2x512xf32>
    %165 = arith.addf %163, %164 : vector<2x512xf32>
    %cst_47 = arith.constant 5.000000e-01 : f32
    %166 = vector.broadcast %cst_47 : f32 to vector<2x512xf32>
    %167 = arith.mulf %166, %165 : vector<2x512xf32>
    %168 = math.tanh %167 : vector<2x512xf32>
    %cst_48 = arith.constant 1.000000e+00 : f32
    %169 = vector.broadcast %cst_48 : f32 to vector<2x512xf32>
    %170 = arith.addf %168, %169 : vector<2x512xf32>
    %cst_49 = arith.constant 5.000000e-01 : f32
    %171 = vector.broadcast %cst_49 : f32 to vector<2x512xf32>
    %172 = arith.mulf %171, %170 : vector<2x512xf32>
    %173 = vector.extract_strided_slice %172 {offsets = [0, 0], sizes = [2, 256], strides = [1, 1]} : vector<2x512xf32> to vector<2x256xf32>
    %174 = vector.extract_strided_slice %172 {offsets = [0, 256], sizes = [2, 256], strides = [1, 1]} : vector<2x512xf32> to vector<2x256xf32>
    %175 = vector.extract_strided_slice %160 {offsets = [0, 512], sizes = [2, 256], strides = [1, 1]} : vector<2x768xf32> to vector<2x256xf32>
    %176 = vector.extract_strided_slice %162 {offsets = [0, 512], sizes = [2, 256], strides = [1, 1]} : vector<2x768xf32> to vector<2x256xf32>
    %177 = arith.addf %176, %15 : vector<2x256xf32>
    %178 = arith.mulf %173, %177 : vector<2x256xf32>
    %179 = arith.addf %175, %178 : vector<2x256xf32>
    %180 = math.tanh %179 : vector<2x256xf32>
    %cst_50 = arith.constant 1.000000e+00 : f32
    %181 = vector.broadcast %cst_50 : f32 to vector<2x256xf32>
    %182 = arith.subf %181, %174 : vector<2x256xf32>
    %183 = arith.mulf %182, %180 : vector<2x256xf32>
    %184 = arith.mulf %174, %131 : vector<2x256xf32>
    %185 = arith.addf %183, %184 : vector<2x256xf32>
    %c4_51 = arith.constant 4 : index
    %c0_52 = arith.constant 0 : index
    %186 = vector.load %arg6[%c4_51, %c0_52] : memref<12x256xf32, #tpu.memory_space<vmem>>, vector<2x256xf32>
    tpu.vector_store %arg6[%c4_51, %c0_52], %185 {strides = array<i32>} : memref<12x256xf32, #tpu.memory_space<vmem>>, vector<2x256xf32>,
    %187 = arith.truncf %157 : vector<2x256xf32> to vector<2x256xbf16>
    %cst_53 = arith.constant dense<0.000000e+00> : vector<2x768xf32>
    %188 = tpu.matmul %187, %1, %cst_53 {dimension_numbers = #tpu.dot_dimension_numbers<[1], [0], [0], [1], [0, 0, 1, 1], [], []>} : vector<2x256xbf16>, vector<256x768xbf16>, vector<2x768xf32> -> vector<2x768xf32>
    %189 = vector.extract_strided_slice %22 {offsets = [0, 0], sizes = [2, 512], strides = [1, 1]} : vector<2x768xf32> to vector<2x512xf32>
    %190 = vector.extract_strided_slice %188 {offsets = [0, 0], sizes = [2, 512], strides = [1, 1]} : vector<2x768xf32> to vector<2x512xf32>
    %191 = arith.addf %189, %190 : vector<2x512xf32>
    %cst_54 = arith.constant 5.000000e-01 : f32
    %192 = vector.broadcast %cst_54 : f32 to vector<2x512xf32>
    %193 = arith.mulf %192, %191 : vector<2x512xf32>
    %194 = math.tanh %193 : vector<2x512xf32>
    %cst_55 = arith.constant 1.000000e+00 : f32
    %195 = vector.broadcast %cst_55 : f32 to vector<2x512xf32>
    %196 = arith.addf %194, %195 : vector<2x512xf32>
    %cst_56 = arith.constant 5.000000e-01 : f32
    %197 = vector.broadcast %cst_56 : f32 to vector<2x512xf32>
    %198 = arith.mulf %197, %196 : vector<2x512xf32>
    %199 = vector.extract_strided_slice %198 {offsets = [0, 0], sizes = [2, 256], strides = [1, 1]} : vector<2x512xf32> to vector<2x256xf32>
    %200 = vector.extract_strided_slice %198 {offsets = [0, 256], sizes = [2, 256], strides = [1, 1]} : vector<2x512xf32> to vector<2x256xf32>
    %201 = vector.extract_strided_slice %22 {offsets = [0, 512], sizes = [2, 256], strides = [1, 1]} : vector<2x768xf32> to vector<2x256xf32>
    %202 = vector.extract_strided_slice %188 {offsets = [0, 512], sizes = [2, 256], strides = [1, 1]} : vector<2x768xf32> to vector<2x256xf32>
    %203 = arith.addf %202, %12 : vector<2x256xf32>
    %204 = arith.mulf %199, %203 : vector<2x256xf32>
    %205 = arith.addf %201, %204 : vector<2x256xf32>
    %206 = math.tanh %205 : vector<2x256xf32>
    %cst_57 = arith.constant 1.000000e+00 : f32
    %207 = vector.broadcast %cst_57 : f32 to vector<2x256xf32>
    %208 = arith.subf %207, %200 : vector<2x256xf32>
    %209 = arith.mulf %208, %206 : vector<2x256xf32>
    %210 = arith.mulf %200, %157 : vector<2x256xf32>
    %211 = arith.addf %209, %210 : vector<2x256xf32>
    %212 = arith.truncf %211 : vector<2x256xf32> to vector<2x256xbf16>
    %cst_58 = arith.constant dense<0.000000e+00> : vector<2x768xf32>
    %213 = tpu.matmul %212, %2, %cst_58 {dimension_numbers = #tpu.dot_dimension_numbers<[1], [0], [0], [1], [0, 0, 1, 1], [], []>} : vector<2x256xbf16>, vector<256x768xbf16>, vector<2x768xf32> -> vector<2x768xf32>
    %214 = arith.addf %213, %9 : vector<2x768xf32>
    %215 = arith.truncf %185 : vector<2x256xf32> to vector<2x256xbf16>
    %cst_59 = arith.constant dense<0.000000e+00> : vector<2x768xf32>
    %216 = tpu.matmul %215, %3, %cst_59 {dimension_numbers = #tpu.dot_dimension_numbers<[1], [0], [0], [1], [0, 0, 1, 1], [], []>} : vector<2x256xbf16>, vector<256x768xbf16>, vector<2x768xf32> -> vector<2x768xf32>
    %217 = vector.extract_strided_slice %214 {offsets = [0, 0], sizes = [2, 512], strides = [1, 1]} : vector<2x768xf32> to vector<2x512xf32>
    %218 = vector.extract_strided_slice %216 {offsets = [0, 0], sizes = [2, 512], strides = [1, 1]} : vector<2x768xf32> to vector<2x512xf32>
    %219 = arith.addf %217, %218 : vector<2x512xf32>
    %cst_60 = arith.constant 5.000000e-01 : f32
    %220 = vector.broadcast %cst_60 : f32 to vector<2x512xf32>
    %221 = arith.mulf %220, %219 : vector<2x512xf32>
    %222 = math.tanh %221 : vector<2x512xf32>
    %cst_61 = arith.constant 1.000000e+00 : f32
    %223 = vector.broadcast %cst_61 : f32 to vector<2x512xf32>
    %224 = arith.addf %222, %223 : vector<2x512xf32>
    %cst_62 = arith.constant 5.000000e-01 : f32
    %225 = vector.broadcast %cst_62 : f32 to vector<2x512xf32>
    %226 = arith.mulf %225, %224 : vector<2x512xf32>
    %227 = vector.extract_strided_slice %226 {offsets = [0, 0], sizes = [2, 256], strides = [1, 1]} : vector<2x512xf32> to vector<2x256xf32>
    %228 = vector.extract_strided_slice %226 {offsets = [0, 256], sizes = [2, 256], strides = [1, 1]} : vector<2x512xf32> to vector<2x256xf32>
    %229 = vector.extract_strided_slice %214 {offsets = [0, 512], sizes = [2, 256], strides = [1, 1]} : vector<2x768xf32> to vector<2x256xf32>
    %230 = vector.extract_strided_slice %216 {offsets = [0, 512], sizes = [2, 256], strides = [1, 1]} : vector<2x768xf32> to vector<2x256xf32>
    %231 = arith.addf %230, %15 : vector<2x256xf32>
    %232 = arith.mulf %227, %231 : vector<2x256xf32>
    %233 = arith.addf %229, %232 : vector<2x256xf32>
    %234 = math.tanh %233 : vector<2x256xf32>
    %cst_63 = arith.constant 1.000000e+00 : f32
    %235 = vector.broadcast %cst_63 : f32 to vector<2x256xf32>
    %236 = arith.subf %235, %228 : vector<2x256xf32>
    %237 = arith.mulf %236, %234 : vector<2x256xf32>
    %238 = arith.mulf %228, %185 : vector<2x256xf32>
    %239 = arith.addf %237, %238 : vector<2x256xf32>
    %c6 = arith.constant 6 : index
    %c0_64 = arith.constant 0 : index
    %240 = vector.load %arg6[%c6, %c0_64] : memref<12x256xf32, #tpu.memory_space<vmem>>, vector<2x256xf32>
    tpu.vector_store %arg6[%c6, %c0_64], %239 {strides = array<i32>} : memref<12x256xf32, #tpu.memory_space<vmem>>, vector<2x256xf32>,
    %241 = arith.truncf %211 : vector<2x256xf32> to vector<2x256xbf16>
    %cst_65 = arith.constant dense<0.000000e+00> : vector<2x768xf32>
    %242 = tpu.matmul %241, %1, %cst_65 {dimension_numbers = #tpu.dot_dimension_numbers<[1], [0], [0], [1], [0, 0, 1, 1], [], []>} : vector<2x256xbf16>, vector<256x768xbf16>, vector<2x768xf32> -> vector<2x768xf32>
    %243 = vector.extract_strided_slice %22 {offsets = [0, 0], sizes = [2, 512], strides = [1, 1]} : vector<2x768xf32> to vector<2x512xf32>
    %244 = vector.extract_strided_slice %242 {offsets = [0, 0], sizes = [2, 512], strides = [1, 1]} : vector<2x768xf32> to vector<2x512xf32>
    %245 = arith.addf %243, %244 : vector<2x512xf32>
    %cst_66 = arith.constant 5.000000e-01 : f32
    %246 = vector.broadcast %cst_66 : f32 to vector<2x512xf32>
    %247 = arith.mulf %246, %245 : vector<2x512xf32>
    %248 = math.tanh %247 : vector<2x512xf32>
    %cst_67 = arith.constant 1.000000e+00 : f32
    %249 = vector.broadcast %cst_67 : f32 to vector<2x512xf32>
    %250 = arith.addf %248, %249 : vector<2x512xf32>
    %cst_68 = arith.constant 5.000000e-01 : f32
    %251 = vector.broadcast %cst_68 : f32 to vector<2x512xf32>
    %252 = arith.mulf %251, %250 : vector<2x512xf32>
    %253 = vector.extract_strided_slice %252 {offsets = [0, 0], sizes = [2, 256], strides = [1, 1]} : vector<2x512xf32> to vector<2x256xf32>
    %254 = vector.extract_strided_slice %252 {offsets = [0, 256], sizes = [2, 256], strides = [1, 1]} : vector<2x512xf32> to vector<2x256xf32>
    %255 = vector.extract_strided_slice %22 {offsets = [0, 512], sizes = [2, 256], strides = [1, 1]} : vector<2x768xf32> to vector<2x256xf32>
    %256 = vector.extract_strided_slice %242 {offsets = [0, 512], sizes = [2, 256], strides = [1, 1]} : vector<2x768xf32> to vector<2x256xf32>
    %257 = arith.addf %256, %12 : vector<2x256xf32>
    %258 = arith.mulf %253, %257 : vector<2x256xf32>
    %259 = arith.addf %255, %258 : vector<2x256xf32>
    %260 = math.tanh %259 : vector<2x256xf32>
    %cst_69 = arith.constant 1.000000e+00 : f32
    %261 = vector.broadcast %cst_69 : f32 to vector<2x256xf32>
    %262 = arith.subf %261, %254 : vector<2x256xf32>
    %263 = arith.mulf %262, %260 : vector<2x256xf32>
    %264 = arith.mulf %254, %211 : vector<2x256xf32>
    %265 = arith.addf %263, %264 : vector<2x256xf32>
    %266 = arith.truncf %265 : vector<2x256xf32> to vector<2x256xbf16>
    %cst_70 = arith.constant dense<0.000000e+00> : vector<2x768xf32>
    %267 = tpu.matmul %266, %2, %cst_70 {dimension_numbers = #tpu.dot_dimension_numbers<[1], [0], [0], [1], [0, 0, 1, 1], [], []>} : vector<2x256xbf16>, vector<256x768xbf16>, vector<2x768xf32> -> vector<2x768xf32>
    %268 = arith.addf %267, %9 : vector<2x768xf32>
    %269 = arith.truncf %239 : vector<2x256xf32> to vector<2x256xbf16>
    %cst_71 = arith.constant dense<0.000000e+00> : vector<2x768xf32>
    %270 = tpu.matmul %269, %3, %cst_71 {dimension_numbers = #tpu.dot_dimension_numbers<[1], [0], [0], [1], [0, 0, 1, 1], [], []>} : vector<2x256xbf16>, vector<256x768xbf16>, vector<2x768xf32> -> vector<2x768xf32>
    %271 = vector.extract_strided_slice %268 {offsets = [0, 0], sizes = [2, 512], strides = [1, 1]} : vector<2x768xf32> to vector<2x512xf32>
    %272 = vector.extract_strided_slice %270 {offsets = [0, 0], sizes = [2, 512], strides = [1, 1]} : vector<2x768xf32> to vector<2x512xf32>
    %273 = arith.addf %271, %272 : vector<2x512xf32>
    %cst_72 = arith.constant 5.000000e-01 : f32
    %274 = vector.broadcast %cst_72 : f32 to vector<2x512xf32>
    %275 = arith.mulf %274, %273 : vector<2x512xf32>
    %276 = math.tanh %275 : vector<2x512xf32>
    %cst_73 = arith.constant 1.000000e+00 : f32
    %277 = vector.broadcast %cst_73 : f32 to vector<2x512xf32>
    %278 = arith.addf %276, %277 : vector<2x512xf32>
    %cst_74 = arith.constant 5.000000e-01 : f32
    %279 = vector.broadcast %cst_74 : f32 to vector<2x512xf32>
    %280 = arith.mulf %279, %278 : vector<2x512xf32>
    %281 = vector.extract_strided_slice %280 {offsets = [0, 0], sizes = [2, 256], strides = [1, 1]} : vector<2x512xf32> to vector<2x256xf32>
    %282 = vector.extract_strided_slice %280 {offsets = [0, 256], sizes = [2, 256], strides = [1, 1]} : vector<2x512xf32> to vector<2x256xf32>
    %283 = vector.extract_strided_slice %268 {offsets = [0, 512], sizes = [2, 256], strides = [1, 1]} : vector<2x768xf32> to vector<2x256xf32>
    %284 = vector.extract_strided_slice %270 {offsets = [0, 512], sizes = [2, 256], strides = [1, 1]} : vector<2x768xf32> to vector<2x256xf32>
    %285 = arith.addf %284, %15 : vector<2x256xf32>
    %286 = arith.mulf %281, %285 : vector<2x256xf32>
    %287 = arith.addf %283, %286 : vector<2x256xf32>
    %288 = math.tanh %287 : vector<2x256xf32>
    %cst_75 = arith.constant 1.000000e+00 : f32
    %289 = vector.broadcast %cst_75 : f32 to vector<2x256xf32>
    %290 = arith.subf %289, %282 : vector<2x256xf32>
    %291 = arith.mulf %290, %288 : vector<2x256xf32>
    %292 = arith.mulf %282, %239 : vector<2x256xf32>
    %293 = arith.addf %291, %292 : vector<2x256xf32>
    %c8 = arith.constant 8 : index
    %c0_76 = arith.constant 0 : index
    %294 = vector.load %arg6[%c8, %c0_76] : memref<12x256xf32, #tpu.memory_space<vmem>>, vector<2x256xf32>
    tpu.vector_store %arg6[%c8, %c0_76], %293 {strides = array<i32>} : memref<12x256xf32, #tpu.memory_space<vmem>>, vector<2x256xf32>,
    %295 = arith.truncf %265 : vector<2x256xf32> to vector<2x256xbf16>
    %cst_77 = arith.constant dense<0.000000e+00> : vector<2x768xf32>
    %296 = tpu.matmul %295, %1, %cst_77 {dimension_numbers = #tpu.dot_dimension_numbers<[1], [0], [0], [1], [0, 0, 1, 1], [], []>} : vector<2x256xbf16>, vector<256x768xbf16>, vector<2x768xf32> -> vector<2x768xf32>
    %297 = vector.extract_strided_slice %22 {offsets = [0, 0], sizes = [2, 512], strides = [1, 1]} : vector<2x768xf32> to vector<2x512xf32>
    %298 = vector.extract_strided_slice %296 {offsets = [0, 0], sizes = [2, 512], strides = [1, 1]} : vector<2x768xf32> to vector<2x512xf32>
    %299 = arith.addf %297, %298 : vector<2x512xf32>
    %cst_78 = arith.constant 5.000000e-01 : f32
    %300 = vector.broadcast %cst_78 : f32 to vector<2x512xf32>
    %301 = arith.mulf %300, %299 : vector<2x512xf32>
    %302 = math.tanh %301 : vector<2x512xf32>
    %cst_79 = arith.constant 1.000000e+00 : f32
    %303 = vector.broadcast %cst_79 : f32 to vector<2x512xf32>
    %304 = arith.addf %302, %303 : vector<2x512xf32>
    %cst_80 = arith.constant 5.000000e-01 : f32
    %305 = vector.broadcast %cst_80 : f32 to vector<2x512xf32>
    %306 = arith.mulf %305, %304 : vector<2x512xf32>
    %307 = vector.extract_strided_slice %306 {offsets = [0, 0], sizes = [2, 256], strides = [1, 1]} : vector<2x512xf32> to vector<2x256xf32>
    %308 = vector.extract_strided_slice %306 {offsets = [0, 256], sizes = [2, 256], strides = [1, 1]} : vector<2x512xf32> to vector<2x256xf32>
    %309 = vector.extract_strided_slice %22 {offsets = [0, 512], sizes = [2, 256], strides = [1, 1]} : vector<2x768xf32> to vector<2x256xf32>
    %310 = vector.extract_strided_slice %296 {offsets = [0, 512], sizes = [2, 256], strides = [1, 1]} : vector<2x768xf32> to vector<2x256xf32>
    %311 = arith.addf %310, %12 : vector<2x256xf32>
    %312 = arith.mulf %307, %311 : vector<2x256xf32>
    %313 = arith.addf %309, %312 : vector<2x256xf32>
    %314 = math.tanh %313 : vector<2x256xf32>
    %cst_81 = arith.constant 1.000000e+00 : f32
    %315 = vector.broadcast %cst_81 : f32 to vector<2x256xf32>
    %316 = arith.subf %315, %308 : vector<2x256xf32>
    %317 = arith.mulf %316, %314 : vector<2x256xf32>
    %318 = arith.mulf %308, %265 : vector<2x256xf32>
    %319 = arith.addf %317, %318 : vector<2x256xf32>
    %320 = arith.truncf %319 : vector<2x256xf32> to vector<2x256xbf16>
    %cst_82 = arith.constant dense<0.000000e+00> : vector<2x768xf32>
    %321 = tpu.matmul %320, %2, %cst_82 {dimension_numbers = #tpu.dot_dimension_numbers<[1], [0], [0], [1], [0, 0, 1, 1], [], []>} : vector<2x256xbf16>, vector<256x768xbf16>, vector<2x768xf32> -> vector<2x768xf32>
    %322 = arith.addf %321, %9 : vector<2x768xf32>
    %323 = arith.truncf %293 : vector<2x256xf32> to vector<2x256xbf16>
    %cst_83 = arith.constant dense<0.000000e+00> : vector<2x768xf32>
    %324 = tpu.matmul %323, %3, %cst_83 {dimension_numbers = #tpu.dot_dimension_numbers<[1], [0], [0], [1], [0, 0, 1, 1], [], []>} : vector<2x256xbf16>, vector<256x768xbf16>, vector<2x768xf32> -> vector<2x768xf32>
    %325 = vector.extract_strided_slice %322 {offsets = [0, 0], sizes = [2, 512], strides = [1, 1]} : vector<2x768xf32> to vector<2x512xf32>
    %326 = vector.extract_strided_slice %324 {offsets = [0, 0], sizes = [2, 512], strides = [1, 1]} : vector<2x768xf32> to vector<2x512xf32>
    %327 = arith.addf %325, %326 : vector<2x512xf32>
    %cst_84 = arith.constant 5.000000e-01 : f32
    %328 = vector.broadcast %cst_84 : f32 to vector<2x512xf32>
    %329 = arith.mulf %328, %327 : vector<2x512xf32>
    %330 = math.tanh %329 : vector<2x512xf32>
    %cst_85 = arith.constant 1.000000e+00 : f32
    %331 = vector.broadcast %cst_85 : f32 to vector<2x512xf32>
    %332 = arith.addf %330, %331 : vector<2x512xf32>
    %cst_86 = arith.constant 5.000000e-01 : f32
    %333 = vector.broadcast %cst_86 : f32 to vector<2x512xf32>
    %334 = arith.mulf %333, %332 : vector<2x512xf32>
    %335 = vector.extract_strided_slice %334 {offsets = [0, 0], sizes = [2, 256], strides = [1, 1]} : vector<2x512xf32> to vector<2x256xf32>
    %336 = vector.extract_strided_slice %334 {offsets = [0, 256], sizes = [2, 256], strides = [1, 1]} : vector<2x512xf32> to vector<2x256xf32>
    %337 = vector.extract_strided_slice %322 {offsets = [0, 512], sizes = [2, 256], strides = [1, 1]} : vector<2x768xf32> to vector<2x256xf32>
    %338 = vector.extract_strided_slice %324 {offsets = [0, 512], sizes = [2, 256], strides = [1, 1]} : vector<2x768xf32> to vector<2x256xf32>
    %339 = arith.addf %338, %15 : vector<2x256xf32>
    %340 = arith.mulf %335, %339 : vector<2x256xf32>
    %341 = arith.addf %337, %340 : vector<2x256xf32>
    %342 = math.tanh %341 : vector<2x256xf32>
    %cst_87 = arith.constant 1.000000e+00 : f32
    %343 = vector.broadcast %cst_87 : f32 to vector<2x256xf32>
    %344 = arith.subf %343, %336 : vector<2x256xf32>
    %345 = arith.mulf %344, %342 : vector<2x256xf32>
    %346 = arith.mulf %336, %293 : vector<2x256xf32>
    %347 = arith.addf %345, %346 : vector<2x256xf32>
    %c10 = arith.constant 10 : index
    %c0_88 = arith.constant 0 : index
    %348 = vector.load %arg6[%c10, %c0_88] : memref<12x256xf32, #tpu.memory_space<vmem>>, vector<2x256xf32>
    tpu.vector_store %arg6[%c10, %c0_88], %347 {strides = array<i32>} : memref<12x256xf32, #tpu.memory_space<vmem>>, vector<2x256xf32>,
    %c0_89 = arith.constant 0 : index
    %c0_90 = arith.constant 0 : index
    %349 = vector.load %arg6[%c0_89, %c0_90] : memref<12x256xf32, #tpu.memory_space<vmem>>, vector<12x256xf32>
    %350 = arith.truncf %349 : vector<12x256xf32> to vector<12x256xbf16>
    %c0_91 = arith.constant 0 : index
    %c0_92 = arith.constant 0 : index
    %351 = vector.load %arg2[%c0_91, %c0_92] : memref<256x128xbf16, #tpu.memory_space<vmem>>, vector<256x128xbf16>
    %cst_93 = arith.constant dense<0.000000e+00> : vector<12x128xf32>
    %352 = tpu.matmul %350, %351, %cst_93 {dimension_numbers = #tpu.dot_dimension_numbers<[1], [0], [0], [1], [0, 0, 1, 1], [], []>} : vector<12x256xbf16>, vector<256x128xbf16>, vector<12x128xf32> -> vector<12x128xf32>
    %353 = arith.addf %352, %18 : vector<12x128xf32>
    %cst_94 = arith.constant 0.000000e+00 : f32
    %354 = vector.broadcast %cst_94 : f32 to vector<12x128xf32>
    %355 = arith.cmpf oge, %353, %354 : vector<12x128xf32>
    %cst_95 = arith.constant 0.00999999977 : f32
    %356 = vector.broadcast %cst_95 : f32 to vector<12x128xf32>
    %357 = arith.mulf %356, %353 : vector<12x128xf32>
    %358 = arith.select %355, %353, %357 : vector<12x128xi1>, vector<12x128xf32>
    %c0_96 = arith.constant 0 : index
    %c0_97 = arith.constant 0 : index
    %359 = vector.load %arg4[%c0_96, %c0_97] : memref<12x128xf32, #tpu.memory_space<vmem>>, vector<12x128xf32>
    tpu.vector_store %arg4[%c0_96, %c0_97], %358 {strides = array<i32>} : memref<12x128xf32, #tpu.memory_space<vmem>>, vector<12x128xf32>,
    %360 = tpu.concatenate %319, %347 in 1 : vector<2x256xf32>, vector<2x256xf32> -> vector<2x512xf32>
    %c0_98 = arith.constant 0 : index
    %c0_99 = arith.constant 0 : index
    %361 = vector.load %arg5[%c0_98, %c0_99] : memref<2x512xf32, #tpu.memory_space<vmem>>, vector<2x512xf32>
    tpu.vector_store %arg5[%c0_98, %c0_99], %360 {strides = array<i32>} : memref<2x512xf32, #tpu.memory_space<vmem>>, vector<2x512xf32>,
    return
  }
}

</mosaic_0001>

<llo_original>
// kernel: tpu_custom_call.1
$region0: #{tpu_custom_call.1}
  #allocation0 [shape = 'u32[]', space=smem, size = 0x4, offset = 0x4, fixed_abs, tag = 'smem constant byte address 0x4 - core index']
  #allocation1 [shape = 'u32[144,128]{1,0:T(1,128)}', space=vmem, size = 0x12000, scoped, tag = 'internal scratch']
  #allocation2 [shape = 'f32[12,256]{1,0:T(8,128)}', space=vmem, size = 0x4000, scoped, tag = 'scratch operand']
  %s0 = inlined_call_operand.hbm [shape: f32[2,32], index: 0, kind: input, shape index: {}]
  %s1 = inlined_call_operand.hbm [shape: bf16[800,768], index: 1, kind: input, shape index: {}]
  %s2 = inlined_call_operand.hbm [shape: bf16[256,128], index: 2, kind: input, shape index: {}]
  %s3 = inlined_call_operand.hbm [shape: f32[8,768], index: 3, kind: input, shape index: {}]
  %s4 = inlined_call_operand.hbm [shape: f32[12,128], index: 4, kind: output, shape index: {0}]
  %s5 = inlined_call_operand.hbm [shape: f32[2,512], index: 5, kind: output, shape index: {1}]
  %6 = xla_tuple %s4, %s5
  %s7 = sld [smem:[#allocation0]]
  $region50: #{tpu_custom_call.1} parent=0
    _
  %s9 = ssub.s32 1, %s7
  %s10 = scalar_select 0, %s9, %s7
  $region1: #{tpu_custom_call.1} parent=0
    #allocation3 [shape = 'u8[1024]{0}', space=vmem, size = 0x400, scoped, tag = 'input window, operand 0, single buffered']
    #allocation4 [shape = 's32[1]{0}', space=sflag, size = 0x4, scoped, tag = 'scoped memory for tpu_custom_call.1']
    #allocation5 [shape = 's32[1]{0}', space=sflag, size = 0x4, scoped, tag = 'scoped memory for tpu_custom_call.1']
    #allocation6 [shape = 'u8[1228800]{0}', space=vmem, size = 0x12c000, scoped, tag = 'input window, operand 1, single buffered']
    #allocation7 [shape = 's32[1]{0}', space=sflag, size = 0x4, scoped, tag = 'scoped memory for tpu_custom_call.1']
    #allocation8 [shape = 'u8[65536]{0}', space=vmem, size = 0x10000, scoped, tag = 'input window, operand 2, single buffered']
    #allocation9 [shape = 'u8[24576]{0}', space=vmem, size = 0x6000, scoped, tag = 'input window, operand 3, single buffered']
    #allocation10 [shape = 's32[1]{0}', space=sflag, size = 0x4, scoped, tag = 'scoped memory for tpu_custom_call.1']
    #allocation11 [shape = 'u8[8192]{0}', space=vmem, size = 0x2000, scoped, tag = 'output window, operand 0, single buffered']
    #allocation12 [shape = 'u8[4096]{0}', space=vmem, size = 0x1000, scoped, tag = 'output window, operand 1, single buffered']
    #allocation13 [shape = 's32[1]{0}', space=sflag, size = 0x4, scoped, tag = 'scoped memory for tpu_custom_call.1']
    %11 = vsyncpa [#allocation4], 0
    %12 = vsyncpa [#allocation7], 0
    %13 = vsyncpa [#allocation10], 0
    %14 = vsyncpa [#allocation5], 0
    %15 = vsyncpa [#allocation13], 0
    // Predicated region
    $region2: #{tpu_custom_call.1} parent=1 // pred_check
      _
    $region3: #{tpu_custom_call.1} parent=1 // pred_check_branch
      %17 = sbr.rel (0) target = $region5
    $region4: #{tpu_custom_call.1} parent=1 // pred_region
      %s19 = ssub.s32 32, 32
      %20 = vsyncadd [#allocation4], %s19
      %s22 = sshll.u32 [#allocation3], 4
      %s23 = int_to_ptr.vmem [resolvable:$true] %s22
      %25 = dma.hbm_to_vmem [thread:$0]  %s0, 32, %s23, [#allocation4]
    $region5: #{tpu_custom_call.1} parent=1 // pred_fallthru
      _
    // Predicated region
    $region6: #{tpu_custom_call.1} parent=1 // pred_check
      _
    $region7: #{tpu_custom_call.1} parent=1 // pred_check_branch
      %27 = sbr.rel (0) target = $region9
    $region8: #{tpu_custom_call.1} parent=1 // pred_region
      %s29 = ssub.s32 38400, 38400
      %30 = vsyncadd [#allocation7], %s29
      %s31 = sshll.u32 [#allocation6], 4
      %s32 = int_to_ptr.vmem [resolvable:$true] %s31
      %37 = dma.hbm_to_vmem [thread:$0]  %s1, 38400, %s32, [#allocation7], 384, 384, 24
    $region9: #{tpu_custom_call.1} parent=1 // pred_fallthru
      _
    // Predicated region
    $region10: #{tpu_custom_call.1} parent=1 // pred_check
      _
    $region11: #{tpu_custom_call.1} parent=1 // pred_check_branch
      %39 = sbr.rel (0) target = $region13
    $region12: #{tpu_custom_call.1} parent=1 // pred_region
      %s41 = ssub.s32 2048, 2048
      %42 = vsyncadd [#allocation7], %s41
      %s43 = sshll.u32 [#allocation8], 4
      %s44 = int_to_ptr.vmem [resolvable:$true] %s43
      %49 = dma.hbm_to_vmem [thread:$0]  %s2, 2048, %s44, [#allocation7], 64, 64, 4
    $region13: #{tpu_custom_call.1} parent=1 // pred_fallthru
      _
    // Predicated region
    $region14: #{tpu_custom_call.1} parent=1 // pred_check
      _
    $region15: #{tpu_custom_call.1} parent=1 // pred_check_branch
      %51 = sbr.rel (0) target = $region17
    $region16: #{tpu_custom_call.1} parent=1 // pred_region
      %s53 = ssub.s32 768, 768
      %54 = vsyncadd [#allocation10], %s53
      %s56 = sshll.u32 [#allocation9], 4
      %s57 = int_to_ptr.vmem [resolvable:$true] %s56
      %59 = dma.hbm_to_vmem [thread:$0]  %s3, 768, %s57, [#allocation10]
    $region17: #{tpu_custom_call.1} parent=1 // pred_fallthru
      _
    // Predicated region
    $region18: #{tpu_custom_call.1} parent=1 // pred_check
      _
    $region19: #{tpu_custom_call.1} parent=1 // pred_check_branch
      %61 = sbr.rel (0) target = $region21
    $region20: #{tpu_custom_call.1} parent=1 // pred_region
      %62 = dma.done [#allocation4], 32
    $region21: #{tpu_custom_call.1} parent=1 // pred_fallthru
      _
    // Predicated region
    $region22: #{tpu_custom_call.1} parent=1 // pred_check
      _
    $region23: #{tpu_custom_call.1} parent=1 // pred_check_branch
      %64 = sbr.rel (0) target = $region25
    $region24: #{tpu_custom_call.1} parent=1 // pred_region
      %65 = dma.done [#allocation7], 38400
    $region25: #{tpu_custom_call.1} parent=1 // pred_fallthru
      _
    // Predicated region
    $region26: #{tpu_custom_call.1} parent=1 // pred_check
      _
    $region27: #{tpu_custom_call.1} parent=1 // pred_check_branch
      %67 = sbr.rel (0) target = $region29
    $region28: #{tpu_custom_call.1} parent=1 // pred_region
      %68 = dma.done [#allocation7], 2048
    $region29: #{tpu_custom_call.1} parent=1 // pred_fallthru
      _
    // Predicated region
    $region30: #{tpu_custom_call.1} parent=1 // pred_check
      _
    $region31: #{tpu_custom_call.1} parent=1 // pred_check_branch
      %70 = sbr.rel (0) target = $region33
    $region32: #{tpu_custom_call.1} parent=1 // pred_region
      %71 = dma.done [#allocation10], 768
    $region33: #{tpu_custom_call.1} parent=1 // pred_fallthru
      _
    %v73 = vld [vmem:[#allocation6] sm:$0xff]
    %v74 = vld [vmem:[#allocation6 + $0x8] sm:$0xff]
    %v75 = vld [vmem:[#allocation6 + $0x10] sm:$0xff]
    %v76 = vld [vmem:[#allocation6 + $0x18] sm:$0xff]
    %v77 = vld [vmem:[#allocation6 + $0x20] sm:$0xff]
    %v78 = vld [vmem:[#allocation6 + $0x28] sm:$0xff]
    %v79 = vld [vmem:[#allocation6 + $0x30] sm:$0xff]
    %v80 = vld [vmem:[#allocation6 + $0x38] sm:$0xff]
    %v81 = vld [vmem:[#allocation6 + $0x40] sm:$0xff]
    %v82 = vld [vmem:[#allocation6 + $0x48] sm:$0xff]
    %v83 = vld [vmem:[#allocation6 + $0x50] sm:$0xff]
    %v84 = vld [vmem:[#allocation6 + $0x58] sm:$0xff]
    %v85 = vld [vmem:[#allocation6 + $0x60] sm:$0xff]
    %v86 = vld [vmem:[#allocation6 + $0x68] sm:$0xff]
    %v87 = vld [vmem:[#allocation6 + $0x70] sm:$0xff]
    %v88 = vld [vmem:[#allocation6 + $0x78] sm:$0xff]
    %v89 = vld [vmem:[#allocation6 + $0x80] sm:$0xff]
    %v90 = vld [vmem:[#allocation6 + $0x88] sm:$0xff]
    %v91 = vld [vmem:[#allocation6 + $0x90] sm:$0xff]
    %v92 = vld [vmem:[#allocation6 + $0x98] sm:$0xff]
    %v93 = vld [vmem:[#allocation6 + $0xa0] sm:$0xff]
    %v94 = vld [vmem:[#allocation6 + $0xa8] sm:$0xff]
    %v95 = vld [vmem:[#allocation6 + $0xb0] sm:$0xff]
    %v96 = vld [vmem:[#allocation6 + $0xb8] sm:$0xff]
    %v97 = vld [vmem:[#allocation6 + $0xc0] sm:$0xff]
    %v98 = vld [vmem:[#allocation6 + $0xc8] sm:$0xff]
    %v99 = vld [vmem:[#allocation6 + $0xd0] sm:$0xff]
    %v100 = vld [vmem:[#allocation6 + $0xd8] sm:$0xff]
    %v101 = vld [vmem:[#allocation6 + $0xe0] sm:$0xff]
    %v102 = vld [vmem:[#allocation6 + $0xe8] sm:$0xff]
    %v103 = vld [vmem:[#allocation6 + $0xf0] sm:$0xff]
    %v104 = vld [vmem:[#allocation6 + $0xf8] sm:$0xff]
    %v105 = vld [vmem:[#allocation6 + $0x100] sm:$0xff]
    %v106 = vld [vmem:[#allocation6 + $0x108] sm:$0xff]
    %v107 = vld [vmem:[#allocation6 + $0x110] sm:$0xff]
    %v108 = vld [vmem:[#allocation6 + $0x118] sm:$0xff]
    %v109 = vld [vmem:[#allocation6 + $0x120] sm:$0xff]
    %v110 = vld [vmem:[#allocation6 + $0x128] sm:$0xff]
    %v111 = vld [vmem:[#allocation6 + $0x130] sm:$0xff]
    %v112 = vld [vmem:[#allocation6 + $0x138] sm:$0xff]
    %v113 = vld [vmem:[#allocation6 + $0x140] sm:$0xff]
    %v114 = vld [vmem:[#allocation6 + $0x148] sm:$0xff]
    %v115 = vld [vmem:[#allocation6 + $0x150] sm:$0xff]
    %v116 = vld [vmem:[#allocation6 + $0x158] sm:$0xff]
    %v117 = vld [vmem:[#allocation6 + $0x160] sm:$0xff]
    %v118 = vld [vmem:[#allocation6 + $0x168] sm:$0xff]
    %v119 = vld [vmem:[#allocation6 + $0x170] sm:$0xff]
    %v120 = vld [vmem:[#allocation6 + $0x178] sm:$0xff]
    %v121 = vld [vmem:[#allocation6 + $0x180] sm:$0xff]
    %v122 = vld [vmem:[#allocation6 + $0x188] sm:$0xff]
    %v123 = vld [vmem:[#allocation6 + $0x190] sm:$0xff]
    %v124 = vld [vmem:[#allocation6 + $0x198] sm:$0xff]
    %v125 = vld [vmem:[#allocation6 + $0x1a0] sm:$0xff]
    %v126 = vld [vmem:[#allocation6 + $0x1a8] sm:$0xff]
    %v127 = vld [vmem:[#allocation6 + $0x1b0] sm:$0xff]
    %v128 = vld [vmem:[#allocation6 + $0x1b8] sm:$0xff]
    %v129 = vld [vmem:[#allocation6 + $0x1c0] sm:$0xff]
    %v130 = vld [vmem:[#allocation6 + $0x1c8] sm:$0xff]
    %v131 = vld [vmem:[#allocation6 + $0x1d0] sm:$0xff]
    %v132 = vld [vmem:[#allocation6 + $0x1d8] sm:$0xff]
    %v133 = vld [vmem:[#allocation6 + $0x1e0] sm:$0xff]
    %v134 = vld [vmem:[#allocation6 + $0x1e8] sm:$0xff]
    %v135 = vld [vmem:[#allocation6 + $0x1f0] sm:$0xff]
    %v136 = vld [vmem:[#allocation6 + $0x1f8] sm:$0xff]
    %v137 = vld [vmem:[#allocation6 + $0x200] sm:$0xff]
    %v138 = vld [vmem:[#allocation6 + $0x208] sm:$0xff]
    %v139 = vld [vmem:[#allocation6 + $0x210] sm:$0xff]
    %v140 = vld [vmem:[#allocation6 + $0x218] sm:$0xff]
    %v141 = vld [vmem:[#allocation6 + $0x220] sm:$0xff]
    %v142 = vld [vmem:[#allocation6 + $0x228] sm:$0xff]
    %v143 = vld [vmem:[#allocation6 + $0x230] sm:$0xff]
    %v144 = vld [vmem:[#allocation6 + $0x238] sm:$0xff]
    %v145 = vld [vmem:[#allocation6 + $0x240] sm:$0xff]
    %v146 = vld [vmem:[#allocation6 + $0x248] sm:$0xff]
    %v147 = vld [vmem:[#allocation6 + $0x250] sm:$0xff]
    %v148 = vld [vmem:[#allocation6 + $0x258] sm:$0xff]
    %v149 = vld [vmem:[#allocation6 + $0x260] sm:$0xff]
    %v150 = vld [vmem:[#allocation6 + $0x268] sm:$0xff]
    %v151 = vld [vmem:[#allocation6 + $0x270] sm:$0xff]
    %v152 = vld [vmem:[#allocation6 + $0x278] sm:$0xff]
    %v153 = vld [vmem:[#allocation6 + $0x280] sm:$0xff]
    %v154 = vld [vmem:[#allocation6 + $0x288] sm:$0xff]
    %v155 = vld [vmem:[#allocation6 + $0x290] sm:$0xff]
    %v156 = vld [vmem:[#allocation6 + $0x298] sm:$0xff]
    %v157 = vld [vmem:[#allocation6 + $0x2a0] sm:$0xff]
    %v158 = vld [vmem:[#allocation6 + $0x2a8] sm:$0xff]
    %v159 = vld [vmem:[#allocation6 + $0x2b0] sm:$0xff]
    %v160 = vld [vmem:[#allocation6 + $0x2b8] sm:$0xff]
    %v161 = vld [vmem:[#allocation6 + $0x2c0] sm:$0xff]
    %v162 = vld [vmem:[#allocation6 + $0x2c8] sm:$0xff]
    %v163 = vld [vmem:[#allocation6 + $0x2d0] sm:$0xff]
    %v164 = vld [vmem:[#allocation6 + $0x2d8] sm:$0xff]
    %v165 = vld [vmem:[#allocation6 + $0x2e0] sm:$0xff]
    %v166 = vld [vmem:[#allocation6 + $0x2e8] sm:$0xff]
    %v167 = vld [vmem:[#allocation6 + $0x2f0] sm:$0xff]
    %v168 = vld [vmem:[#allocation6 + $0x2f8] sm:$0xff]
    %v169 = vld [vmem:[#allocation6 + $0x300] sm:$0xff]
    %v170 = vld [vmem:[#allocation6 + $0x308] sm:$0xff]
    %v171 = vld [vmem:[#allocation6 + $0x310] sm:$0xff]
    %v172 = vld [vmem:[#allocation6 + $0x318] sm:$0xff]
    %v173 = vld [vmem:[#allocation6 + $0x320] sm:$0xff]
    %v174 = vld [vmem:[#allocation6 + $0x328] sm:$0xff]
    %v175 = vld [vmem:[#allocation6 + $0x330] sm:$0xff]
    %v176 = vld [vmem:[#allocation6 + $0x338] sm:$0xff]
    %v177 = vld [vmem:[#allocation6 + $0x340] sm:$0xff]
    %v178 = vld [vmem:[#allocation6 + $0x348] sm:$0xff]
    %v179 = vld [vmem:[#allocation6 + $0x350] sm:$0xff]
    %v180 = vld [vmem:[#allocation6 + $0x358] sm:$0xff]
    %v181 = vld [vmem:[#allocation6 + $0x360] sm:$0xff]
    %v182 = vld [vmem:[#allocation6 + $0x368] sm:$0xff]
    %v183 = vld [vmem:[#allocation6 + $0x370] sm:$0xff]
    %v184 = vld [vmem:[#allocation6 + $0x378] sm:$0xff]
    %v185 = vld [vmem:[#allocation6 + $0x380] sm:$0xff]
    %v186 = vld [vmem:[#allocation6 + $0x388] sm:$0xff]
    %v187 = vld [vmem:[#allocation6 + $0x390] sm:$0xff]
    %v188 = vld [vmem:[#allocation6 + $0x398] sm:$0xff]
    %v189 = vld [vmem:[#allocation6 + $0x3a0] sm:$0xff]
    %v190 = vld [vmem:[#allocation6 + $0x3a8] sm:$0xff]
    %v191 = vld [vmem:[#allocation6 + $0x3b0] sm:$0xff]
    %v192 = vld [vmem:[#allocation6 + $0x3b8] sm:$0xff]
    %v193 = vld [vmem:[#allocation6 + $0x3c0] sm:$0xff]
    %v194 = vld [vmem:[#allocation6 + $0x3c8] sm:$0xff]
    %v195 = vld [vmem:[#allocation6 + $0x3d0] sm:$0xff]
    %v196 = vld [vmem:[#allocation6 + $0x3d8] sm:$0xff]
    %v197 = vld [vmem:[#allocation6 + $0x3e0] sm:$0xff]
    %v198 = vld [vmem:[#allocation6 + $0x3e8] sm:$0xff]
    %v199 = vld [vmem:[#allocation6 + $0x3f0] sm:$0xff]
    %v200 = vld [vmem:[#allocation6 + $0x3f8] sm:$0xff]
    %v201 = vld [vmem:[#allocation6 + $0x400] sm:$0xff]
    %v202 = vld [vmem:[#allocation6 + $0x408] sm:$0xff]
    %v203 = vld [vmem:[#allocation6 + $0x410] sm:$0xff]
    %v204 = vld [vmem:[#allocation6 + $0x418] sm:$0xff]
    %v205 = vld [vmem:[#allocation6 + $0x420] sm:$0xff]
    %v206 = vld [vmem:[#allocation6 + $0x428] sm:$0xff]
    %v207 = vld [vmem:[#allocation6 + $0x430] sm:$0xff]
    %v208 = vld [vmem:[#allocation6 + $0x438] sm:$0xff]
    %v209 = vld [vmem:[#allocation6 + $0x440] sm:$0xff]
    %v210 = vld [vmem:[#allocation6 + $0x448] sm:$0xff]
    %v211 = vld [vmem:[#allocation6 + $0x450] sm:$0xff]
    %v212 = vld [vmem:[#allocation6 + $0x458] sm:$0xff]
    %v213 = vld [vmem:[#allocation6 + $0x460] sm:$0xff]
    %v214 = vld [vmem:[#allocation6 + $0x468] sm:$0xff]
    %v215 = vld [vmem:[#allocation6 + $0x470] sm:$0xff]
    %v216 = vld [vmem:[#allocation6 + $0x478] sm:$0xff]
    %v217 = vld [vmem:[#allocation6 + $0x480] sm:$0xff]
    %v218 = vld [vmem:[#allocation6 + $0x488] sm:$0xff]
    %v219 = vld [vmem:[#allocation6 + $0x490] sm:$0xff]
    %v220 = vld [vmem:[#allocation6 + $0x498] sm:$0xff]
    %v221 = vld [vmem:[#allocation6 + $0x4a0] sm:$0xff]
    %v222 = vld [vmem:[#allocation6 + $0x4a8] sm:$0xff]
    %v223 = vld [vmem:[#allocation6 + $0x4b0] sm:$0xff]
    %v224 = vld [vmem:[#allocation6 + $0x4b8] sm:$0xff]
    %v225 = vld [vmem:[#allocation6 + $0x4c0] sm:$0xff]
    %v226 = vld [vmem:[#allocation6 + $0x4c8] sm:$0xff]
    %v227 = vld [vmem:[#allocation6 + $0x4d0] sm:$0xff]
    %v228 = vld [vmem:[#allocation6 + $0x4d8] sm:$0xff]
    %v229 = vld [vmem:[#allocation6 + $0x4e0] sm:$0xff]
    %v230 = vld [vmem:[#allocation6 + $0x4e8] sm:$0xff]
    %v231 = vld [vmem:[#allocation6 + $0x4f0] sm:$0xff]
    %v232 = vld [vmem:[#allocation6 + $0x4f8] sm:$0xff]
    %v233 = vld [vmem:[#allocation6 + $0x500] sm:$0xff]
    %v234 = vld [vmem:[#allocation6 + $0x508] sm:$0xff]
    %v235 = vld [vmem:[#allocation6 + $0x510] sm:$0xff]
    %v236 = vld [vmem:[#allocation6 + $0x518] sm:$0xff]
    %v237 = vld [vmem:[#allocation6 + $0x520] sm:$0xff]
    %v238 = vld [vmem:[#allocation6 + $0x528] sm:$0xff]
    %v239 = vld [vmem:[#allocation6 + $0x530] sm:$0xff]
    %v240 = vld [vmem:[#allocation6 + $0x538] sm:$0xff]
    %v241 = vld [vmem:[#allocation6 + $0x540] sm:$0xff]
    %v242 = vld [vmem:[#allocation6 + $0x548] sm:$0xff]
    %v243 = vld [vmem:[#allocation6 + $0x550] sm:$0xff]
    %v244 = vld [vmem:[#allocation6 + $0x558] sm:$0xff]
    %v245 = vld [vmem:[#allocation6 + $0x560] sm:$0xff]
    %v246 = vld [vmem:[#allocation6 + $0x568] sm:$0xff]
    %v247 = vld [vmem:[#allocation6 + $0x570] sm:$0xff]
    %v248 = vld [vmem:[#allocation6 + $0x578] sm:$0xff]
    %v249 = vld [vmem:[#allocation6 + $0x580] sm:$0xff]
    %v250 = vld [vmem:[#allocation6 + $0x588] sm:$0xff]
    %v251 = vld [vmem:[#allocation6 + $0x590] sm:$0xff]
    %v252 = vld [vmem:[#allocation6 + $0x598] sm:$0xff]
    %v253 = vld [vmem:[#allocation6 + $0x5a0] sm:$0xff]
    %v254 = vld [vmem:[#allocation6 + $0x5a8] sm:$0xff]
    %v255 = vld [vmem:[#allocation6 + $0x5b0] sm:$0xff]
    %v256 = vld [vmem:[#allocation6 + $0x5b8] sm:$0xff]
    %v257 = vld [vmem:[#allocation6 + $0x5c0] sm:$0xff]
    %v258 = vld [vmem:[#allocation6 + $0x5c8] sm:$0xff]
    %v259 = vld [vmem:[#allocation6 + $0x5d0] sm:$0xff]
    %v260 = vld [vmem:[#allocation6 + $0x5d8] sm:$0xff]
    %v261 = vld [vmem:[#allocation6 + $0x5e0] sm:$0xff]
    %v262 = vld [vmem:[#allocation6 + $0x5e8] sm:$0xff]
    %v263 = vld [vmem:[#allocation6 + $0x5f0] sm:$0xff]
    %v264 = vld [vmem:[#allocation6 + $0x5f8] sm:$0xff]
    %v265 = vld [vmem:[#allocation6 + $0x600] sm:$0xff]
    %v266 = vld [vmem:[#allocation6 + $0x608] sm:$0xff]
    %v267 = vld [vmem:[#allocation6 + $0x610] sm:$0xff]
    %v268 = vld [vmem:[#allocation6 + $0x618] sm:$0xff]
    %v269 = vld [vmem:[#allocation6 + $0x620] sm:$0xff]
    %v270 = vld [vmem:[#allocation6 + $0x628] sm:$0xff]
    %v271 = vld [vmem:[#allocation6 + $0x630] sm:$0xff]
    %v272 = vld [vmem:[#allocation6 + $0x638] sm:$0xff]
    %v273 = vld [vmem:[#allocation6 + $0x640] sm:$0xff]
    %v274 = vld [vmem:[#allocation6 + $0x648] sm:$0xff]
    %v275 = vld [vmem:[#allocation6 + $0x650] sm:$0xff]
    %v276 = vld [vmem:[#allocation6 + $0x658] sm:$0xff]
    %v277 = vld [vmem:[#allocation6 + $0x660] sm:$0xff]
    %v278 = vld [vmem:[#allocation6 + $0x668] sm:$0xff]
    %v279 = vld [vmem:[#allocation6 + $0x670] sm:$0xff]
    %v280 = vld [vmem:[#allocation6 + $0x678] sm:$0xff]
    %v281 = vld [vmem:[#allocation6 + $0x680] sm:$0xff]
    %v282 = vld [vmem:[#allocation6 + $0x688] sm:$0xff]
    %v283 = vld [vmem:[#allocation6 + $0x690] sm:$0xff]
    %v284 = vld [vmem:[#allocation6 + $0x698] sm:$0xff]
    %v285 = vld [vmem:[#allocation6 + $0x6a0] sm:$0xff]
    %v286 = vld [vmem:[#allocation6 + $0x6a8] sm:$0xff]
    %v287 = vld [vmem:[#allocation6 + $0x6b0] sm:$0xff]
    %v288 = vld [vmem:[#allocation6 + $0x6b8] sm:$0xff]
    %v289 = vld [vmem:[#allocation6 + $0x6c0] sm:$0xff]
    %v290 = vld [vmem:[#allocation6 + $0x6c8] sm:$0xff]
    %v291 = vld [vmem:[#allocation6 + $0x6d0] sm:$0xff]
    %v292 = vld [vmem:[#allocation6 + $0x6d8] sm:$0xff]
    %v293 = vld [vmem:[#allocation6 + $0x6e0] sm:$0xff]
    %v294 = vld [vmem:[#allocation6 + $0x6e8] sm:$0xff]
    %v295 = vld [vmem:[#allocation6 + $0x6f0] sm:$0xff]
    %v296 = vld [vmem:[#allocation6 + $0x6f8] sm:$0xff]
    %v297 = vld [vmem:[#allocation6 + $0x700] sm:$0xff]
    %v298 = vld [vmem:[#allocation6 + $0x708] sm:$0xff]
    %v299 = vld [vmem:[#allocation6 + $0x710] sm:$0xff]
    %v300 = vld [vmem:[#allocation6 + $0x718] sm:$0xff]
    %v301 = vld [vmem:[#allocation6 + $0x720] sm:$0xff]
    %v302 = vld [vmem:[#allocation6 + $0x728] sm:$0xff]
    %v303 = vld [vmem:[#allocation6 + $0x730] sm:$0xff]
    %v304 = vld [vmem:[#allocation6 + $0x738] sm:$0xff]
    %v305 = vld [vmem:[#allocation6 + $0x740] sm:$0xff]
    %v306 = vld [vmem:[#allocation6 + $0x748] sm:$0xff]
    %v307 = vld [vmem:[#allocation6 + $0x750] sm:$0xff]
    %v308 = vld [vmem:[#allocation6 + $0x758] sm:$0xff]
    %v309 = vld [vmem:[#allocation6 + $0x760] sm:$0xff]
    %v310 = vld [vmem:[#allocation6 + $0x768] sm:$0xff]
    %v311 = vld [vmem:[#allocation6 + $0x770] sm:$0xff]
    %v312 = vld [vmem:[#allocation6 + $0x778] sm:$0xff]
    %v313 = vld [vmem:[#allocation6 + $0x780] sm:$0xff]
    %v314 = vld [vmem:[#allocation6 + $0x788] sm:$0xff]
    %v315 = vld [vmem:[#allocation6 + $0x790] sm:$0xff]
    %v316 = vld [vmem:[#allocation6 + $0x798] sm:$0xff]
    %v317 = vld [vmem:[#allocation6 + $0x7a0] sm:$0xff]
    %v318 = vld [vmem:[#allocation6 + $0x7a8] sm:$0xff]
    %v319 = vld [vmem:[#allocation6 + $0x7b0] sm:$0xff]
    %v320 = vld [vmem:[#allocation6 + $0x7b8] sm:$0xff]
    %v321 = vld [vmem:[#allocation6 + $0x7c0] sm:$0xff]
    %v322 = vld [vmem:[#allocation6 + $0x7c8] sm:$0xff]
    %v323 = vld [vmem:[#allocation6 + $0x7d0] sm:$0xff]
    %v324 = vld [vmem:[#allocation6 + $0x7d8] sm:$0xff]
    %v325 = vld [vmem:[#allocation6 + $0x7e0] sm:$0xff]
    %v326 = vld [vmem:[#allocation6 + $0x7e8] sm:$0xff]
    %v327 = vld [vmem:[#allocation6 + $0x7f0] sm:$0xff]
    %v328 = vld [vmem:[#allocation6 + $0x7f8] sm:$0xff]
    %v329 = vld [vmem:[#allocation6 + $0x800] sm:$0xff]
    %v330 = vld [vmem:[#allocation6 + $0x808] sm:$0xff]
    %v331 = vld [vmem:[#allocation6 + $0x810] sm:$0xff]
    %v332 = vld [vmem:[#allocation6 + $0x818] sm:$0xff]
    %v333 = vld [vmem:[#allocation6 + $0x820] sm:$0xff]
    %v334 = vld [vmem:[#allocation6 + $0x828] sm:$0xff]
    %v335 = vld [vmem:[#allocation6 + $0x830] sm:$0xff]
    %v336 = vld [vmem:[#allocation6 + $0x838] sm:$0xff]
    %v337 = vld [vmem:[#allocation6 + $0x840] sm:$0xff]
    %v338 = vld [vmem:[#allocation6 + $0x848] sm:$0xff]
    %v339 = vld [vmem:[#allocation6 + $0x850] sm:$0xff]
    %v340 = vld [vmem:[#allocation6 + $0x858] sm:$0xff]
    %v341 = vld [vmem:[#allocation6 + $0x860] sm:$0xff]
    %v342 = vld [vmem:[#allocation6 + $0x868] sm:$0xff]
    %v343 = vld [vmem:[#allocation6 + $0x870] sm:$0xff]
    %v344 = vld [vmem:[#allocation6 + $0x878] sm:$0xff]
    %v345 = vld [vmem:[#allocation6 + $0x880] sm:$0xff]
    %v346 = vld [vmem:[#allocation6 + $0x888] sm:$0xff]
    %v347 = vld [vmem:[#allocation6 + $0x890] sm:$0xff]
    %v348 = vld [vmem:[#allocation6 + $0x898] sm:$0xff]
    %v349 = vld [vmem:[#allocation6 + $0x8a0] sm:$0xff]
    %v350 = vld [vmem:[#allocation6 + $0x8a8] sm:$0xff]
    %v351 = vld [vmem:[#allocation6 + $0x8b0] sm:$0xff]
    %v352 = vld [vmem:[#allocation6 + $0x8b8] sm:$0xff]
    %v353 = vld [vmem:[#allocation6 + $0x8c0] sm:$0xff]
    %v354 = vld [vmem:[#allocation6 + $0x8c8] sm:$0xff]
    %v355 = vld [vmem:[#allocation6 + $0x8d0] sm:$0xff]
    %v356 = vld [vmem:[#allocation6 + $0x8d8] sm:$0xff]
    %v357 = vld [vmem:[#allocation6 + $0x8e0] sm:$0xff]
    %v358 = vld [vmem:[#allocation6 + $0x8e8] sm:$0xff]
    %v359 = vld [vmem:[#allocation6 + $0x8f0] sm:$0xff]
    %v360 = vld [vmem:[#allocation6 + $0x8f8] sm:$0xff]
    %v361 = vld [vmem:[#allocation6 + $0x900] sm:$0xff]
    %v362 = vld [vmem:[#allocation6 + $0x908] sm:$0xff]
    %v363 = vld [vmem:[#allocation6 + $0x910] sm:$0xff]
    %v364 = vld [vmem:[#allocation6 + $0x918] sm:$0xff]
    %v365 = vld [vmem:[#allocation6 + $0x920] sm:$0xff]
    %v366 = vld [vmem:[#allocation6 + $0x928] sm:$0xff]
    %v367 = vld [vmem:[#allocation6 + $0x930] sm:$0xff]
    %v368 = vld [vmem:[#allocation6 + $0x938] sm:$0xff]
    %v369 = vld [vmem:[#allocation6 + $0x940] sm:$0xff]
    %v370 = vld [vmem:[#allocation6 + $0x948] sm:$0xff]
    %v371 = vld [vmem:[#allocation6 + $0x950] sm:$0xff]
    %v372 = vld [vmem:[#allocation6 + $0x958] sm:$0xff]
    %v373 = vld [vmem:[#allocation9] ss:$8 sm:$0xf]
    %v374 = vld [vmem:[#allocation9] ss:$8 sm:$0x30]
    %v375 = vor.u32 %v373, %v374
    %v377 = vlaneseq
    %v378 = vshrl.u32 %v377, 7
    %v379 = vsub.s32 0, %v378
    %v380 = vrot.slane %v375, %v379
    %v381 = vlaneseq
    %v382 = vshrl.u32 %v381, 7
    %v383 = vsub.s32 1, %v382
    %v384 = vrot.slane %v375, %v383
    %v385 = vlaneseq
    %v386 = vshrl.u32 %v385, 7
    %v387 = vsub.s32 2, %v386
    %v388 = vrot.slane %v375, %v387
    %v389 = vlaneseq
    %v390 = vshrl.u32 %v389, 7
    %v391 = vsub.s32 3, %v390
    %v392 = vrot.slane %v375, %v391
    %v393 = vlaneseq
    %v394 = vshrl.u32 %v393, 7
    %v395 = vsub.s32 4, %v394
    %v396 = vrot.slane %v375, %v395
    %v397 = vlaneseq
    %v398 = vshrl.u32 %v397, 7
    %v399 = vsub.s32 5, %v398
    %v400 = vrot.slane %v375, %v399
    %s407 = scalar_lea.vmem [#allocation9], 1
    %v408 = vld [vmem:[%s407] ss:$8 sm:$0xf]
    %v409 = vld [vmem:[%s407] ss:$8 sm:$0x30]
    %v410 = vor.u32 %v408, %v409
    %v412 = vlaneseq
    %v413 = vshrl.u32 %v412, 7
    %v414 = vsub.s32 0, %v413
    %v415 = vrot.slane %v410, %v414
    %v416 = vlaneseq
    %v417 = vshrl.u32 %v416, 7
    %v418 = vsub.s32 1, %v417
    %v419 = vrot.slane %v410, %v418
    %v420 = vlaneseq
    %v421 = vshrl.u32 %v420, 7
    %v422 = vsub.s32 2, %v421
    %v423 = vrot.slane %v410, %v422
    %v424 = vlaneseq
    %v425 = vshrl.u32 %v424, 7
    %v426 = vsub.s32 3, %v425
    %v427 = vrot.slane %v410, %v426
    %v428 = vlaneseq
    %v429 = vshrl.u32 %v428, 7
    %v430 = vsub.s32 4, %v429
    %v431 = vrot.slane %v410, %v430
    %v432 = vlaneseq
    %v433 = vshrl.u32 %v432, 7
    %v434 = vsub.s32 5, %v433
    %v435 = vrot.slane %v410, %v434
    %s442 = scalar_lea.vmem [#allocation9], 2
    %v443 = vld [vmem:[%s442] ss:$8 sm:$0x3]
    %v445 = vlaneseq
    %v446 = vshrl.u32 %v445, 7
    %v447 = vsub.s32 0, %v446
    %v448 = vrot.slane %v443, %v447
    %v449 = vlaneseq
    %v450 = vshrl.u32 %v449, 7
    %v451 = vsub.s32 1, %v450
    %v452 = vrot.slane %v443, %v451
    %s455 = scalar_lea.vmem [#allocation9], 3
    %v456 = vld [vmem:[%s455] ss:$8 sm:$0x3]
    %v458 = vlaneseq
    %v459 = vshrl.u32 %v458, 7
    %v460 = vsub.s32 0, %v459
    %v461 = vrot.slane %v456, %v460
    %v462 = vlaneseq
    %v463 = vshrl.u32 %v462, 7
    %v464 = vsub.s32 1, %v463
    %v465 = vrot.slane %v456, %v464
    %v468 = vld [vmem:[#allocation9 + $0x4] ss:$0 sm:$0xff]
    %v469 = vld [vmem:[#allocation3] sm:$0x3]
    %v470 = vpack.c.bf16 %v469, %v469
    %v483 = vunpack.c.l.b16 %v73
    %v484 = vunpack.c.h.b16 %v73
    %v485 = vunpack.c.l.b16 %v74
    %v486 = vunpack.c.h.b16 %v74
    %v487 = vunpack.c.l.b16 %v75
    %v488 = vunpack.c.h.b16 %v75
    %v489 = vunpack.c.l.b16 %v76
    %v490 = vunpack.c.h.b16 %v76
    %v491 = vunpack.c.l.b16 %v77
    %v492 = vunpack.c.h.b16 %v77
    %v493 = vunpack.c.l.b16 %v78
    %v494 = vunpack.c.h.b16 %v78
    %v495 = vunpack.c.l.b16 %v79
    %v496 = vunpack.c.h.b16 %v79
    %v497 = vunpack.c.l.b16 %v80
    %v498 = vunpack.c.h.b16 %v80
    %v499 = vunpack.c.l.b16 %v81
    %v500 = vunpack.c.h.b16 %v81
    %v501 = vunpack.c.l.b16 %v82
    %v502 = vunpack.c.h.b16 %v82
    %v503 = vunpack.c.l.b16 %v83
    %v504 = vunpack.c.h.b16 %v83
    %v505 = vunpack.c.l.b16 %v84
    %v506 = vunpack.c.h.b16 %v84
    %v507 = vpack.c.b16 %v489, %v483
    %v508 = vpack.c.b16 %v490, %v484
    %v509 = vpack.c.b16 %v491, %v485
    %v510 = vpack.c.b16 %v492, %v486
    %v511 = vpack.c.b16 %v493, %v487
    %v512 = vpack.c.b16 %v494, %v488
    %v513 = vpack.c.b16 %v501, %v495
    %v514 = vpack.c.b16 %v502, %v496
    %v515 = vpack.c.b16 %v503, %v497
    %v516 = vpack.c.b16 %v504, %v498
    %v517 = vpack.c.b16 %v505, %v499
    %v518 = vpack.c.b16 %v506, %v500
    %vm531 = vcmask 261120
    %v533 = vsel %vm531, %v470, 0
    %535 = vmatprep.subr.bf16.mxu0 0
    %536 = vmatpush1.bf16.msra.mxu0 0
    %537 = vmatprep.subr.bf16.mxu0 0
    %538 = vmatpush1.bf16.msra.mxu0 0
    %539 = vmatprep.subr.bf16.mxu0 0
    %540 = vmatpush1.bf16.msra.mxu0 0
    %541 = vmatprep.subr.bf16.mxu0 0
    %542 = vmatpush1.bf16.msra.mxu0 0
    %543 = vmatprep.subr.bf16.mxu0 0
    %544 = vmatpush1.bf16.msra.mxu0 0
    %545 = vmatprep.subr.bf16.mxu0 0
    %546 = vmatpush1.bf16.msra.mxu0 0
    %547 = vmatprep.subr.bf16.mxu0 %v514
    %548 = vmatpush1.bf16.msra.mxu0 %v513
    %549 = vmatprep.subr.bf16.mxu0 %v508
    %550 = vmatpush1.bf16.msra.mxu0 %v507
    %551 = vmatprep.subr.bf16.mxu0 0
    %552 = vmatpush2.bf16.msra.mxu0 0
    %553 = vmatprep.subr.bf16.mxu0 0
    %554 = vmatpush2.bf16.msra.mxu0 0
    %555 = vmatprep.subr.bf16.mxu0 0
    %556 = vmatpush2.bf16.msra.mxu0 0
    %557 = vmatprep.subr.bf16.mxu0 0
    %558 = vmatpush2.bf16.msra.mxu0 0
    %559 = vmatprep.subr.bf16.mxu0 0
    %560 = vmatpush2.bf16.msra.mxu0 0
    %561 = vmatprep.subr.bf16.mxu0 0
    %562 = vmatpush2.bf16.msra.mxu0 0
    %563 = vmatprep.subr.bf16.mxu0 0
    %564 = vmatpush2.bf16.msra.mxu0 0
    %565 = vmatprep.subr.bf16.mxu0 0
    %566 = vmatpush2.bf16.msra.mxu0 0
    %567 = vmatprep.mubr.bf16.mxu0 0
    %568 = vmatmul.mubr.bf16.gmra.mxu0 %v533
    %v569 = vpop.f32.mrf.mxu0
    %v570 = vadd.f32 %v380, %v569
    %v571 = vpop.f32.mrf.mxu0
    %v572 = vadd.f32 %v384, %v571
    %v573 = vpop.f32.mrf.mxu0
    %v574 = vpop.f32.mrf.mxu0
    %575 = vdwg.mxu0
    %576 = vmatprep.subr.bf16.mxu0 0
    %577 = vmatpush1.bf16.msra.mxu0 0
    %578 = vmatprep.subr.bf16.mxu0 0
    %579 = vmatpush1.bf16.msra.mxu0 0
    %580 = vmatprep.subr.bf16.mxu0 0
    %581 = vmatpush1.bf16.msra.mxu0 0
    %582 = vmatprep.subr.bf16.mxu0 0
    %583 = vmatpush1.bf16.msra.mxu0 0
    %584 = vmatprep.subr.bf16.mxu0 0
    %585 = vmatpush1.bf16.msra.mxu0 0
    %586 = vmatprep.subr.bf16.mxu0 0
    %587 = vmatpush1.bf16.msra.mxu0 0
    %588 = vmatprep.subr.bf16.mxu0 %v516
    %589 = vmatpush1.bf16.msra.mxu0 %v515
    %590 = vmatprep.subr.bf16.mxu0 %v510
    %591 = vmatpush1.bf16.msra.mxu0 %v509
    %592 = vmatprep.subr.bf16.mxu0 0
    %593 = vmatpush2.bf16.msra.mxu0 0
    %594 = vmatprep.subr.bf16.mxu0 0
    %595 = vmatpush2.bf16.msra.mxu0 0
    %596 = vmatprep.subr.bf16.mxu0 0
    %597 = vmatpush2.bf16.msra.mxu0 0
    %598 = vmatprep.subr.bf16.mxu0 0
    %599 = vmatpush2.bf16.msra.mxu0 0
    %600 = vmatprep.subr.bf16.mxu0 0
    %601 = vmatpush2.bf16.msra.mxu0 0
    %602 = vmatprep.subr.bf16.mxu0 0
    %603 = vmatpush2.bf16.msra.mxu0 0
    %604 = vmatprep.subr.bf16.mxu0 0
    %605 = vmatpush2.bf16.msra.mxu0 0
    %606 = vmatprep.subr.bf16.mxu0 0
    %607 = vmatpush2.bf16.msra.mxu0 0
    %608 = vmatprep.mubr.bf16.mxu0 0
    %609 = vmatmul.mubr.bf16.gmra.mxu0 %v533
    %v610 = vpop.f32.mrf.mxu0
    %v611 = vadd.f32 %v388, %v610
    %v612 = vpop.f32.mrf.mxu0
    %v613 = vadd.f32 %v392, %v612
    %v614 = vpop.f32.mrf.mxu0
    %v615 = vpop.f32.mrf.mxu0
    %616 = vdwg.mxu0
    %617 = vmatprep.subr.bf16.mxu0 0
    %618 = vmatpush1.bf16.msra.mxu0 0
    %619 = vmatprep.subr.bf16.mxu0 0
    %620 = vmatpush1.bf16.msra.mxu0 0
    %621 = vmatprep.subr.bf16.mxu0 0
    %622 = vmatpush1.bf16.msra.mxu0 0
    %623 = vmatprep.subr.bf16.mxu0 0
    %624 = vmatpush1.bf16.msra.mxu0 0
    %625 = vmatprep.subr.bf16.mxu0 0
    %626 = vmatpush1.bf16.msra.mxu0 0
    %627 = vmatprep.subr.bf16.mxu0 0
    %628 = vmatpush1.bf16.msra.mxu0 0
    %629 = vmatprep.subr.bf16.mxu0 %v518
    %630 = vmatpush1.bf16.msra.mxu0 %v517
    %631 = vmatprep.subr.bf16.mxu0 %v512
    %632 = vmatpush1.bf16.msra.mxu0 %v511
    %633 = vmatprep.subr.bf16.mxu0 0
    %634 = vmatpush2.bf16.msra.mxu0 0
    %635 = vmatprep.subr.bf16.mxu0 0
    %636 = vmatpush2.bf16.msra.mxu0 0
    %637 = vmatprep.subr.bf16.mxu0 0
    %638 = vmatpush2.bf16.msra.mxu0 0
    %639 = vmatprep.subr.bf16.mxu0 0
    %640 = vmatpush2.bf16.msra.mxu0 0
    %641 = vmatprep.subr.bf16.mxu0 0
    %642 = vmatpush2.bf16.msra.mxu0 0
    %643 = vmatprep.subr.bf16.mxu0 0
    %644 = vmatpush2.bf16.msra.mxu0 0
    %645 = vmatprep.subr.bf16.mxu0 0
    %646 = vmatpush2.bf16.msra.mxu0 0
    %647 = vmatprep.subr.bf16.mxu0 0
    %648 = vmatpush2.bf16.msra.mxu0 0
    %649 = vmatprep.mubr.bf16.mxu0 0
    %650 = vmatmul.mubr.bf16.gmra.mxu0 %v533
    %v651 = vpop.f32.mrf.mxu0
    %v652 = vadd.f32 %v396, %v651
    %v653 = vpop.f32.mrf.mxu0
    %v654 = vadd.f32 %v400, %v653
    %v655 = vpop.f32.mrf.mxu0
    %v656 = vpop.f32.mrf.mxu0
    %657 = vdwg.mxu0
    %v754 = vunpack.c.l.b16 %v85
    %v755 = vunpack.c.h.b16 %v85
    %v756 = vunpack.c.l.b16 %v86
    %v757 = vunpack.c.h.b16 %v86
    %v758 = vunpack.c.l.b16 %v87
    %v759 = vunpack.c.h.b16 %v87
    %v760 = vunpack.c.l.b16 %v88
    %v761 = vunpack.c.h.b16 %v88
    %v762 = vunpack.c.l.b16 %v89
    %v763 = vunpack.c.h.b16 %v89
    %v764 = vunpack.c.l.b16 %v90
    %v765 = vunpack.c.h.b16 %v90
    %v766 = vunpack.c.l.b16 %v91
    %v767 = vunpack.c.h.b16 %v91
    %v768 = vunpack.c.l.b16 %v92
    %v769 = vunpack.c.h.b16 %v92
    %v770 = vunpack.c.l.b16 %v93
    %v771 = vunpack.c.h.b16 %v93
    %v772 = vunpack.c.l.b16 %v94
    %v773 = vunpack.c.h.b16 %v94
    %v774 = vunpack.c.l.b16 %v95
    %v775 = vunpack.c.h.b16 %v95
    %v776 = vunpack.c.l.b16 %v96
    %v777 = vunpack.c.h.b16 %v96
    %v778 = vunpack.c.l.b16 %v97
    %v779 = vunpack.c.h.b16 %v97
    %v780 = vunpack.c.l.b16 %v98
    %v781 = vunpack.c.h.b16 %v98
    %v782 = vunpack.c.l.b16 %v99
    %v783 = vunpack.c.h.b16 %v99
    %v784 = vunpack.c.l.b16 %v100
    %v785 = vunpack.c.h.b16 %v100
    %v786 = vunpack.c.l.b16 %v101
    %v787 = vunpack.c.h.b16 %v101
    %v788 = vunpack.c.l.b16 %v102
    %v789 = vunpack.c.h.b16 %v102
    %v790 = vunpack.c.l.b16 %v103
    %v791 = vunpack.c.h.b16 %v103
    %v792 = vunpack.c.l.b16 %v104
    %v793 = vunpack.c.h.b16 %v104
    %v794 = vunpack.c.l.b16 %v105
    %v795 = vunpack.c.h.b16 %v105
    %v796 = vunpack.c.l.b16 %v106
    %v797 = vunpack.c.h.b16 %v106
    %v798 = vunpack.c.l.b16 %v107
    %v799 = vunpack.c.h.b16 %v107
    %v800 = vunpack.c.l.b16 %v108
    %v801 = vunpack.c.h.b16 %v108
    %v802 = vunpack.c.l.b16 %v109
    %v803 = vunpack.c.h.b16 %v109
    %v804 = vunpack.c.l.b16 %v110
    %v805 = vunpack.c.h.b16 %v110
    %v806 = vunpack.c.l.b16 %v111
    %v807 = vunpack.c.h.b16 %v111
    %v808 = vunpack.c.l.b16 %v112
    %v809 = vunpack.c.h.b16 %v112
    %v810 = vunpack.c.l.b16 %v113
    %v811 = vunpack.c.h.b16 %v113
    %v812 = vunpack.c.l.b16 %v114
    %v813 = vunpack.c.h.b16 %v114
    %v814 = vunpack.c.l.b16 %v115
    %v815 = vunpack.c.h.b16 %v115
    %v816 = vunpack.c.l.b16 %v116
    %v817 = vunpack.c.h.b16 %v116
    %v818 = vunpack.c.l.b16 %v117
    %v819 = vunpack.c.h.b16 %v117
    %v820 = vunpack.c.l.b16 %v118
    %v821 = vunpack.c.h.b16 %v118
    %v822 = vunpack.c.l.b16 %v119
    %v823 = vunpack.c.h.b16 %v119
    %v824 = vunpack.c.l.b16 %v120
    %v825 = vunpack.c.h.b16 %v120
    %v826 = vunpack.c.l.b16 %v121
    %v827 = vunpack.c.h.b16 %v121
    %v828 = vunpack.c.l.b16 %v122
    %v829 = vunpack.c.h.b16 %v122
    %v830 = vunpack.c.l.b16 %v123
    %v831 = vunpack.c.h.b16 %v123
    %v832 = vunpack.c.l.b16 %v124
    %v833 = vunpack.c.h.b16 %v124
    %v834 = vunpack.c.l.b16 %v125
    %v835 = vunpack.c.h.b16 %v125
    %v836 = vunpack.c.l.b16 %v126
    %v837 = vunpack.c.h.b16 %v126
    %v838 = vunpack.c.l.b16 %v127
    %v839 = vunpack.c.h.b16 %v127
    %v840 = vunpack.c.l.b16 %v128
    %v841 = vunpack.c.h.b16 %v128
    %v842 = vunpack.c.l.b16 %v129
    %v843 = vunpack.c.h.b16 %v129
    %v844 = vunpack.c.l.b16 %v130
    %v845 = vunpack.c.h.b16 %v130
    %v846 = vunpack.c.l.b16 %v131
    %v847 = vunpack.c.h.b16 %v131
    %v848 = vunpack.c.l.b16 %v132
    %v849 = vunpack.c.h.b16 %v132
    %v850 = vunpack.c.l.b16 %v133
    %v851 = vunpack.c.h.b16 %v133
    %v852 = vunpack.c.l.b16 %v134
    %v853 = vunpack.c.h.b16 %v134
    %v854 = vunpack.c.l.b16 %v135
    %v855 = vunpack.c.h.b16 %v135
    %v856 = vunpack.c.l.b16 %v136
    %v857 = vunpack.c.h.b16 %v136
    %v858 = vunpack.c.l.b16 %v137
    %v859 = vunpack.c.h.b16 %v137
    %v860 = vunpack.c.l.b16 %v138
    %v861 = vunpack.c.h.b16 %v138
    %v862 = vunpack.c.l.b16 %v139
    %v863 = vunpack.c.h.b16 %v139
    %v864 = vunpack.c.l.b16 %v140
    %v865 = vunpack.c.h.b16 %v140
    %v866 = vunpack.c.l.b16 %v141
    %v867 = vunpack.c.h.b16 %v141
    %v868 = vunpack.c.l.b16 %v142
    %v869 = vunpack.c.h.b16 %v142
    %v870 = vunpack.c.l.b16 %v143
    %v871 = vunpack.c.h.b16 %v143
    %v872 = vunpack.c.l.b16 %v144
    %v873 = vunpack.c.h.b16 %v144
    %v874 = vunpack.c.l.b16 %v145
    %v875 = vunpack.c.h.b16 %v145
    %v876 = vunpack.c.l.b16 %v146
    %v877 = vunpack.c.h.b16 %v146
    %v878 = vunpack.c.l.b16 %v147
    %v879 = vunpack.c.h.b16 %v147
    %v880 = vunpack.c.l.b16 %v148
    %v881 = vunpack.c.h.b16 %v148
    %v882 = vunpack.c.l.b16 %v149
    %v883 = vunpack.c.h.b16 %v149
    %v884 = vunpack.c.l.b16 %v150
    %v885 = vunpack.c.h.b16 %v150
    %v886 = vunpack.c.l.b16 %v151
    %v887 = vunpack.c.h.b16 %v151
    %v888 = vunpack.c.l.b16 %v152
    %v889 = vunpack.c.h.b16 %v152
    %v890 = vunpack.c.l.b16 %v153
    %v891 = vunpack.c.h.b16 %v153
    %v892 = vunpack.c.l.b16 %v154
    %v893 = vunpack.c.h.b16 %v154
    %v894 = vunpack.c.l.b16 %v155
    %v895 = vunpack.c.h.b16 %v155
    %v896 = vunpack.c.l.b16 %v156
    %v897 = vunpack.c.h.b16 %v156
    %v898 = vunpack.c.l.b16 %v157
    %v899 = vunpack.c.h.b16 %v157
    %v900 = vunpack.c.l.b16 %v158
    %v901 = vunpack.c.h.b16 %v158
    %v902 = vunpack.c.l.b16 %v159
    %v903 = vunpack.c.h.b16 %v159
    %v904 = vunpack.c.l.b16 %v160
    %v905 = vunpack.c.h.b16 %v160
    %v906 = vunpack.c.l.b16 %v161
    %v907 = vunpack.c.h.b16 %v161
    %v908 = vunpack.c.l.b16 %v162
    %v909 = vunpack.c.h.b16 %v162
    %v910 = vunpack.c.l.b16 %v163
    %v911 = vunpack.c.h.b16 %v163
    %v912 = vunpack.c.l.b16 %v164
    %v913 = vunpack.c.h.b16 %v164
    %v914 = vunpack.c.l.b16 %v165
    %v915 = vunpack.c.h.b16 %v165
    %v916 = vunpack.c.l.b16 %v166
    %v917 = vunpack.c.h.b16 %v166
    %v918 = vunpack.c.l.b16 %v167
    %v919 = vunpack.c.h.b16 %v167
    %v920 = vunpack.c.l.b16 %v168
    %v921 = vunpack.c.h.b16 %v168
    %v922 = vunpack.c.l.b16 %v169
    %v923 = vunpack.c.h.b16 %v169
    %v924 = vunpack.c.l.b16 %v170
    %v925 = vunpack.c.h.b16 %v170
    %v926 = vunpack.c.l.b16 %v171
    %v927 = vunpack.c.h.b16 %v171
    %v928 = vunpack.c.l.b16 %v172
    %v929 = vunpack.c.h.b16 %v172
    %v930 = vunpack.c.l.b16 %v173
    %v931 = vunpack.c.h.b16 %v173
    %v932 = vunpack.c.l.b16 %v174
    %v933 = vunpack.c.h.b16 %v174
    %v934 = vunpack.c.l.b16 %v175
    %v935 = vunpack.c.h.b16 %v175
    %v936 = vunpack.c.l.b16 %v176
    %v937 = vunpack.c.h.b16 %v176
    %v938 = vunpack.c.l.b16 %v177
    %v939 = vunpack.c.h.b16 %v177
    %v940 = vunpack.c.l.b16 %v178
    %v941 = vunpack.c.h.b16 %v178
    %v942 = vunpack.c.l.b16 %v179
    %v943 = vunpack.c.h.b16 %v179
    %v944 = vunpack.c.l.b16 %v180
    %v945 = vunpack.c.h.b16 %v180
    %v946 = vpack.c.b16 %v760, %v754
    %v947 = vpack.c.b16 %v761, %v755
    %v948 = vpack.c.b16 %v762, %v756
    %v949 = vpack.c.b16 %v763, %v757
    %v950 = vpack.c.b16 %v764, %v758
    %v951 = vpack.c.b16 %v765, %v759
    %v952 = vpack.c.b16 %v772, %v766
    %v953 = vpack.c.b16 %v773, %v767
    %v954 = vpack.c.b16 %v774, %v768
    %v955 = vpack.c.b16 %v775, %v769
    %v956 = vpack.c.b16 %v776, %v770
    %v957 = vpack.c.b16 %v777, %v771
    %v958 = vpack.c.b16 %v784, %v778
    %v959 = vpack.c.b16 %v785, %v779
    %v960 = vpack.c.b16 %v786, %v780
    %v961 = vpack.c.b16 %v787, %v781
    %v962 = vpack.c.b16 %v788, %v782
    %v963 = vpack.c.b16 %v789, %v783
    %v964 = vpack.c.b16 %v796, %v790
    %v965 = vpack.c.b16 %v797, %v791
    %v966 = vpack.c.b16 %v798, %v792
    %v967 = vpack.c.b16 %v799, %v793
    %v968 = vpack.c.b16 %v800, %v794
    %v969 = vpack.c.b16 %v801, %v795
    %v970 = vpack.c.b16 %v808, %v802
    %v971 = vpack.c.b16 %v809, %v803
    %v972 = vpack.c.b16 %v810, %v804
    %v973 = vpack.c.b16 %v811, %v805
    %v974 = vpack.c.b16 %v812, %v806
    %v975 = vpack.c.b16 %v813, %v807
    %v976 = vpack.c.b16 %v820, %v814
    %v977 = vpack.c.b16 %v821, %v815
    %v978 = vpack.c.b16 %v822, %v816
    %v979 = vpack.c.b16 %v823, %v817
    %v980 = vpack.c.b16 %v824, %v818
    %v981 = vpack.c.b16 %v825, %v819
    %v982 = vpack.c.b16 %v832, %v826
    %v983 = vpack.c.b16 %v833, %v827
    %v984 = vpack.c.b16 %v834, %v828
    %v985 = vpack.c.b16 %v835, %v829
    %v986 = vpack.c.b16 %v836, %v830
    %v987 = vpack.c.b16 %v837, %v831
    %v988 = vpack.c.b16 %v844, %v838
    %v989 = vpack.c.b16 %v845, %v839
    %v990 = vpack.c.b16 %v846, %v840
    %v991 = vpack.c.b16 %v847, %v841
    %v992 = vpack.c.b16 %v848, %v842
    %v993 = vpack.c.b16 %v849, %v843
    %v994 = vpack.c.b16 %v856, %v850
    %v995 = vpack.c.b16 %v857, %v851
    %v996 = vpack.c.b16 %v858, %v852
    %v997 = vpack.c.b16 %v859, %v853
    %v998 = vpack.c.b16 %v860, %v854
    %v999 = vpack.c.b16 %v861, %v855
    %v1000 = vpack.c.b16 %v868, %v862
    %v1001 = vpack.c.b16 %v869, %v863
    %v1002 = vpack.c.b16 %v870, %v864
    %v1003 = vpack.c.b16 %v871, %v865
    %v1004 = vpack.c.b16 %v872, %v866
    %v1005 = vpack.c.b16 %v873, %v867
    %v1006 = vpack.c.b16 %v880, %v874
    %v1007 = vpack.c.b16 %v881, %v875
    %v1008 = vpack.c.b16 %v882, %v876
    %v1009 = vpack.c.b16 %v883, %v877
    %v1010 = vpack.c.b16 %v884, %v878
    %v1011 = vpack.c.b16 %v885, %v879
    %v1012 = vpack.c.b16 %v892, %v886
    %v1013 = vpack.c.b16 %v893, %v887
    %v1014 = vpack.c.b16 %v894, %v888
    %v1015 = vpack.c.b16 %v895, %v889
    %v1016 = vpack.c.b16 %v896, %v890
    %v1017 = vpack.c.b16 %v897, %v891
    %v1018 = vpack.c.b16 %v904, %v898
    %v1019 = vpack.c.b16 %v905, %v899
    %v1020 = vpack.c.b16 %v906, %v900
    %v1021 = vpack.c.b16 %v907, %v901
    %v1022 = vpack.c.b16 %v908, %v902
    %v1023 = vpack.c.b16 %v909, %v903
    %v1024 = vpack.c.b16 %v916, %v910
    %v1025 = vpack.c.b16 %v917, %v911
    %v1026 = vpack.c.b16 %v918, %v912
    %v1027 = vpack.c.b16 %v919, %v913
    %v1028 = vpack.c.b16 %v920, %v914
    %v1029 = vpack.c.b16 %v921, %v915
    %v1030 = vpack.c.b16 %v928, %v922
    %v1031 = vpack.c.b16 %v929, %v923
    %v1032 = vpack.c.b16 %v930, %v924
    %v1033 = vpack.c.b16 %v931, %v925
    %v1034 = vpack.c.b16 %v932, %v926
    %v1035 = vpack.c.b16 %v933, %v927
    %v1036 = vpack.c.b16 %v940, %v934
    %v1037 = vpack.c.b16 %v941, %v935
    %v1038 = vpack.c.b16 %v942, %v936
    %v1039 = vpack.c.b16 %v943, %v937
    %v1040 = vpack.c.b16 %v944, %v938
    %v1041 = vpack.c.b16 %v945, %v939
    %1138 = vmatprep.subr.bf16.mxu0 %v989
    %1139 = vmatpush1.bf16.msra.mxu0 %v988
    %1140 = vmatprep.subr.bf16.mxu0 %v983
    %1141 = vmatpush1.bf16.msra.mxu0 %v982
    %1142 = vmatprep.subr.bf16.mxu0 %v977
    %1143 = vmatpush1.bf16.msra.mxu0 %v976
    %1144 = vmatprep.subr.bf16.mxu0 %v971
    %1145 = vmatpush1.bf16.msra.mxu0 %v970
    %1146 = vmatprep.subr.bf16.mxu0 %v965
    %1147 = vmatpush1.bf16.msra.mxu0 %v964
    %1148 = vmatprep.subr.bf16.mxu0 %v959
    %1149 = vmatpush1.bf16.msra.mxu0 %v958
    %1150 = vmatprep.subr.bf16.mxu0 %v953
    %1151 = vmatpush1.bf16.msra.mxu0 %v952
    %1152 = vmatprep.subr.bf16.mxu0 %v947
    %1153 = vmatpush1.bf16.msra.mxu0 %v946
    %1154 = vmatprep.subr.bf16.mxu0 %v1037
    %1155 = vmatpush2.bf16.msra.mxu0 %v1036
    %1156 = vmatprep.subr.bf16.mxu0 %v1031
    %1157 = vmatpush2.bf16.msra.mxu0 %v1030
    %1158 = vmatprep.subr.bf16.mxu0 %v1025
    %1159 = vmatpush2.bf16.msra.mxu0 %v1024
    %1160 = vmatprep.subr.bf16.mxu0 %v1019
    %1161 = vmatpush2.bf16.msra.mxu0 %v1018
    %1162 = vmatprep.subr.bf16.mxu0 %v1013
    %1163 = vmatpush2.bf16.msra.mxu0 %v1012
    %1164 = vmatprep.subr.bf16.mxu0 %v1007
    %1165 = vmatpush2.bf16.msra.mxu0 %v1006
    %1166 = vmatprep.subr.bf16.mxu0 %v1001
    %1167 = vmatpush2.bf16.msra.mxu0 %v1000
    %1168 = vmatprep.subr.bf16.mxu0 %v995
    %1169 = vmatpush2.bf16.msra.mxu0 %v994
    %1170 = vmatprep.mubr.bf16.mxu0 0
    %1171 = vmatmul.mubr.bf16.gmra.mxu0 0
    %v1172 = vpop.f32.mrf.mxu0
    %v1173 = vadd.f32 0.0, %v1172
    %v1174 = vpop.f32.mrf.mxu0
    %v1175 = vadd.f32 0.0, %v1174
    %v1176 = vpop.f32.mrf.mxu0
    %v1177 = vpop.f32.mrf.mxu0
    %1178 = vdwg.mxu0
    %1179 = vmatprep.subr.bf16.mxu0 %v991
    %1180 = vmatpush1.bf16.msra.mxu0 %v990
    %1181 = vmatprep.subr.bf16.mxu0 %v985
    %1182 = vmatpush1.bf16.msra.mxu0 %v984
    %1183 = vmatprep.subr.bf16.mxu0 %v979
    %1184 = vmatpush1.bf16.msra.mxu0 %v978
    %1185 = vmatprep.subr.bf16.mxu0 %v973
    %1186 = vmatpush1.bf16.msra.mxu0 %v972
    %1187 = vmatprep.subr.bf16.mxu0 %v967
    %1188 = vmatpush1.bf16.msra.mxu0 %v966
    %1189 = vmatprep.subr.bf16.mxu0 %v961
    %1190 = vmatpush1.bf16.msra.mxu0 %v960
    %1191 = vmatprep.subr.bf16.mxu0 %v955
    %1192 = vmatpush1.bf16.msra.mxu0 %v954
    %1193 = vmatprep.subr.bf16.mxu0 %v949
    %1194 = vmatpush1.bf16.msra.mxu0 %v948
    %1195 = vmatprep.subr.bf16.mxu0 %v1039
    %1196 = vmatpush2.bf16.msra.mxu0 %v1038
    %1197 = vmatprep.subr.bf16.mxu0 %v1033
    %1198 = vmatpush2.bf16.msra.mxu0 %v1032
    %1199 = vmatprep.subr.bf16.mxu0 %v1027
    %1200 = vmatpush2.bf16.msra.mxu0 %v1026
    %1201 = vmatprep.subr.bf16.mxu0 %v1021
    %1202 = vmatpush2.bf16.msra.mxu0 %v1020
    %1203 = vmatprep.subr.bf16.mxu0 %v1015
    %1204 = vmatpush2.bf16.msra.mxu0 %v1014
    %1205 = vmatprep.subr.bf16.mxu0 %v1009
    %1206 = vmatpush2.bf16.msra.mxu0 %v1008
    %1207 = vmatprep.subr.bf16.mxu0 %v1003
    %1208 = vmatpush2.bf16.msra.mxu0 %v1002
    %1209 = vmatprep.subr.bf16.mxu0 %v997
    %1210 = vmatpush2.bf16.msra.mxu0 %v996
    %1211 = vmatprep.mubr.bf16.mxu0 0
    %1212 = vmatmul.mubr.bf16.gmra.mxu0 0
    %v1213 = vpop.f32.mrf.mxu0
    %v1214 = vadd.f32 0.0, %v1213
    %v1215 = vpop.f32.mrf.mxu0
    %v1216 = vadd.f32 0.0, %v1215
    %v1217 = vpop.f32.mrf.mxu0
    %v1218 = vpop.f32.mrf.mxu0
    %1219 = vdwg.mxu0
    %1220 = vmatprep.subr.bf16.mxu0 %v993
    %1221 = vmatpush1.bf16.msra.mxu0 %v992
    %1222 = vmatprep.subr.bf16.mxu0 %v987
    %1223 = vmatpush1.bf16.msra.mxu0 %v986
    %1224 = vmatprep.subr.bf16.mxu0 %v981
    %1225 = vmatpush1.bf16.msra.mxu0 %v980
    %1226 = vmatprep.subr.bf16.mxu0 %v975
    %1227 = vmatpush1.bf16.msra.mxu0 %v974
    %1228 = vmatprep.subr.bf16.mxu0 %v969
    %1229 = vmatpush1.bf16.msra.mxu0 %v968
    %1230 = vmatprep.subr.bf16.mxu0 %v963
    %1231 = vmatpush1.bf16.msra.mxu0 %v962
    %1232 = vmatprep.subr.bf16.mxu0 %v957
    %1233 = vmatpush1.bf16.msra.mxu0 %v956
    %1234 = vmatprep.subr.bf16.mxu0 %v951
    %1235 = vmatpush1.bf16.msra.mxu0 %v950
    %1236 = vmatprep.subr.bf16.mxu0 %v1041
    %1237 = vmatpush2.bf16.msra.mxu0 %v1040
    %1238 = vmatprep.subr.bf16.mxu0 %v1035
    %1239 = vmatpush2.bf16.msra.mxu0 %v1034
    %1240 = vmatprep.subr.bf16.mxu0 %v1029
    %1241 = vmatpush2.bf16.msra.mxu0 %v1028
    %1242 = vmatprep.subr.bf16.mxu0 %v1023
    %1243 = vmatpush2.bf16.msra.mxu0 %v1022
    %1244 = vmatprep.subr.bf16.mxu0 %v1017
    %1245 = vmatpush2.bf16.msra.mxu0 %v1016
    %1246 = vmatprep.subr.bf16.mxu0 %v1011
    %1247 = vmatpush2.bf16.msra.mxu0 %v1010
    %1248 = vmatprep.subr.bf16.mxu0 %v1005
    %1249 = vmatpush2.bf16.msra.mxu0 %v1004
    %1250 = vmatprep.subr.bf16.mxu0 %v999
    %1251 = vmatpush2.bf16.msra.mxu0 %v998
    %1252 = vmatprep.mubr.bf16.mxu0 0
    %1253 = vmatmul.mubr.bf16.gmra.mxu0 0
    %v1254 = vpop.f32.mrf.mxu0
    %v1255 = vadd.f32 0.0, %v1254
    %v1256 = vpop.f32.mrf.mxu0
    %v1257 = vadd.f32 0.0, %v1256
    %v1258 = vpop.f32.mrf.mxu0
    %v1259 = vpop.f32.mrf.mxu0
    %1260 = vdwg.mxu0
    %v1261 = vadd.f32 %v570, %v1173
    %v1262 = vadd.f32 %v572, %v1175
    %v1263 = vadd.f32 %v611, %v1214
    %v1264 = vadd.f32 %v613, %v1216
    %v1265 = vmul.f32 %v1261, 0.5
    %v1266 = vmul.f32 %v1262, 0.5
    %v1267 = vmul.f32 %v1263, 0.5
    %v1268 = vmul.f32 %v1264, 0.5
    %v1269 = vtanh.pop %v1265
    %v1270 = vtanh.pop %v1266
    %v1271 = vtanh.pop %v1267
    %v1272 = vtanh.pop %v1268
    %v1273 = vadd.f32 %v1269, 1.0
    %v1274 = vadd.f32 %v1270, 1.0
    %v1275 = vadd.f32 %v1271, 1.0
    %v1276 = vadd.f32 %v1272, 1.0
    %v1277 = vmul.f32 %v1273, 0.5
    %v1278 = vmul.f32 %v1274, 0.5
    %v1279 = vmul.f32 %v1275, 0.5
    %v1280 = vmul.f32 %v1276, 0.5
    %v1281 = vadd.f32 %v1255, %v448
    %v1282 = vadd.f32 %v1257, %v452
    %v1283 = vmul.f32 %v1277, %v1281
    %v1284 = vmul.f32 %v1278, %v1282
    %v1285 = vadd.f32 %v652, %v1283
    %v1286 = vadd.f32 %v654, %v1284
    %v1287 = vtanh.pop %v1285
    %v1288 = vtanh.pop %v1286
    %v1289 = vsub.f32 1.0, %v1279
    %v1290 = vsub.f32 1.0, %v1280
    %v1291 = vmul.f32 %v1289, %v1287
    %v1292 = vmul.f32 %v1290, %v1288
    %v1293 = vmul.f32 %v1279, 0.0
    %v1294 = vmul.f32 %v1280, 0.0
    %v1295 = vadd.f32 %v1291, %v1293
    %v1296 = vadd.f32 %v1292, %v1294
    %v1297 = vpack.c.bf16 %v1295, %v1295
    %v1298 = vpack.c.bf16 %v1296, %v1296
    %v1395 = vunpack.c.l.b16 %v181
    %v1396 = vunpack.c.h.b16 %v181
    %v1397 = vunpack.c.l.b16 %v182
    %v1398 = vunpack.c.h.b16 %v182
    %v1399 = vunpack.c.l.b16 %v183
    %v1400 = vunpack.c.h.b16 %v183
    %v1401 = vunpack.c.l.b16 %v184
    %v1402 = vunpack.c.h.b16 %v184
    %v1403 = vunpack.c.l.b16 %v185
    %v1404 = vunpack.c.h.b16 %v185
    %v1405 = vunpack.c.l.b16 %v186
    %v1406 = vunpack.c.h.b16 %v186
    %v1407 = vunpack.c.l.b16 %v187
    %v1408 = vunpack.c.h.b16 %v187
    %v1409 = vunpack.c.l.b16 %v188
    %v1410 = vunpack.c.h.b16 %v188
    %v1411 = vunpack.c.l.b16 %v189
    %v1412 = vunpack.c.h.b16 %v189
    %v1413 = vunpack.c.l.b16 %v190
    %v1414 = vunpack.c.h.b16 %v190
    %v1415 = vunpack.c.l.b16 %v191
    %v1416 = vunpack.c.h.b16 %v191
    %v1417 = vunpack.c.l.b16 %v192
    %v1418 = vunpack.c.h.b16 %v192
    %v1419 = vunpack.c.l.b16 %v193
    %v1420 = vunpack.c.h.b16 %v193
    %v1421 = vunpack.c.l.b16 %v194
    %v1422 = vunpack.c.h.b16 %v194
    %v1423 = vunpack.c.l.b16 %v195
    %v1424 = vunpack.c.h.b16 %v195
    %v1425 = vunpack.c.l.b16 %v196
    %v1426 = vunpack.c.h.b16 %v196
    %v1427 = vunpack.c.l.b16 %v197
    %v1428 = vunpack.c.h.b16 %v197
    %v1429 = vunpack.c.l.b16 %v198
    %v1430 = vunpack.c.h.b16 %v198
    %v1431 = vunpack.c.l.b16 %v199
    %v1432 = vunpack.c.h.b16 %v199
    %v1433 = vunpack.c.l.b16 %v200
    %v1434 = vunpack.c.h.b16 %v200
    %v1435 = vunpack.c.l.b16 %v201
    %v1436 = vunpack.c.h.b16 %v201
    %v1437 = vunpack.c.l.b16 %v202
    %v1438 = vunpack.c.h.b16 %v202
    %v1439 = vunpack.c.l.b16 %v203
    %v1440 = vunpack.c.h.b16 %v203
    %v1441 = vunpack.c.l.b16 %v204
    %v1442 = vunpack.c.h.b16 %v204
    %v1443 = vunpack.c.l.b16 %v205
    %v1444 = vunpack.c.h.b16 %v205
    %v1445 = vunpack.c.l.b16 %v206
    %v1446 = vunpack.c.h.b16 %v206
    %v1447 = vunpack.c.l.b16 %v207
    %v1448 = vunpack.c.h.b16 %v207
    %v1449 = vunpack.c.l.b16 %v208
    %v1450 = vunpack.c.h.b16 %v208
    %v1451 = vunpack.c.l.b16 %v209
    %v1452 = vunpack.c.h.b16 %v209
    %v1453 = vunpack.c.l.b16 %v210
    %v1454 = vunpack.c.h.b16 %v210
    %v1455 = vunpack.c.l.b16 %v211
    %v1456 = vunpack.c.h.b16 %v211
    %v1457 = vunpack.c.l.b16 %v212
    %v1458 = vunpack.c.h.b16 %v212
    %v1459 = vunpack.c.l.b16 %v213
    %v1460 = vunpack.c.h.b16 %v213
    %v1461 = vunpack.c.l.b16 %v214
    %v1462 = vunpack.c.h.b16 %v214
    %v1463 = vunpack.c.l.b16 %v215
    %v1464 = vunpack.c.h.b16 %v215
    %v1465 = vunpack.c.l.b16 %v216
    %v1466 = vunpack.c.h.b16 %v216
    %v1467 = vunpack.c.l.b16 %v217
    %v1468 = vunpack.c.h.b16 %v217
    %v1469 = vunpack.c.l.b16 %v218
    %v1470 = vunpack.c.h.b16 %v218
    %v1471 = vunpack.c.l.b16 %v219
    %v1472 = vunpack.c.h.b16 %v219
    %v1473 = vunpack.c.l.b16 %v220
    %v1474 = vunpack.c.h.b16 %v220
    %v1475 = vunpack.c.l.b16 %v221
    %v1476 = vunpack.c.h.b16 %v221
    %v1477 = vunpack.c.l.b16 %v222
    %v1478 = vunpack.c.h.b16 %v222
    %v1479 = vunpack.c.l.b16 %v223
    %v1480 = vunpack.c.h.b16 %v223
    %v1481 = vunpack.c.l.b16 %v224
    %v1482 = vunpack.c.h.b16 %v224
    %v1483 = vunpack.c.l.b16 %v225
    %v1484 = vunpack.c.h.b16 %v225
    %v1485 = vunpack.c.l.b16 %v226
    %v1486 = vunpack.c.h.b16 %v226
    %v1487 = vunpack.c.l.b16 %v227
    %v1488 = vunpack.c.h.b16 %v227
    %v1489 = vunpack.c.l.b16 %v228
    %v1490 = vunpack.c.h.b16 %v228
    %v1491 = vunpack.c.l.b16 %v229
    %v1492 = vunpack.c.h.b16 %v229
    %v1493 = vunpack.c.l.b16 %v230
    %v1494 = vunpack.c.h.b16 %v230
    %v1495 = vunpack.c.l.b16 %v231
    %v1496 = vunpack.c.h.b16 %v231
    %v1497 = vunpack.c.l.b16 %v232
    %v1498 = vunpack.c.h.b16 %v232
    %v1499 = vunpack.c.l.b16 %v233
    %v1500 = vunpack.c.h.b16 %v233
    %v1501 = vunpack.c.l.b16 %v234
    %v1502 = vunpack.c.h.b16 %v234
    %v1503 = vunpack.c.l.b16 %v235
    %v1504 = vunpack.c.h.b16 %v235
    %v1505 = vunpack.c.l.b16 %v236
    %v1506 = vunpack.c.h.b16 %v236
    %v1507 = vunpack.c.l.b16 %v237
    %v1508 = vunpack.c.h.b16 %v237
    %v1509 = vunpack.c.l.b16 %v238
    %v1510 = vunpack.c.h.b16 %v238
    %v1511 = vunpack.c.l.b16 %v239
    %v1512 = vunpack.c.h.b16 %v239
    %v1513 = vunpack.c.l.b16 %v240
    %v1514 = vunpack.c.h.b16 %v240
    %v1515 = vunpack.c.l.b16 %v241
    %v1516 = vunpack.c.h.b16 %v241
    %v1517 = vunpack.c.l.b16 %v242
    %v1518 = vunpack.c.h.b16 %v242
    %v1519 = vunpack.c.l.b16 %v243
    %v1520 = vunpack.c.h.b16 %v243
    %v1521 = vunpack.c.l.b16 %v244
    %v1522 = vunpack.c.h.b16 %v244
    %v1523 = vunpack.c.l.b16 %v245
    %v1524 = vunpack.c.h.b16 %v245
    %v1525 = vunpack.c.l.b16 %v246
    %v1526 = vunpack.c.h.b16 %v246
    %v1527 = vunpack.c.l.b16 %v247
    %v1528 = vunpack.c.h.b16 %v247
    %v1529 = vunpack.c.l.b16 %v248
    %v1530 = vunpack.c.h.b16 %v248
    %v1531 = vunpack.c.l.b16 %v249
    %v1532 = vunpack.c.h.b16 %v249
    %v1533 = vunpack.c.l.b16 %v250
    %v1534 = vunpack.c.h.b16 %v250
    %v1535 = vunpack.c.l.b16 %v251
    %v1536 = vunpack.c.h.b16 %v251
    %v1537 = vunpack.c.l.b16 %v252
    %v1538 = vunpack.c.h.b16 %v252
    %v1539 = vunpack.c.l.b16 %v253
    %v1540 = vunpack.c.h.b16 %v253
    %v1541 = vunpack.c.l.b16 %v254
    %v1542 = vunpack.c.h.b16 %v254
    %v1543 = vunpack.c.l.b16 %v255
    %v1544 = vunpack.c.h.b16 %v255
    %v1545 = vunpack.c.l.b16 %v256
    %v1546 = vunpack.c.h.b16 %v256
    %v1547 = vunpack.c.l.b16 %v257
    %v1548 = vunpack.c.h.b16 %v257
    %v1549 = vunpack.c.l.b16 %v258
    %v1550 = vunpack.c.h.b16 %v258
    %v1551 = vunpack.c.l.b16 %v259
    %v1552 = vunpack.c.h.b16 %v259
    %v1553 = vunpack.c.l.b16 %v260
    %v1554 = vunpack.c.h.b16 %v260
    %v1555 = vunpack.c.l.b16 %v261
    %v1556 = vunpack.c.h.b16 %v261
    %v1557 = vunpack.c.l.b16 %v262
    %v1558 = vunpack.c.h.b16 %v262
    %v1559 = vunpack.c.l.b16 %v263
    %v1560 = vunpack.c.h.b16 %v263
    %v1561 = vunpack.c.l.b16 %v264
    %v1562 = vunpack.c.h.b16 %v264
    %v1563 = vunpack.c.l.b16 %v265
    %v1564 = vunpack.c.h.b16 %v265
    %v1565 = vunpack.c.l.b16 %v266
    %v1566 = vunpack.c.h.b16 %v266
    %v1567 = vunpack.c.l.b16 %v267
    %v1568 = vunpack.c.h.b16 %v267
    %v1569 = vunpack.c.l.b16 %v268
    %v1570 = vunpack.c.h.b16 %v268
    %v1571 = vunpack.c.l.b16 %v269
    %v1572 = vunpack.c.h.b16 %v269
    %v1573 = vunpack.c.l.b16 %v270
    %v1574 = vunpack.c.h.b16 %v270
    %v1575 = vunpack.c.l.b16 %v271
    %v1576 = vunpack.c.h.b16 %v271
    %v1577 = vunpack.c.l.b16 %v272
    %v1578 = vunpack.c.h.b16 %v272
    %v1579 = vunpack.c.l.b16 %v273
    %v1580 = vunpack.c.h.b16 %v273
    %v1581 = vunpack.c.l.b16 %v274
    %v1582 = vunpack.c.h.b16 %v274
    %v1583 = vunpack.c.l.b16 %v275
    %v1584 = vunpack.c.h.b16 %v275
    %v1585 = vunpack.c.l.b16 %v276
    %v1586 = vunpack.c.h.b16 %v276
    %v1587 = vpack.c.b16 %v1401, %v1395
    %v1588 = vpack.c.b16 %v1402, %v1396
    %v1589 = vpack.c.b16 %v1403, %v1397
    %v1590 = vpack.c.b16 %v1404, %v1398
    %v1591 = vpack.c.b16 %v1405, %v1399
    %v1592 = vpack.c.b16 %v1406, %v1400
    %v1593 = vpack.c.b16 %v1413, %v1407
    %v1594 = vpack.c.b16 %v1414, %v1408
    %v1595 = vpack.c.b16 %v1415, %v1409
    %v1596 = vpack.c.b16 %v1416, %v1410
    %v1597 = vpack.c.b16 %v1417, %v1411
    %v1598 = vpack.c.b16 %v1418, %v1412
    %v1599 = vpack.c.b16 %v1425, %v1419
    %v1600 = vpack.c.b16 %v1426, %v1420
    %v1601 = vpack.c.b16 %v1427, %v1421
    %v1602 = vpack.c.b16 %v1428, %v1422
    %v1603 = vpack.c.b16 %v1429, %v1423
    %v1604 = vpack.c.b16 %v1430, %v1424
    %v1605 = vpack.c.b16 %v1437, %v1431
    %v1606 = vpack.c.b16 %v1438, %v1432
    %v1607 = vpack.c.b16 %v1439, %v1433
    %v1608 = vpack.c.b16 %v1440, %v1434
    %v1609 = vpack.c.b16 %v1441, %v1435
    %v1610 = vpack.c.b16 %v1442, %v1436
    %v1611 = vpack.c.b16 %v1449, %v1443
    %v1612 = vpack.c.b16 %v1450, %v1444
    %v1613 = vpack.c.b16 %v1451, %v1445
    %v1614 = vpack.c.b16 %v1452, %v1446
    %v1615 = vpack.c.b16 %v1453, %v1447
    %v1616 = vpack.c.b16 %v1454, %v1448
    %v1617 = vpack.c.b16 %v1461, %v1455
    %v1618 = vpack.c.b16 %v1462, %v1456
    %v1619 = vpack.c.b16 %v1463, %v1457
    %v1620 = vpack.c.b16 %v1464, %v1458
    %v1621 = vpack.c.b16 %v1465, %v1459
    %v1622 = vpack.c.b16 %v1466, %v1460
    %v1623 = vpack.c.b16 %v1473, %v1467
    %v1624 = vpack.c.b16 %v1474, %v1468
    %v1625 = vpack.c.b16 %v1475, %v1469
    %v1626 = vpack.c.b16 %v1476, %v1470
    %v1627 = vpack.c.b16 %v1477, %v1471
    %v1628 = vpack.c.b16 %v1478, %v1472
    %v1629 = vpack.c.b16 %v1485, %v1479
    %v1630 = vpack.c.b16 %v1486, %v1480
    %v1631 = vpack.c.b16 %v1487, %v1481
    %v1632 = vpack.c.b16 %v1488, %v1482
    %v1633 = vpack.c.b16 %v1489, %v1483
    %v1634 = vpack.c.b16 %v1490, %v1484
    %v1635 = vpack.c.b16 %v1497, %v1491
    %v1636 = vpack.c.b16 %v1498, %v1492
    %v1637 = vpack.c.b16 %v1499, %v1493
    %v1638 = vpack.c.b16 %v1500, %v1494
    %v1639 = vpack.c.b16 %v1501, %v1495
    %v1640 = vpack.c.b16 %v1502, %v1496
    %v1641 = vpack.c.b16 %v1509, %v1503
    %v1642 = vpack.c.b16 %v1510, %v1504
    %v1643 = vpack.c.b16 %v1511, %v1505
    %v1644 = vpack.c.b16 %v1512, %v1506
    %v1645 = vpack.c.b16 %v1513, %v1507
    %v1646 = vpack.c.b16 %v1514, %v1508
    %v1647 = vpack.c.b16 %v1521, %v1515
    %v1648 = vpack.c.b16 %v1522, %v1516
    %v1649 = vpack.c.b16 %v1523, %v1517
    %v1650 = vpack.c.b16 %v1524, %v1518
    %v1651 = vpack.c.b16 %v1525, %v1519
    %v1652 = vpack.c.b16 %v1526, %v1520
    %v1653 = vpack.c.b16 %v1533, %v1527
    %v1654 = vpack.c.b16 %v1534, %v1528
    %v1655 = vpack.c.b16 %v1535, %v1529
    %v1656 = vpack.c.b16 %v1536, %v1530
    %v1657 = vpack.c.b16 %v1537, %v1531
    %v1658 = vpack.c.b16 %v1538, %v1532
    %v1659 = vpack.c.b16 %v1545, %v1539
    %v1660 = vpack.c.b16 %v1546, %v1540
    %v1661 = vpack.c.b16 %v1547, %v1541
    %v1662 = vpack.c.b16 %v1548, %v1542
    %v1663 = vpack.c.b16 %v1549, %v1543
    %v1664 = vpack.c.b16 %v1550, %v1544
    %v1665 = vpack.c.b16 %v1557, %v1551
    %v1666 = vpack.c.b16 %v1558, %v1552
    %v1667 = vpack.c.b16 %v1559, %v1553
    %v1668 = vpack.c.b16 %v1560, %v1554
    %v1669 = vpack.c.b16 %v1561, %v1555
    %v1670 = vpack.c.b16 %v1562, %v1556
    %v1671 = vpack.c.b16 %v1569, %v1563
    %v1672 = vpack.c.b16 %v1570, %v1564
    %v1673 = vpack.c.b16 %v1571, %v1565
    %v1674 = vpack.c.b16 %v1572, %v1566
    %v1675 = vpack.c.b16 %v1573, %v1567
    %v1676 = vpack.c.b16 %v1574, %v1568
    %v1677 = vpack.c.b16 %v1581, %v1575
    %v1678 = vpack.c.b16 %v1582, %v1576
    %v1679 = vpack.c.b16 %v1583, %v1577
    %v1680 = vpack.c.b16 %v1584, %v1578
    %v1681 = vpack.c.b16 %v1585, %v1579
    %v1682 = vpack.c.b16 %v1586, %v1580
    %1779 = vmatprep.subr.bf16.mxu0 %v1630
    %1780 = vmatpush1.bf16.msra.mxu0 %v1629
    %1781 = vmatprep.subr.bf16.mxu0 %v1624
    %1782 = vmatpush1.bf16.msra.mxu0 %v1623
    %1783 = vmatprep.subr.bf16.mxu0 %v1618
    %1784 = vmatpush1.bf16.msra.mxu0 %v1617
    %1785 = vmatprep.subr.bf16.mxu0 %v1612
    %1786 = vmatpush1.bf16.msra.mxu0 %v1611
    %1787 = vmatprep.subr.bf16.mxu0 %v1606
    %1788 = vmatpush1.bf16.msra.mxu0 %v1605
    %1789 = vmatprep.subr.bf16.mxu0 %v1600
    %1790 = vmatpush1.bf16.msra.mxu0 %v1599
    %1791 = vmatprep.subr.bf16.mxu0 %v1594
    %1792 = vmatpush1.bf16.msra.mxu0 %v1593
    %1793 = vmatprep.subr.bf16.mxu0 %v1588
    %1794 = vmatpush1.bf16.msra.mxu0 %v1587
    %1795 = vmatprep.subr.bf16.mxu0 %v1678
    %1796 = vmatpush2.bf16.msra.mxu0 %v1677
    %1797 = vmatprep.subr.bf16.mxu0 %v1672
    %1798 = vmatpush2.bf16.msra.mxu0 %v1671
    %1799 = vmatprep.subr.bf16.mxu0 %v1666
    %1800 = vmatpush2.bf16.msra.mxu0 %v1665
    %1801 = vmatprep.subr.bf16.mxu0 %v1660
    %1802 = vmatpush2.bf16.msra.mxu0 %v1659
    %1803 = vmatprep.subr.bf16.mxu0 %v1654
    %1804 = vmatpush2.bf16.msra.mxu0 %v1653
    %1805 = vmatprep.subr.bf16.mxu0 %v1648
    %1806 = vmatpush2.bf16.msra.mxu0 %v1647
    %1807 = vmatprep.subr.bf16.mxu0 %v1642
    %1808 = vmatpush2.bf16.msra.mxu0 %v1641
    %1809 = vmatprep.subr.bf16.mxu0 %v1636
    %1810 = vmatpush2.bf16.msra.mxu0 %v1635
    %1811 = vmatprep.mubr.bf16.mxu0 %v1298
    %1812 = vmatmul.mubr.bf16.gmra.mxu0 %v1297
    %v1813 = vpop.f32.mrf.mxu0
    %v1814 = vadd.f32 %v415, %v1813
    %v1815 = vpop.f32.mrf.mxu0
    %v1816 = vadd.f32 %v419, %v1815
    %v1817 = vpop.f32.mrf.mxu0
    %v1818 = vpop.f32.mrf.mxu0
    %1819 = vdwg.mxu0
    %1820 = vmatprep.subr.bf16.mxu0 %v1632
    %1821 = vmatpush1.bf16.msra.mxu0 %v1631
    %1822 = vmatprep.subr.bf16.mxu0 %v1626
    %1823 = vmatpush1.bf16.msra.mxu0 %v1625
    %1824 = vmatprep.subr.bf16.mxu0 %v1620
    %1825 = vmatpush1.bf16.msra.mxu0 %v1619
    %1826 = vmatprep.subr.bf16.mxu0 %v1614
    %1827 = vmatpush1.bf16.msra.mxu0 %v1613
    %1828 = vmatprep.subr.bf16.mxu0 %v1608
    %1829 = vmatpush1.bf16.msra.mxu0 %v1607
    %1830 = vmatprep.subr.bf16.mxu0 %v1602
    %1831 = vmatpush1.bf16.msra.mxu0 %v1601
    %1832 = vmatprep.subr.bf16.mxu0 %v1596
    %1833 = vmatpush1.bf16.msra.mxu0 %v1595
    %1834 = vmatprep.subr.bf16.mxu0 %v1590
    %1835 = vmatpush1.bf16.msra.mxu0 %v1589
    %1836 = vmatprep.subr.bf16.mxu0 %v1680
    %1837 = vmatpush2.bf16.msra.mxu0 %v1679
    %1838 = vmatprep.subr.bf16.mxu0 %v1674
    %1839 = vmatpush2.bf16.msra.mxu0 %v1673
    %1840 = vmatprep.subr.bf16.mxu0 %v1668
    %1841 = vmatpush2.bf16.msra.mxu0 %v1667
    %1842 = vmatprep.subr.bf16.mxu0 %v1662
    %1843 = vmatpush2.bf16.msra.mxu0 %v1661
    %1844 = vmatprep.subr.bf16.mxu0 %v1656
    %1845 = vmatpush2.bf16.msra.mxu0 %v1655
    %1846 = vmatprep.subr.bf16.mxu0 %v1650
    %1847 = vmatpush2.bf16.msra.mxu0 %v1649
    %1848 = vmatprep.subr.bf16.mxu0 %v1644
    %1849 = vmatpush2.bf16.msra.mxu0 %v1643
    %1850 = vmatprep.subr.bf16.mxu0 %v1638
    %1851 = vmatpush2.bf16.msra.mxu0 %v1637
    %1852 = vmatprep.mubr.bf16.mxu0 %v1298
    %1853 = vmatmul.mubr.bf16.gmra.mxu0 %v1297
    %v1854 = vpop.f32.mrf.mxu0
    %v1855 = vadd.f32 %v423, %v1854
    %v1856 = vpop.f32.mrf.mxu0
    %v1857 = vadd.f32 %v427, %v1856
    %v1858 = vpop.f32.mrf.mxu0
    %v1859 = vpop.f32.mrf.mxu0
    %1860 = vdwg.mxu0
    %1861 = vmatprep.subr.bf16.mxu0 %v1634
    %1862 = vmatpush1.bf16.msra.mxu0 %v1633
    %1863 = vmatprep.subr.bf16.mxu0 %v1628
    %1864 = vmatpush1.bf16.msra.mxu0 %v1627
    %1865 = vmatprep.subr.bf16.mxu0 %v1622
    %1866 = vmatpush1.bf16.msra.mxu0 %v1621
    %1867 = vmatprep.subr.bf16.mxu0 %v1616
    %1868 = vmatpush1.bf16.msra.mxu0 %v1615
    %1869 = vmatprep.subr.bf16.mxu0 %v1610
    %1870 = vmatpush1.bf16.msra.mxu0 %v1609
    %1871 = vmatprep.subr.bf16.mxu0 %v1604
    %1872 = vmatpush1.bf16.msra.mxu0 %v1603
    %1873 = vmatprep.subr.bf16.mxu0 %v1598
    %1874 = vmatpush1.bf16.msra.mxu0 %v1597
    %1875 = vmatprep.subr.bf16.mxu0 %v1592
    %1876 = vmatpush1.bf16.msra.mxu0 %v1591
    %1877 = vmatprep.subr.bf16.mxu0 %v1682
    %1878 = vmatpush2.bf16.msra.mxu0 %v1681
    %1879 = vmatprep.subr.bf16.mxu0 %v1676
    %1880 = vmatpush2.bf16.msra.mxu0 %v1675
    %1881 = vmatprep.subr.bf16.mxu0 %v1670
    %1882 = vmatpush2.bf16.msra.mxu0 %v1669
    %1883 = vmatprep.subr.bf16.mxu0 %v1664
    %1884 = vmatpush2.bf16.msra.mxu0 %v1663
    %1885 = vmatprep.subr.bf16.mxu0 %v1658
    %1886 = vmatpush2.bf16.msra.mxu0 %v1657
    %1887 = vmatprep.subr.bf16.mxu0 %v1652
    %1888 = vmatpush2.bf16.msra.mxu0 %v1651
    %1889 = vmatprep.subr.bf16.mxu0 %v1646
    %1890 = vmatpush2.bf16.msra.mxu0 %v1645
    %1891 = vmatprep.subr.bf16.mxu0 %v1640
    %1892 = vmatpush2.bf16.msra.mxu0 %v1639
    %1893 = vmatprep.mubr.bf16.mxu0 %v1298
    %1894 = vmatmul.mubr.bf16.gmra.mxu0 %v1297
    %v1895 = vpop.f32.mrf.mxu0
    %v1896 = vadd.f32 %v431, %v1895
    %v1897 = vpop.f32.mrf.mxu0
    %v1898 = vadd.f32 %v435, %v1897
    %v1899 = vpop.f32.mrf.mxu0
    %v1900 = vpop.f32.mrf.mxu0
    %1901 = vdwg.mxu0
    %v1998 = vunpack.c.l.b16 %v277
    %v1999 = vunpack.c.h.b16 %v277
    %v2000 = vunpack.c.l.b16 %v278
    %v2001 = vunpack.c.h.b16 %v278
    %v2002 = vunpack.c.l.b16 %v279
    %v2003 = vunpack.c.h.b16 %v279
    %v2004 = vunpack.c.l.b16 %v280
    %v2005 = vunpack.c.h.b16 %v280
    %v2006 = vunpack.c.l.b16 %v281
    %v2007 = vunpack.c.h.b16 %v281
    %v2008 = vunpack.c.l.b16 %v282
    %v2009 = vunpack.c.h.b16 %v282
    %v2010 = vunpack.c.l.b16 %v283
    %v2011 = vunpack.c.h.b16 %v283
    %v2012 = vunpack.c.l.b16 %v284
    %v2013 = vunpack.c.h.b16 %v284
    %v2014 = vunpack.c.l.b16 %v285
    %v2015 = vunpack.c.h.b16 %v285
    %v2016 = vunpack.c.l.b16 %v286
    %v2017 = vunpack.c.h.b16 %v286
    %v2018 = vunpack.c.l.b16 %v287
    %v2019 = vunpack.c.h.b16 %v287
    %v2020 = vunpack.c.l.b16 %v288
    %v2021 = vunpack.c.h.b16 %v288
    %v2022 = vunpack.c.l.b16 %v289
    %v2023 = vunpack.c.h.b16 %v289
    %v2024 = vunpack.c.l.b16 %v290
    %v2025 = vunpack.c.h.b16 %v290
    %v2026 = vunpack.c.l.b16 %v291
    %v2027 = vunpack.c.h.b16 %v291
    %v2028 = vunpack.c.l.b16 %v292
    %v2029 = vunpack.c.h.b16 %v292
    %v2030 = vunpack.c.l.b16 %v293
    %v2031 = vunpack.c.h.b16 %v293
    %v2032 = vunpack.c.l.b16 %v294
    %v2033 = vunpack.c.h.b16 %v294
    %v2034 = vunpack.c.l.b16 %v295
    %v2035 = vunpack.c.h.b16 %v295
    %v2036 = vunpack.c.l.b16 %v296
    %v2037 = vunpack.c.h.b16 %v296
    %v2038 = vunpack.c.l.b16 %v297
    %v2039 = vunpack.c.h.b16 %v297
    %v2040 = vunpack.c.l.b16 %v298
    %v2041 = vunpack.c.h.b16 %v298
    %v2042 = vunpack.c.l.b16 %v299
    %v2043 = vunpack.c.h.b16 %v299
    %v2044 = vunpack.c.l.b16 %v300
    %v2045 = vunpack.c.h.b16 %v300
    %v2046 = vunpack.c.l.b16 %v301
    %v2047 = vunpack.c.h.b16 %v301
    %v2048 = vunpack.c.l.b16 %v302
    %v2049 = vunpack.c.h.b16 %v302
    %v2050 = vunpack.c.l.b16 %v303
    %v2051 = vunpack.c.h.b16 %v303
    %v2052 = vunpack.c.l.b16 %v304
    %v2053 = vunpack.c.h.b16 %v304
    %v2054 = vunpack.c.l.b16 %v305
    %v2055 = vunpack.c.h.b16 %v305
    %v2056 = vunpack.c.l.b16 %v306
    %v2057 = vunpack.c.h.b16 %v306
    %v2058 = vunpack.c.l.b16 %v307
    %v2059 = vunpack.c.h.b16 %v307
    %v2060 = vunpack.c.l.b16 %v308
    %v2061 = vunpack.c.h.b16 %v308
    %v2062 = vunpack.c.l.b16 %v309
    %v2063 = vunpack.c.h.b16 %v309
    %v2064 = vunpack.c.l.b16 %v310
    %v2065 = vunpack.c.h.b16 %v310
    %v2066 = vunpack.c.l.b16 %v311
    %v2067 = vunpack.c.h.b16 %v311
    %v2068 = vunpack.c.l.b16 %v312
    %v2069 = vunpack.c.h.b16 %v312
    %v2070 = vunpack.c.l.b16 %v313
    %v2071 = vunpack.c.h.b16 %v313
    %v2072 = vunpack.c.l.b16 %v314
    %v2073 = vunpack.c.h.b16 %v314
    %v2074 = vunpack.c.l.b16 %v315
    %v2075 = vunpack.c.h.b16 %v315
    %v2076 = vunpack.c.l.b16 %v316
    %v2077 = vunpack.c.h.b16 %v316
    %v2078 = vunpack.c.l.b16 %v317
    %v2079 = vunpack.c.h.b16 %v317
    %v2080 = vunpack.c.l.b16 %v318
    %v2081 = vunpack.c.h.b16 %v318
    %v2082 = vunpack.c.l.b16 %v319
    %v2083 = vunpack.c.h.b16 %v319
    %v2084 = vunpack.c.l.b16 %v320
    %v2085 = vunpack.c.h.b16 %v320
    %v2086 = vunpack.c.l.b16 %v321
    %v2087 = vunpack.c.h.b16 %v321
    %v2088 = vunpack.c.l.b16 %v322
    %v2089 = vunpack.c.h.b16 %v322
    %v2090 = vunpack.c.l.b16 %v323
    %v2091 = vunpack.c.h.b16 %v323
    %v2092 = vunpack.c.l.b16 %v324
    %v2093 = vunpack.c.h.b16 %v324
    %v2094 = vunpack.c.l.b16 %v325
    %v2095 = vunpack.c.h.b16 %v325
    %v2096 = vunpack.c.l.b16 %v326
    %v2097 = vunpack.c.h.b16 %v326
    %v2098 = vunpack.c.l.b16 %v327
    %v2099 = vunpack.c.h.b16 %v327
    %v2100 = vunpack.c.l.b16 %v328
    %v2101 = vunpack.c.h.b16 %v328
    %v2102 = vunpack.c.l.b16 %v329
    %v2103 = vunpack.c.h.b16 %v329
    %v2104 = vunpack.c.l.b16 %v330
    %v2105 = vunpack.c.h.b16 %v330
    %v2106 = vunpack.c.l.b16 %v331
    %v2107 = vunpack.c.h.b16 %v331
    %v2108 = vunpack.c.l.b16 %v332
    %v2109 = vunpack.c.h.b16 %v332
    %v2110 = vunpack.c.l.b16 %v333
    %v2111 = vunpack.c.h.b16 %v333
    %v2112 = vunpack.c.l.b16 %v334
    %v2113 = vunpack.c.h.b16 %v334
    %v2114 = vunpack.c.l.b16 %v335
    %v2115 = vunpack.c.h.b16 %v335
    %v2116 = vunpack.c.l.b16 %v336
    %v2117 = vunpack.c.h.b16 %v336
    %v2118 = vunpack.c.l.b16 %v337
    %v2119 = vunpack.c.h.b16 %v337
    %v2120 = vunpack.c.l.b16 %v338
    %v2121 = vunpack.c.h.b16 %v338
    %v2122 = vunpack.c.l.b16 %v339
    %v2123 = vunpack.c.h.b16 %v339
    %v2124 = vunpack.c.l.b16 %v340
    %v2125 = vunpack.c.h.b16 %v340
    %v2126 = vunpack.c.l.b16 %v341
    %v2127 = vunpack.c.h.b16 %v341
    %v2128 = vunpack.c.l.b16 %v342
    %v2129 = vunpack.c.h.b16 %v342
    %v2130 = vunpack.c.l.b16 %v343
    %v2131 = vunpack.c.h.b16 %v343
    %v2132 = vunpack.c.l.b16 %v344
    %v2133 = vunpack.c.h.b16 %v344
    %v2134 = vunpack.c.l.b16 %v345
    %v2135 = vunpack.c.h.b16 %v345
    %v2136 = vunpack.c.l.b16 %v346
    %v2137 = vunpack.c.h.b16 %v346
    %v2138 = vunpack.c.l.b16 %v347
    %v2139 = vunpack.c.h.b16 %v347
    %v2140 = vunpack.c.l.b16 %v348
    %v2141 = vunpack.c.h.b16 %v348
    %v2142 = vunpack.c.l.b16 %v349
    %v2143 = vunpack.c.h.b16 %v349
    %v2144 = vunpack.c.l.b16 %v350
    %v2145 = vunpack.c.h.b16 %v350
    %v2146 = vunpack.c.l.b16 %v351
    %v2147 = vunpack.c.h.b16 %v351
    %v2148 = vunpack.c.l.b16 %v352
    %v2149 = vunpack.c.h.b16 %v352
    %v2150 = vunpack.c.l.b16 %v353
    %v2151 = vunpack.c.h.b16 %v353
    %v2152 = vunpack.c.l.b16 %v354
    %v2153 = vunpack.c.h.b16 %v354
    %v2154 = vunpack.c.l.b16 %v355
    %v2155 = vunpack.c.h.b16 %v355
    %v2156 = vunpack.c.l.b16 %v356
    %v2157 = vunpack.c.h.b16 %v356
    %v2158 = vunpack.c.l.b16 %v357
    %v2159 = vunpack.c.h.b16 %v357
    %v2160 = vunpack.c.l.b16 %v358
    %v2161 = vunpack.c.h.b16 %v358
    %v2162 = vunpack.c.l.b16 %v359
    %v2163 = vunpack.c.h.b16 %v359
    %v2164 = vunpack.c.l.b16 %v360
    %v2165 = vunpack.c.h.b16 %v360
    %v2166 = vunpack.c.l.b16 %v361
    %v2167 = vunpack.c.h.b16 %v361
    %v2168 = vunpack.c.l.b16 %v362
    %v2169 = vunpack.c.h.b16 %v362
    %v2170 = vunpack.c.l.b16 %v363
    %v2171 = vunpack.c.h.b16 %v363
    %v2172 = vunpack.c.l.b16 %v364
    %v2173 = vunpack.c.h.b16 %v364
    %v2174 = vunpack.c.l.b16 %v365
    %v2175 = vunpack.c.h.b16 %v365
    %v2176 = vunpack.c.l.b16 %v366
    %v2177 = vunpack.c.h.b16 %v366
    %v2178 = vunpack.c.l.b16 %v367
    %v2179 = vunpack.c.h.b16 %v367
    %v2180 = vunpack.c.l.b16 %v368
    %v2181 = vunpack.c.h.b16 %v368
    %v2182 = vunpack.c.l.b16 %v369
    %v2183 = vunpack.c.h.b16 %v369
    %v2184 = vunpack.c.l.b16 %v370
    %v2185 = vunpack.c.h.b16 %v370
    %v2186 = vunpack.c.l.b16 %v371
    %v2187 = vunpack.c.h.b16 %v371
    %v2188 = vunpack.c.l.b16 %v372
    %v2189 = vunpack.c.h.b16 %v372
    %v2190 = vpack.c.b16 %v2004, %v1998
    %v2191 = vpack.c.b16 %v2005, %v1999
    %v2192 = vpack.c.b16 %v2006, %v2000
    %v2193 = vpack.c.b16 %v2007, %v2001
    %v2194 = vpack.c.b16 %v2008, %v2002
    %v2195 = vpack.c.b16 %v2009, %v2003
    %v2196 = vpack.c.b16 %v2016, %v2010
    %v2197 = vpack.c.b16 %v2017, %v2011
    %v2198 = vpack.c.b16 %v2018, %v2012
    %v2199 = vpack.c.b16 %v2019, %v2013
    %v2200 = vpack.c.b16 %v2020, %v2014
    %v2201 = vpack.c.b16 %v2021, %v2015
    %v2202 = vpack.c.b16 %v2028, %v2022
    %v2203 = vpack.c.b16 %v2029, %v2023
    %v2204 = vpack.c.b16 %v2030, %v2024
    %v2205 = vpack.c.b16 %v2031, %v2025
    %v2206 = vpack.c.b16 %v2032, %v2026
    %v2207 = vpack.c.b16 %v2033, %v2027
    %v2208 = vpack.c.b16 %v2040, %v2034
    %v2209 = vpack.c.b16 %v2041, %v2035
    %v2210 = vpack.c.b16 %v2042, %v2036
    %v2211 = vpack.c.b16 %v2043, %v2037
    %v2212 = vpack.c.b16 %v2044, %v2038
    %v2213 = vpack.c.b16 %v2045, %v2039
    %v2214 = vpack.c.b16 %v2052, %v2046
    %v2215 = vpack.c.b16 %v2053, %v2047
    %v2216 = vpack.c.b16 %v2054, %v2048
    %v2217 = vpack.c.b16 %v2055, %v2049
    %v2218 = vpack.c.b16 %v2056, %v2050
    %v2219 = vpack.c.b16 %v2057, %v2051
    %v2220 = vpack.c.b16 %v2064, %v2058
    %v2221 = vpack.c.b16 %v2065, %v2059
    %v2222 = vpack.c.b16 %v2066, %v2060
    %v2223 = vpack.c.b16 %v2067, %v2061
    %v2224 = vpack.c.b16 %v2068, %v2062
    %v2225 = vpack.c.b16 %v2069, %v2063
    %v2226 = vpack.c.b16 %v2076, %v2070
    %v2227 = vpack.c.b16 %v2077, %v2071
    %v2228 = vpack.c.b16 %v2078, %v2072
    %v2229 = vpack.c.b16 %v2079, %v2073
    %v2230 = vpack.c.b16 %v2080, %v2074
    %v2231 = vpack.c.b16 %v2081, %v2075
    %v2232 = vpack.c.b16 %v2088, %v2082
    %v2233 = vpack.c.b16 %v2089, %v2083
    %v2234 = vpack.c.b16 %v2090, %v2084
    %v2235 = vpack.c.b16 %v2091, %v2085
    %v2236 = vpack.c.b16 %v2092, %v2086
    %v2237 = vpack.c.b16 %v2093, %v2087
    %v2238 = vpack.c.b16 %v2100, %v2094
    %v2239 = vpack.c.b16 %v2101, %v2095
    %v2240 = vpack.c.b16 %v2102, %v2096
    %v2241 = vpack.c.b16 %v2103, %v2097
    %v2242 = vpack.c.b16 %v2104, %v2098
    %v2243 = vpack.c.b16 %v2105, %v2099
    %v2244 = vpack.c.b16 %v2112, %v2106
    %v2245 = vpack.c.b16 %v2113, %v2107
    %v2246 = vpack.c.b16 %v2114, %v2108
    %v2247 = vpack.c.b16 %v2115, %v2109
    %v2248 = vpack.c.b16 %v2116, %v2110
    %v2249 = vpack.c.b16 %v2117, %v2111
    %v2250 = vpack.c.b16 %v2124, %v2118
    %v2251 = vpack.c.b16 %v2125, %v2119
    %v2252 = vpack.c.b16 %v2126, %v2120
    %v2253 = vpack.c.b16 %v2127, %v2121
    %v2254 = vpack.c.b16 %v2128, %v2122
    %v2255 = vpack.c.b16 %v2129, %v2123
    %v2256 = vpack.c.b16 %v2136, %v2130
    %v2257 = vpack.c.b16 %v2137, %v2131
    %v2258 = vpack.c.b16 %v2138, %v2132
    %v2259 = vpack.c.b16 %v2139, %v2133
    %v2260 = vpack.c.b16 %v2140, %v2134
    %v2261 = vpack.c.b16 %v2141, %v2135
    %v2262 = vpack.c.b16 %v2148, %v2142
    %v2263 = vpack.c.b16 %v2149, %v2143
    %v2264 = vpack.c.b16 %v2150, %v2144
    %v2265 = vpack.c.b16 %v2151, %v2145
    %v2266 = vpack.c.b16 %v2152, %v2146
    %v2267 = vpack.c.b16 %v2153, %v2147
    %v2268 = vpack.c.b16 %v2160, %v2154
    %v2269 = vpack.c.b16 %v2161, %v2155
    %v2270 = vpack.c.b16 %v2162, %v2156
    %v2271 = vpack.c.b16 %v2163, %v2157
    %v2272 = vpack.c.b16 %v2164, %v2158
    %v2273 = vpack.c.b16 %v2165, %v2159
    %v2274 = vpack.c.b16 %v2172, %v2166
    %v2275 = vpack.c.b16 %v2173, %v2167
    %v2276 = vpack.c.b16 %v2174, %v2168
    %v2277 = vpack.c.b16 %v2175, %v2169
    %v2278 = vpack.c.b16 %v2176, %v2170
    %v2279 = vpack.c.b16 %v2177, %v2171
    %v2280 = vpack.c.b16 %v2184, %v2178
    %v2281 = vpack.c.b16 %v2185, %v2179
    %v2282 = vpack.c.b16 %v2186, %v2180
    %v2283 = vpack.c.b16 %v2187, %v2181
    %v2284 = vpack.c.b16 %v2188, %v2182
    %v2285 = vpack.c.b16 %v2189, %v2183
    %2382 = vmatprep.subr.bf16.mxu0 %v2233
    %2383 = vmatpush1.bf16.msra.mxu0 %v2232
    %2384 = vmatprep.subr.bf16.mxu0 %v2227
    %2385 = vmatpush1.bf16.msra.mxu0 %v2226
    %2386 = vmatprep.subr.bf16.mxu0 %v2221
    %2387 = vmatpush1.bf16.msra.mxu0 %v2220
    %2388 = vmatprep.subr.bf16.mxu0 %v2215
    %2389 = vmatpush1.bf16.msra.mxu0 %v2214
    %2390 = vmatprep.subr.bf16.mxu0 %v2209
    %2391 = vmatpush1.bf16.msra.mxu0 %v2208
    %2392 = vmatprep.subr.bf16.mxu0 %v2203
    %2393 = vmatpush1.bf16.msra.mxu0 %v2202
    %2394 = vmatprep.subr.bf16.mxu0 %v2197
    %2395 = vmatpush1.bf16.msra.mxu0 %v2196
    %2396 = vmatprep.subr.bf16.mxu0 %v2191
    %2397 = vmatpush1.bf16.msra.mxu0 %v2190
    %2398 = vmatprep.subr.bf16.mxu0 %v2281
    %2399 = vmatpush2.bf16.msra.mxu0 %v2280
    %2400 = vmatprep.subr.bf16.mxu0 %v2275
    %2401 = vmatpush2.bf16.msra.mxu0 %v2274
    %2402 = vmatprep.subr.bf16.mxu0 %v2269
    %2403 = vmatpush2.bf16.msra.mxu0 %v2268
    %2404 = vmatprep.subr.bf16.mxu0 %v2263
    %2405 = vmatpush2.bf16.msra.mxu0 %v2262
    %2406 = vmatprep.subr.bf16.mxu0 %v2257
    %2407 = vmatpush2.bf16.msra.mxu0 %v2256
    %2408 = vmatprep.subr.bf16.mxu0 %v2251
    %2409 = vmatpush2.bf16.msra.mxu0 %v2250
    %2410 = vmatprep.subr.bf16.mxu0 %v2245
    %2411 = vmatpush2.bf16.msra.mxu0 %v2244
    %2412 = vmatprep.subr.bf16.mxu0 %v2239
    %2413 = vmatpush2.bf16.msra.mxu0 %v2238
    %2414 = vmatprep.mubr.bf16.mxu0 0
    %2415 = vmatmul.mubr.bf16.gmra.mxu0 0
    %v2416 = vpop.f32.mrf.mxu0
    %v2417 = vadd.f32 0.0, %v2416
    %v2418 = vpop.f32.mrf.mxu0
    %v2419 = vadd.f32 0.0, %v2418
    %v2420 = vpop.f32.mrf.mxu0
    %v2421 = vpop.f32.mrf.mxu0
    %2422 = vdwg.mxu0
    %2423 = vmatprep.subr.bf16.mxu0 %v2235
    %2424 = vmatpush1.bf16.msra.mxu0 %v2234
    %2425 = vmatprep.subr.bf16.mxu0 %v2229
    %2426 = vmatpush1.bf16.msra.mxu0 %v2228
    %2427 = vmatprep.subr.bf16.mxu0 %v2223
    %2428 = vmatpush1.bf16.msra.mxu0 %v2222
    %2429 = vmatprep.subr.bf16.mxu0 %v2217
    %2430 = vmatpush1.bf16.msra.mxu0 %v2216
    %2431 = vmatprep.subr.bf16.mxu0 %v2211
    %2432 = vmatpush1.bf16.msra.mxu0 %v2210
    %2433 = vmatprep.subr.bf16.mxu0 %v2205
    %2434 = vmatpush1.bf16.msra.mxu0 %v2204
    %2435 = vmatprep.subr.bf16.mxu0 %v2199
    %2436 = vmatpush1.bf16.msra.mxu0 %v2198
    %2437 = vmatprep.subr.bf16.mxu0 %v2193
    %2438 = vmatpush1.bf16.msra.mxu0 %v2192
    %2439 = vmatprep.subr.bf16.mxu0 %v2283
    %2440 = vmatpush2.bf16.msra.mxu0 %v2282
    %2441 = vmatprep.subr.bf16.mxu0 %v2277
    %2442 = vmatpush2.bf16.msra.mxu0 %v2276
    %2443 = vmatprep.subr.bf16.mxu0 %v2271
    %2444 = vmatpush2.bf16.msra.mxu0 %v2270
    %2445 = vmatprep.subr.bf16.mxu0 %v2265
    %2446 = vmatpush2.bf16.msra.mxu0 %v2264
    %2447 = vmatprep.subr.bf16.mxu0 %v2259
    %2448 = vmatpush2.bf16.msra.mxu0 %v2258
    %2449 = vmatprep.subr.bf16.mxu0 %v2253
    %2450 = vmatpush2.bf16.msra.mxu0 %v2252
    %2451 = vmatprep.subr.bf16.mxu0 %v2247
    %2452 = vmatpush2.bf16.msra.mxu0 %v2246
    %2453 = vmatprep.subr.bf16.mxu0 %v2241
    %2454 = vmatpush2.bf16.msra.mxu0 %v2240
    %2455 = vmatprep.mubr.bf16.mxu0 0
    %2456 = vmatmul.mubr.bf16.gmra.mxu0 0
    %v2457 = vpop.f32.mrf.mxu0
    %v2458 = vadd.f32 0.0, %v2457
    %v2459 = vpop.f32.mrf.mxu0
    %v2460 = vadd.f32 0.0, %v2459
    %v2461 = vpop.f32.mrf.mxu0
    %v2462 = vpop.f32.mrf.mxu0
    %2463 = vdwg.mxu0
    %2464 = vmatprep.subr.bf16.mxu0 %v2237
    %2465 = vmatpush1.bf16.msra.mxu0 %v2236
    %2466 = vmatprep.subr.bf16.mxu0 %v2231
    %2467 = vmatpush1.bf16.msra.mxu0 %v2230
    %2468 = vmatprep.subr.bf16.mxu0 %v2225
    %2469 = vmatpush1.bf16.msra.mxu0 %v2224
    %2470 = vmatprep.subr.bf16.mxu0 %v2219
    %2471 = vmatpush1.bf16.msra.mxu0 %v2218
    %2472 = vmatprep.subr.bf16.mxu0 %v2213
    %2473 = vmatpush1.bf16.msra.mxu0 %v2212
    %2474 = vmatprep.subr.bf16.mxu0 %v2207
    %2475 = vmatpush1.bf16.msra.mxu0 %v2206
    %2476 = vmatprep.subr.bf16.mxu0 %v2201
    %2477 = vmatpush1.bf16.msra.mxu0 %v2200
    %2478 = vmatprep.subr.bf16.mxu0 %v2195
    %2479 = vmatpush1.bf16.msra.mxu0 %v2194
    %2480 = vmatprep.subr.bf16.mxu0 %v2285
    %2481 = vmatpush2.bf16.msra.mxu0 %v2284
    %2482 = vmatprep.subr.bf16.mxu0 %v2279
    %2483 = vmatpush2.bf16.msra.mxu0 %v2278
    %2484 = vmatprep.subr.bf16.mxu0 %v2273
    %2485 = vmatpush2.bf16.msra.mxu0 %v2272
    %2486 = vmatprep.subr.bf16.mxu0 %v2267
    %2487 = vmatpush2.bf16.msra.mxu0 %v2266
    %2488 = vmatprep.subr.bf16.mxu0 %v2261
    %2489 = vmatpush2.bf16.msra.mxu0 %v2260
    %2490 = vmatprep.subr.bf16.mxu0 %v2255
    %2491 = vmatpush2.bf16.msra.mxu0 %v2254
    %2492 = vmatprep.subr.bf16.mxu0 %v2249
    %2493 = vmatpush2.bf16.msra.mxu0 %v2248
    %2494 = vmatprep.subr.bf16.mxu0 %v2243
    %2495 = vmatpush2.bf16.msra.mxu0 %v2242
    %2496 = vmatprep.mubr.bf16.mxu0 0
    %2497 = vmatmul.mubr.bf16.gmra.mxu0 0
    %v2498 = vpop.f32.mrf.mxu0
    %v2499 = vadd.f32 0.0, %v2498
    %v2500 = vpop.f32.mrf.mxu0
    %v2501 = vadd.f32 0.0, %v2500
    %v2502 = vpop.f32.mrf.mxu0
    %v2503 = vpop.f32.mrf.mxu0
    %2504 = vdwg.mxu0
    %v2505 = vadd.f32 %v1814, %v2417
    %v2506 = vadd.f32 %v1816, %v2419
    %v2507 = vadd.f32 %v1855, %v2458
    %v2508 = vadd.f32 %v1857, %v2460
    %v2509 = vmul.f32 %v2505, 0.5
    %v2510 = vmul.f32 %v2506, 0.5
    %v2511 = vmul.f32 %v2507, 0.5
    %v2512 = vmul.f32 %v2508, 0.5
    %v2513 = vtanh.pop %v2509
    %v2514 = vtanh.pop %v2510
    %v2515 = vtanh.pop %v2511
    %v2516 = vtanh.pop %v2512
    %v2517 = vadd.f32 %v2513, 1.0
    %v2518 = vadd.f32 %v2514, 1.0
    %v2519 = vadd.f32 %v2515, 1.0
    %v2520 = vadd.f32 %v2516, 1.0
    %v2521 = vmul.f32 %v2517, 0.5
    %v2522 = vmul.f32 %v2518, 0.5
    %v2523 = vmul.f32 %v2519, 0.5
    %v2524 = vmul.f32 %v2520, 0.5
    %v2525 = vadd.f32 %v2499, %v461
    %v2526 = vadd.f32 %v2501, %v465
    %v2527 = vmul.f32 %v2521, %v2525
    %v2528 = vmul.f32 %v2522, %v2526
    %v2529 = vadd.f32 %v1896, %v2527
    %v2530 = vadd.f32 %v1898, %v2528
    %v2531 = vtanh.pop %v2529
    %v2532 = vtanh.pop %v2530
    %v2533 = vsub.f32 1.0, %v2523
    %v2534 = vsub.f32 1.0, %v2524
    %v2535 = vmul.f32 %v2533, %v2531
    %v2536 = vmul.f32 %v2534, %v2532
    %v2537 = vmul.f32 %v2523, 0.0
    %v2538 = vmul.f32 %v2524, 0.0
    %v2539 = vadd.f32 %v2535, %v2537
    %v2540 = vadd.f32 %v2536, %v2538
    %2541 = vst [vmem:[#allocation2] sm:$0x3] %v2539
    %2542 = vst [vmem:[#allocation2 + $0x8] sm:$0x3] %v2540
    %2543 = vmatprep.subr.bf16.mxu0 %v989
    %2544 = vmatpush1.bf16.msra.mxu0 %v988
    %2545 = vmatprep.subr.bf16.mxu0 %v983
    %2546 = vmatpush1.bf16.msra.mxu0 %v982
    %2547 = vmatprep.subr.bf16.mxu0 %v977
    %2548 = vmatpush1.bf16.msra.mxu0 %v976
    %2549 = vmatprep.subr.bf16.mxu0 %v971
    %2550 = vmatpush1.bf16.msra.mxu0 %v970
    %2551 = vmatprep.subr.bf16.mxu0 %v965
    %2552 = vmatpush1.bf16.msra.mxu0 %v964
    %2553 = vmatprep.subr.bf16.mxu0 %v959
    %2554 = vmatpush1.bf16.msra.mxu0 %v958
    %2555 = vmatprep.subr.bf16.mxu0 %v953
    %2556 = vmatpush1.bf16.msra.mxu0 %v952
    %2557 = vmatprep.subr.bf16.mxu0 %v947
    %2558 = vmatpush1.bf16.msra.mxu0 %v946
    %2559 = vmatprep.subr.bf16.mxu0 %v1037
    %2560 = vmatpush2.bf16.msra.mxu0 %v1036
    %2561 = vmatprep.subr.bf16.mxu0 %v1031
    %2562 = vmatpush2.bf16.msra.mxu0 %v1030
    %2563 = vmatprep.subr.bf16.mxu0 %v1025
    %2564 = vmatpush2.bf16.msra.mxu0 %v1024
    %2565 = vmatprep.subr.bf16.mxu0 %v1019
    %2566 = vmatpush2.bf16.msra.mxu0 %v1018
    %2567 = vmatprep.subr.bf16.mxu0 %v1013
    %2568 = vmatpush2.bf16.msra.mxu0 %v1012
    %2569 = vmatprep.subr.bf16.mxu0 %v1007
    %2570 = vmatpush2.bf16.msra.mxu0 %v1006
    %2571 = vmatprep.subr.bf16.mxu0 %v1001
    %2572 = vmatpush2.bf16.msra.mxu0 %v1000
    %2573 = vmatprep.subr.bf16.mxu0 %v995
    %2574 = vmatpush2.bf16.msra.mxu0 %v994
    %2575 = vmatprep.mubr.bf16.mxu0 %v1298
    %2576 = vmatmul.mubr.bf16.gmra.mxu0 %v1297
    %v2577 = vpop.f32.mrf.mxu0
    %v2578 = vadd.f32 0.0, %v2577
    %v2579 = vpop.f32.mrf.mxu0
    %v2580 = vadd.f32 0.0, %v2579
    %v2581 = vpop.f32.mrf.mxu0
    %v2582 = vpop.f32.mrf.mxu0
    %2583 = vdwg.mxu0
    %2584 = vmatprep.subr.bf16.mxu0 %v991
    %2585 = vmatpush1.bf16.msra.mxu0 %v990
    %2586 = vmatprep.subr.bf16.mxu0 %v985
    %2587 = vmatpush1.bf16.msra.mxu0 %v984
    %2588 = vmatprep.subr.bf16.mxu0 %v979
    %2589 = vmatpush1.bf16.msra.mxu0 %v978
    %2590 = vmatprep.subr.bf16.mxu0 %v973
    %2591 = vmatpush1.bf16.msra.mxu0 %v972
    %2592 = vmatprep.subr.bf16.mxu0 %v967
    %2593 = vmatpush1.bf16.msra.mxu0 %v966
    %2594 = vmatprep.subr.bf16.mxu0 %v961
    %2595 = vmatpush1.bf16.msra.mxu0 %v960
    %2596 = vmatprep.subr.bf16.mxu0 %v955
    %2597 = vmatpush1.bf16.msra.mxu0 %v954
    %2598 = vmatprep.subr.bf16.mxu0 %v949
    %2599 = vmatpush1.bf16.msra.mxu0 %v948
    %2600 = vmatprep.subr.bf16.mxu0 %v1039
    %2601 = vmatpush2.bf16.msra.mxu0 %v1038
    %2602 = vmatprep.subr.bf16.mxu0 %v1033
    %2603 = vmatpush2.bf16.msra.mxu0 %v1032
    %2604 = vmatprep.subr.bf16.mxu0 %v1027
    %2605 = vmatpush2.bf16.msra.mxu0 %v1026
    %2606 = vmatprep.subr.bf16.mxu0 %v1021
    %2607 = vmatpush2.bf16.msra.mxu0 %v1020
    %2608 = vmatprep.subr.bf16.mxu0 %v1015
    %2609 = vmatpush2.bf16.msra.mxu0 %v1014
    %2610 = vmatprep.subr.bf16.mxu0 %v1009
    %2611 = vmatpush2.bf16.msra.mxu0 %v1008
    %2612 = vmatprep.subr.bf16.mxu0 %v1003
    %2613 = vmatpush2.bf16.msra.mxu0 %v1002
    %2614 = vmatprep.subr.bf16.mxu0 %v997
    %2615 = vmatpush2.bf16.msra.mxu0 %v996
    %2616 = vmatprep.mubr.bf16.mxu0 %v1298
    %2617 = vmatmul.mubr.bf16.gmra.mxu0 %v1297
    %v2618 = vpop.f32.mrf.mxu0
    %v2619 = vadd.f32 0.0, %v2618
    %v2620 = vpop.f32.mrf.mxu0
    %v2621 = vadd.f32 0.0, %v2620
    %v2622 = vpop.f32.mrf.mxu0
    %v2623 = vpop.f32.mrf.mxu0
    %2624 = vdwg.mxu0
    %2625 = vmatprep.subr.bf16.mxu0 %v993
    %2626 = vmatpush1.bf16.msra.mxu0 %v992
    %2627 = vmatprep.subr.bf16.mxu0 %v987
    %2628 = vmatpush1.bf16.msra.mxu0 %v986
    %2629 = vmatprep.subr.bf16.mxu0 %v981
    %2630 = vmatpush1.bf16.msra.mxu0 %v980
    %2631 = vmatprep.subr.bf16.mxu0 %v975
    %2632 = vmatpush1.bf16.msra.mxu0 %v974
    %2633 = vmatprep.subr.bf16.mxu0 %v969
    %2634 = vmatpush1.bf16.msra.mxu0 %v968
    %2635 = vmatprep.subr.bf16.mxu0 %v963
    %2636 = vmatpush1.bf16.msra.mxu0 %v962
    %2637 = vmatprep.subr.bf16.mxu0 %v957
    %2638 = vmatpush1.bf16.msra.mxu0 %v956
    %2639 = vmatprep.subr.bf16.mxu0 %v951
    %2640 = vmatpush1.bf16.msra.mxu0 %v950
    %2641 = vmatprep.subr.bf16.mxu0 %v1041
    %2642 = vmatpush2.bf16.msra.mxu0 %v1040
    %2643 = vmatprep.subr.bf16.mxu0 %v1035
    %2644 = vmatpush2.bf16.msra.mxu0 %v1034
    %2645 = vmatprep.subr.bf16.mxu0 %v1029
    %2646 = vmatpush2.bf16.msra.mxu0 %v1028
    %2647 = vmatprep.subr.bf16.mxu0 %v1023
    %2648 = vmatpush2.bf16.msra.mxu0 %v1022
    %2649 = vmatprep.subr.bf16.mxu0 %v1017
    %2650 = vmatpush2.bf16.msra.mxu0 %v1016
    %2651 = vmatprep.subr.bf16.mxu0 %v1011
    %2652 = vmatpush2.bf16.msra.mxu0 %v1010
    %2653 = vmatprep.subr.bf16.mxu0 %v1005
    %2654 = vmatpush2.bf16.msra.mxu0 %v1004
    %2655 = vmatprep.subr.bf16.mxu0 %v999
    %2656 = vmatpush2.bf16.msra.mxu0 %v998
    %2657 = vmatprep.mubr.bf16.mxu0 %v1298
    %2658 = vmatmul.mubr.bf16.gmra.mxu0 %v1297
    %v2659 = vpop.f32.mrf.mxu0
    %v2660 = vadd.f32 0.0, %v2659
    %v2661 = vpop.f32.mrf.mxu0
    %v2662 = vadd.f32 0.0, %v2661
    %v2663 = vpop.f32.mrf.mxu0
    %v2664 = vpop.f32.mrf.mxu0
    %2665 = vdwg.mxu0
    %v2666 = vadd.f32 %v570, %v2578
    %v2667 = vadd.f32 %v572, %v2580
    %v2668 = vadd.f32 %v611, %v2619
    %v2669 = vadd.f32 %v613, %v2621
    %v2670 = vmul.f32 %v2666, 0.5
    %v2671 = vmul.f32 %v2667, 0.5
    %v2672 = vmul.f32 %v2668, 0.5
    %v2673 = vmul.f32 %v2669, 0.5
    %v2674 = vtanh.pop %v2670
    %v2675 = vtanh.pop %v2671
    %v2676 = vtanh.pop %v2672
    %v2677 = vtanh.pop %v2673
    %v2678 = vadd.f32 %v2674, 1.0
    %v2679 = vadd.f32 %v2675, 1.0
    %v2680 = vadd.f32 %v2676, 1.0
    %v2681 = vadd.f32 %v2677, 1.0
    %v2682 = vmul.f32 %v2678, 0.5
    %v2683 = vmul.f32 %v2679, 0.5
    %v2684 = vmul.f32 %v2680, 0.5
    %v2685 = vmul.f32 %v2681, 0.5
    %v2686 = vadd.f32 %v2660, %v448
    %v2687 = vadd.f32 %v2662, %v452
    %v2688 = vmul.f32 %v2682, %v2686
    %v2689 = vmul.f32 %v2683, %v2687
    %v2690 = vadd.f32 %v652, %v2688
    %v2691 = vadd.f32 %v654, %v2689
    %v2692 = vtanh.pop %v2690
    %v2693 = vtanh.pop %v2691
    %v2694 = vsub.f32 1.0, %v2684
    %v2695 = vsub.f32 1.0, %v2685
    %v2696 = vmul.f32 %v2694, %v2692
    %v2697 = vmul.f32 %v2695, %v2693
    %v2698 = vmul.f32 %v2684, %v1295
    %v2699 = vmul.f32 %v2685, %v1296
    %v2700 = vadd.f32 %v2696, %v2698
    %v2701 = vadd.f32 %v2697, %v2699
    %v2702 = vpack.c.bf16 %v2700, %v2700
    %v2703 = vpack.c.bf16 %v2701, %v2701
    %2704 = vmatprep.subr.bf16.mxu0 %v1630
    %2705 = vmatpush1.bf16.msra.mxu0 %v1629
    %2706 = vmatprep.subr.bf16.mxu0 %v1624
    %2707 = vmatpush1.bf16.msra.mxu0 %v1623
    %2708 = vmatprep.subr.bf16.mxu0 %v1618
    %2709 = vmatpush1.bf16.msra.mxu0 %v1617
    %2710 = vmatprep.subr.bf16.mxu0 %v1612
    %2711 = vmatpush1.bf16.msra.mxu0 %v1611
    %2712 = vmatprep.subr.bf16.mxu0 %v1606
    %2713 = vmatpush1.bf16.msra.mxu0 %v1605
    %2714 = vmatprep.subr.bf16.mxu0 %v1600
    %2715 = vmatpush1.bf16.msra.mxu0 %v1599
    %2716 = vmatprep.subr.bf16.mxu0 %v1594
    %2717 = vmatpush1.bf16.msra.mxu0 %v1593
    %2718 = vmatprep.subr.bf16.mxu0 %v1588
    %2719 = vmatpush1.bf16.msra.mxu0 %v1587
    %2720 = vmatprep.subr.bf16.mxu0 %v1678
    %2721 = vmatpush2.bf16.msra.mxu0 %v1677
    %2722 = vmatprep.subr.bf16.mxu0 %v1672
    %2723 = vmatpush2.bf16.msra.mxu0 %v1671
    %2724 = vmatprep.subr.bf16.mxu0 %v1666
    %2725 = vmatpush2.bf16.msra.mxu0 %v1665
    %2726 = vmatprep.subr.bf16.mxu0 %v1660
    %2727 = vmatpush2.bf16.msra.mxu0 %v1659
    %2728 = vmatprep.subr.bf16.mxu0 %v1654
    %2729 = vmatpush2.bf16.msra.mxu0 %v1653
    %2730 = vmatprep.subr.bf16.mxu0 %v1648
    %2731 = vmatpush2.bf16.msra.mxu0 %v1647
    %2732 = vmatprep.subr.bf16.mxu0 %v1642
    %2733 = vmatpush2.bf16.msra.mxu0 %v1641
    %2734 = vmatprep.subr.bf16.mxu0 %v1636
    %2735 = vmatpush2.bf16.msra.mxu0 %v1635
    %2736 = vmatprep.mubr.bf16.mxu0 %v2703
    %2737 = vmatmul.mubr.bf16.gmra.mxu0 %v2702
    %v2738 = vpop.f32.mrf.mxu0
    %v2739 = vadd.f32 %v415, %v2738
    %v2740 = vpop.f32.mrf.mxu0
    %v2741 = vadd.f32 %v419, %v2740
    %v2742 = vpop.f32.mrf.mxu0
    %v2743 = vpop.f32.mrf.mxu0
    %2744 = vdwg.mxu0
    %2745 = vmatprep.subr.bf16.mxu0 %v1632
    %2746 = vmatpush1.bf16.msra.mxu0 %v1631
    %2747 = vmatprep.subr.bf16.mxu0 %v1626
    %2748 = vmatpush1.bf16.msra.mxu0 %v1625
    %2749 = vmatprep.subr.bf16.mxu0 %v1620
    %2750 = vmatpush1.bf16.msra.mxu0 %v1619
    %2751 = vmatprep.subr.bf16.mxu0 %v1614
    %2752 = vmatpush1.bf16.msra.mxu0 %v1613
    %2753 = vmatprep.subr.bf16.mxu0 %v1608
    %2754 = vmatpush1.bf16.msra.mxu0 %v1607
    %2755 = vmatprep.subr.bf16.mxu0 %v1602
    %2756 = vmatpush1.bf16.msra.mxu0 %v1601
    %2757 = vmatprep.subr.bf16.mxu0 %v1596
    %2758 = vmatpush1.bf16.msra.mxu0 %v1595
    %2759 = vmatprep.subr.bf16.mxu0 %v1590
    %2760 = vmatpush1.bf16.msra.mxu0 %v1589
    %2761 = vmatprep.subr.bf16.mxu0 %v1680
    %2762 = vmatpush2.bf16.msra.mxu0 %v1679
    %2763 = vmatprep.subr.bf16.mxu0 %v1674
    %2764 = vmatpush2.bf16.msra.mxu0 %v1673
    %2765 = vmatprep.subr.bf16.mxu0 %v1668
    %2766 = vmatpush2.bf16.msra.mxu0 %v1667
    %2767 = vmatprep.subr.bf16.mxu0 %v1662
    %2768 = vmatpush2.bf16.msra.mxu0 %v1661
    %2769 = vmatprep.subr.bf16.mxu0 %v1656
    %2770 = vmatpush2.bf16.msra.mxu0 %v1655
    %2771 = vmatprep.subr.bf16.mxu0 %v1650
    %2772 = vmatpush2.bf16.msra.mxu0 %v1649
    %2773 = vmatprep.subr.bf16.mxu0 %v1644
    %2774 = vmatpush2.bf16.msra.mxu0 %v1643
    %2775 = vmatprep.subr.bf16.mxu0 %v1638
    %2776 = vmatpush2.bf16.msra.mxu0 %v1637
    %2777 = vmatprep.mubr.bf16.mxu0 %v2703
    %2778 = vmatmul.mubr.bf16.gmra.mxu0 %v2702
    %v2779 = vpop.f32.mrf.mxu0
    %v2780 = vadd.f32 %v423, %v2779
    %v2781 = vpop.f32.mrf.mxu0
    %v2782 = vadd.f32 %v427, %v2781
    %v2783 = vpop.f32.mrf.mxu0
    %v2784 = vpop.f32.mrf.mxu0
    %2785 = vdwg.mxu0
    %2786 = vmatprep.subr.bf16.mxu0 %v1634
    %2787 = vmatpush1.bf16.msra.mxu0 %v1633
    %2788 = vmatprep.subr.bf16.mxu0 %v1628
    %2789 = vmatpush1.bf16.msra.mxu0 %v1627
    %2790 = vmatprep.subr.bf16.mxu0 %v1622
    %2791 = vmatpush1.bf16.msra.mxu0 %v1621
    %2792 = vmatprep.subr.bf16.mxu0 %v1616
    %2793 = vmatpush1.bf16.msra.mxu0 %v1615
    %2794 = vmatprep.subr.bf16.mxu0 %v1610
    %2795 = vmatpush1.bf16.msra.mxu0 %v1609
    %2796 = vmatprep.subr.bf16.mxu0 %v1604
    %2797 = vmatpush1.bf16.msra.mxu0 %v1603
    %2798 = vmatprep.subr.bf16.mxu0 %v1598
    %2799 = vmatpush1.bf16.msra.mxu0 %v1597
    %2800 = vmatprep.subr.bf16.mxu0 %v1592
    %2801 = vmatpush1.bf16.msra.mxu0 %v1591
    %2802 = vmatprep.subr.bf16.mxu0 %v1682
    %2803 = vmatpush2.bf16.msra.mxu0 %v1681
    %2804 = vmatprep.subr.bf16.mxu0 %v1676
    %2805 = vmatpush2.bf16.msra.mxu0 %v1675
    %2806 = vmatprep.subr.bf16.mxu0 %v1670
    %2807 = vmatpush2.bf16.msra.mxu0 %v1669
    %2808 = vmatprep.subr.bf16.mxu0 %v1664
    %2809 = vmatpush2.bf16.msra.mxu0 %v1663
    %2810 = vmatprep.subr.bf16.mxu0 %v1658
    %2811 = vmatpush2.bf16.msra.mxu0 %v1657
    %2812 = vmatprep.subr.bf16.mxu0 %v1652
    %2813 = vmatpush2.bf16.msra.mxu0 %v1651
    %2814 = vmatprep.subr.bf16.mxu0 %v1646
    %2815 = vmatpush2.bf16.msra.mxu0 %v1645
    %2816 = vmatprep.subr.bf16.mxu0 %v1640
    %2817 = vmatpush2.bf16.msra.mxu0 %v1639
    %2818 = vmatprep.mubr.bf16.mxu0 %v2703
    %2819 = vmatmul.mubr.bf16.gmra.mxu0 %v2702
    %v2820 = vpop.f32.mrf.mxu0
    %v2821 = vadd.f32 %v431, %v2820
    %v2822 = vpop.f32.mrf.mxu0
    %v2823 = vadd.f32 %v435, %v2822
    %v2824 = vpop.f32.mrf.mxu0
    %v2825 = vpop.f32.mrf.mxu0
    %2826 = vdwg.mxu0
    %v2827 = vpack.c.bf16 %v2539, %v2539
    %v2828 = vpack.c.bf16 %v2540, %v2540
    %2829 = vmatprep.subr.bf16.mxu0 %v2233
    %2830 = vmatpush1.bf16.msra.mxu0 %v2232
    %2831 = vmatprep.subr.bf16.mxu0 %v2227
    %2832 = vmatpush1.bf16.msra.mxu0 %v2226
    %2833 = vmatprep.subr.bf16.mxu0 %v2221
    %2834 = vmatpush1.bf16.msra.mxu0 %v2220
    %2835 = vmatprep.subr.bf16.mxu0 %v2215
    %2836 = vmatpush1.bf16.msra.mxu0 %v2214
    %2837 = vmatprep.subr.bf16.mxu0 %v2209
    %2838 = vmatpush1.bf16.msra.mxu0 %v2208
    %2839 = vmatprep.subr.bf16.mxu0 %v2203
    %2840 = vmatpush1.bf16.msra.mxu0 %v2202
    %2841 = vmatprep.subr.bf16.mxu0 %v2197
    %2842 = vmatpush1.bf16.msra.mxu0 %v2196
    %2843 = vmatprep.subr.bf16.mxu0 %v2191
    %2844 = vmatpush1.bf16.msra.mxu0 %v2190
    %2845 = vmatprep.subr.bf16.mxu0 %v2281
    %2846 = vmatpush2.bf16.msra.mxu0 %v2280
    %2847 = vmatprep.subr.bf16.mxu0 %v2275
    %2848 = vmatpush2.bf16.msra.mxu0 %v2274
    %2849 = vmatprep.subr.bf16.mxu0 %v2269
    %2850 = vmatpush2.bf16.msra.mxu0 %v2268
    %2851 = vmatprep.subr.bf16.mxu0 %v2263
    %2852 = vmatpush2.bf16.msra.mxu0 %v2262
    %2853 = vmatprep.subr.bf16.mxu0 %v2257
    %2854 = vmatpush2.bf16.msra.mxu0 %v2256
    %2855 = vmatprep.subr.bf16.mxu0 %v2251
    %2856 = vmatpush2.bf16.msra.mxu0 %v2250
    %2857 = vmatprep.subr.bf16.mxu0 %v2245
    %2858 = vmatpush2.bf16.msra.mxu0 %v2244
    %2859 = vmatprep.subr.bf16.mxu0 %v2239
    %2860 = vmatpush2.bf16.msra.mxu0 %v2238
    %2861 = vmatprep.mubr.bf16.mxu0 %v2828
    %2862 = vmatmul.mubr.bf16.gmra.mxu0 %v2827
    %v2863 = vpop.f32.mrf.mxu0
    %v2864 = vadd.f32 0.0, %v2863
    %v2865 = vpop.f32.mrf.mxu0
    %v2866 = vadd.f32 0.0, %v2865
    %v2867 = vpop.f32.mrf.mxu0
    %v2868 = vpop.f32.mrf.mxu0
    %2869 = vdwg.mxu0
    %2870 = vmatprep.subr.bf16.mxu0 %v2235
    %2871 = vmatpush1.bf16.msra.mxu0 %v2234
    %2872 = vmatprep.subr.bf16.mxu0 %v2229
    %2873 = vmatpush1.bf16.msra.mxu0 %v2228
    %2874 = vmatprep.subr.bf16.mxu0 %v2223
    %2875 = vmatpush1.bf16.msra.mxu0 %v2222
    %2876 = vmatprep.subr.bf16.mxu0 %v2217
    %2877 = vmatpush1.bf16.msra.mxu0 %v2216
    %2878 = vmatprep.subr.bf16.mxu0 %v2211
    %2879 = vmatpush1.bf16.msra.mxu0 %v2210
    %2880 = vmatprep.subr.bf16.mxu0 %v2205
    %2881 = vmatpush1.bf16.msra.mxu0 %v2204
    %2882 = vmatprep.subr.bf16.mxu0 %v2199
    %2883 = vmatpush1.bf16.msra.mxu0 %v2198
    %2884 = vmatprep.subr.bf16.mxu0 %v2193
    %2885 = vmatpush1.bf16.msra.mxu0 %v2192
    %2886 = vmatprep.subr.bf16.mxu0 %v2283
    %2887 = vmatpush2.bf16.msra.mxu0 %v2282
    %2888 = vmatprep.subr.bf16.mxu0 %v2277
    %2889 = vmatpush2.bf16.msra.mxu0 %v2276
    %2890 = vmatprep.subr.bf16.mxu0 %v2271
    %2891 = vmatpush2.bf16.msra.mxu0 %v2270
    %2892 = vmatprep.subr.bf16.mxu0 %v2265
    %2893 = vmatpush2.bf16.msra.mxu0 %v2264
    %2894 = vmatprep.subr.bf16.mxu0 %v2259
    %2895 = vmatpush2.bf16.msra.mxu0 %v2258
    %2896 = vmatprep.subr.bf16.mxu0 %v2253
    %2897 = vmatpush2.bf16.msra.mxu0 %v2252
    %2898 = vmatprep.subr.bf16.mxu0 %v2247
    %2899 = vmatpush2.bf16.msra.mxu0 %v2246
    %2900 = vmatprep.subr.bf16.mxu0 %v2241
    %2901 = vmatpush2.bf16.msra.mxu0 %v2240
    %2902 = vmatprep.mubr.bf16.mxu0 %v2828
    %2903 = vmatmul.mubr.bf16.gmra.mxu0 %v2827
    %v2904 = vpop.f32.mrf.mxu0
    %v2905 = vadd.f32 0.0, %v2904
    %v2906 = vpop.f32.mrf.mxu0
    %v2907 = vadd.f32 0.0, %v2906
    %v2908 = vpop.f32.mrf.mxu0
    %v2909 = vpop.f32.mrf.mxu0
    %2910 = vdwg.mxu0
    %2911 = vmatprep.subr.bf16.mxu0 %v2237
    %2912 = vmatpush1.bf16.msra.mxu0 %v2236
    %2913 = vmatprep.subr.bf16.mxu0 %v2231
    %2914 = vmatpush1.bf16.msra.mxu0 %v2230
    %2915 = vmatprep.subr.bf16.mxu0 %v2225
    %2916 = vmatpush1.bf16.msra.mxu0 %v2224
    %2917 = vmatprep.subr.bf16.mxu0 %v2219
    %2918 = vmatpush1.bf16.msra.mxu0 %v2218
    %2919 = vmatprep.subr.bf16.mxu0 %v2213
    %2920 = vmatpush1.bf16.msra.mxu0 %v2212
    %2921 = vmatprep.subr.bf16.mxu0 %v2207
    %2922 = vmatpush1.bf16.msra.mxu0 %v2206
    %2923 = vmatprep.subr.bf16.mxu0 %v2201
    %2924 = vmatpush1.bf16.msra.mxu0 %v2200
    %2925 = vmatprep.subr.bf16.mxu0 %v2195
    %2926 = vmatpush1.bf16.msra.mxu0 %v2194
    %2927 = vmatprep.subr.bf16.mxu0 %v2285
    %2928 = vmatpush2.bf16.msra.mxu0 %v2284
    %2929 = vmatprep.subr.bf16.mxu0 %v2279
    %2930 = vmatpush2.bf16.msra.mxu0 %v2278
    %2931 = vmatprep.subr.bf16.mxu0 %v2273
    %2932 = vmatpush2.bf16.msra.mxu0 %v2272
    %2933 = vmatprep.subr.bf16.mxu0 %v2267
    %2934 = vmatpush2.bf16.msra.mxu0 %v2266
    %2935 = vmatprep.subr.bf16.mxu0 %v2261
    %2936 = vmatpush2.bf16.msra.mxu0 %v2260
    %2937 = vmatprep.subr.bf16.mxu0 %v2255
    %2938 = vmatpush2.bf16.msra.mxu0 %v2254
    %2939 = vmatprep.subr.bf16.mxu0 %v2249
    %2940 = vmatpush2.bf16.msra.mxu0 %v2248
    %2941 = vmatprep.subr.bf16.mxu0 %v2243
    %2942 = vmatpush2.bf16.msra.mxu0 %v2242
    %2943 = vmatprep.mubr.bf16.mxu0 %v2828
    %2944 = vmatmul.mubr.bf16.gmra.mxu0 %v2827
    %v2945 = vpop.f32.mrf.mxu0
    %v2946 = vadd.f32 0.0, %v2945
    %v2947 = vpop.f32.mrf.mxu0
    %v2948 = vadd.f32 0.0, %v2947
    %v2949 = vpop.f32.mrf.mxu0
    %v2950 = vpop.f32.mrf.mxu0
    %2951 = vdwg.mxu0
    %v2952 = vadd.f32 %v2739, %v2864
    %v2953 = vadd.f32 %v2741, %v2866
    %v2954 = vadd.f32 %v2780, %v2905
    %v2955 = vadd.f32 %v2782, %v2907
    %v2956 = vmul.f32 %v2952, 0.5
    %v2957 = vmul.f32 %v2953, 0.5
    %v2958 = vmul.f32 %v2954, 0.5
    %v2959 = vmul.f32 %v2955, 0.5
    %v2960 = vtanh.pop %v2956
    %v2961 = vtanh.pop %v2957
    %v2962 = vtanh.pop %v2958
    %v2963 = vtanh.pop %v2959
    %v2964 = vadd.f32 %v2960, 1.0
    %v2965 = vadd.f32 %v2961, 1.0
    %v2966 = vadd.f32 %v2962, 1.0
    %v2967 = vadd.f32 %v2963, 1.0
    %v2968 = vmul.f32 %v2964, 0.5
    %v2969 = vmul.f32 %v2965, 0.5
    %v2970 = vmul.f32 %v2966, 0.5
    %v2971 = vmul.f32 %v2967, 0.5
    %v2972 = vadd.f32 %v2946, %v461
    %v2973 = vadd.f32 %v2948, %v465
    %v2974 = vmul.f32 %v2968, %v2972
    %v2975 = vmul.f32 %v2969, %v2973
    %v2976 = vadd.f32 %v2821, %v2974
    %v2977 = vadd.f32 %v2823, %v2975
    %v2978 = vtanh.pop %v2976
    %v2979 = vtanh.pop %v2977
    %v2980 = vsub.f32 1.0, %v2970
    %v2981 = vsub.f32 1.0, %v2971
    %v2982 = vmul.f32 %v2980, %v2978
    %v2983 = vmul.f32 %v2981, %v2979
    %v2984 = vmul.f32 %v2970, %v2539
    %v2985 = vmul.f32 %v2971, %v2540
    %v2986 = vadd.f32 %v2982, %v2984
    %v2987 = vadd.f32 %v2983, %v2985
    %v2990 = vrot.slane %v2986, 6
    %v2991 = vrot.slane %v2987, 6
    %2994 = vst [vmem:[#allocation2] sm:$0xc] %v2990
    %2995 = vst [vmem:[#allocation2 + $0x8] sm:$0xc] %v2991
    %2996 = vmatprep.subr.bf16.mxu0 %v989
    %2997 = vmatpush1.bf16.msra.mxu0 %v988
    %2998 = vmatprep.subr.bf16.mxu0 %v983
    %2999 = vmatpush1.bf16.msra.mxu0 %v982
    %3000 = vmatprep.subr.bf16.mxu0 %v977
    %3001 = vmatpush1.bf16.msra.mxu0 %v976
    %3002 = vmatprep.subr.bf16.mxu0 %v971
    %3003 = vmatpush1.bf16.msra.mxu0 %v970
    %3004 = vmatprep.subr.bf16.mxu0 %v965
    %3005 = vmatpush1.bf16.msra.mxu0 %v964
    %3006 = vmatprep.subr.bf16.mxu0 %v959
    %3007 = vmatpush1.bf16.msra.mxu0 %v958
    %3008 = vmatprep.subr.bf16.mxu0 %v953
    %3009 = vmatpush1.bf16.msra.mxu0 %v952
    %3010 = vmatprep.subr.bf16.mxu0 %v947
    %3011 = vmatpush1.bf16.msra.mxu0 %v946
    %3012 = vmatprep.subr.bf16.mxu0 %v1037
    %3013 = vmatpush2.bf16.msra.mxu0 %v1036
    %3014 = vmatprep.subr.bf16.mxu0 %v1031
    %3015 = vmatpush2.bf16.msra.mxu0 %v1030
    %3016 = vmatprep.subr.bf16.mxu0 %v1025
    %3017 = vmatpush2.bf16.msra.mxu0 %v1024
    %3018 = vmatprep.subr.bf16.mxu0 %v1019
    %3019 = vmatpush2.bf16.msra.mxu0 %v1018
    %3020 = vmatprep.subr.bf16.mxu0 %v1013
    %3021 = vmatpush2.bf16.msra.mxu0 %v1012
    %3022 = vmatprep.subr.bf16.mxu0 %v1007
    %3023 = vmatpush2.bf16.msra.mxu0 %v1006
    %3024 = vmatprep.subr.bf16.mxu0 %v1001
    %3025 = vmatpush2.bf16.msra.mxu0 %v1000
    %3026 = vmatprep.subr.bf16.mxu0 %v995
    %3027 = vmatpush2.bf16.msra.mxu0 %v994
    %3028 = vmatprep.mubr.bf16.mxu0 %v2703
    %3029 = vmatmul.mubr.bf16.gmra.mxu0 %v2702
    %v3030 = vpop.f32.mrf.mxu0
    %v3031 = vadd.f32 0.0, %v3030
    %v3032 = vpop.f32.mrf.mxu0
    %v3033 = vadd.f32 0.0, %v3032
    %v3034 = vpop.f32.mrf.mxu0
    %v3035 = vpop.f32.mrf.mxu0
    %3036 = vdwg.mxu0
    %3037 = vmatprep.subr.bf16.mxu0 %v991
    %3038 = vmatpush1.bf16.msra.mxu0 %v990
    %3039 = vmatprep.subr.bf16.mxu0 %v985
    %3040 = vmatpush1.bf16.msra.mxu0 %v984
    %3041 = vmatprep.subr.bf16.mxu0 %v979
    %3042 = vmatpush1.bf16.msra.mxu0 %v978
    %3043 = vmatprep.subr.bf16.mxu0 %v973
    %3044 = vmatpush1.bf16.msra.mxu0 %v972
    %3045 = vmatprep.subr.bf16.mxu0 %v967
    %3046 = vmatpush1.bf16.msra.mxu0 %v966
    %3047 = vmatprep.subr.bf16.mxu0 %v961
    %3048 = vmatpush1.bf16.msra.mxu0 %v960
    %3049 = vmatprep.subr.bf16.mxu0 %v955
    %3050 = vmatpush1.bf16.msra.mxu0 %v954
    %3051 = vmatprep.subr.bf16.mxu0 %v949
    %3052 = vmatpush1.bf16.msra.mxu0 %v948
    %3053 = vmatprep.subr.bf16.mxu0 %v1039
    %3054 = vmatpush2.bf16.msra.mxu0 %v1038
    %3055 = vmatprep.subr.bf16.mxu0 %v1033
    %3056 = vmatpush2.bf16.msra.mxu0 %v1032
    %3057 = vmatprep.subr.bf16.mxu0 %v1027
    %3058 = vmatpush2.bf16.msra.mxu0 %v1026
    %3059 = vmatprep.subr.bf16.mxu0 %v1021
    %3060 = vmatpush2.bf16.msra.mxu0 %v1020
    %3061 = vmatprep.subr.bf16.mxu0 %v1015
    %3062 = vmatpush2.bf16.msra.mxu0 %v1014
    %3063 = vmatprep.subr.bf16.mxu0 %v1009
    %3064 = vmatpush2.bf16.msra.mxu0 %v1008
    %3065 = vmatprep.subr.bf16.mxu0 %v1003
    %3066 = vmatpush2.bf16.msra.mxu0 %v1002
    %3067 = vmatprep.subr.bf16.mxu0 %v997
    %3068 = vmatpush2.bf16.msra.mxu0 %v996
    %3069 = vmatprep.mubr.bf16.mxu0 %v2703
    %3070 = vmatmul.mubr.bf16.gmra.mxu0 %v2702
    %v3071 = vpop.f32.mrf.mxu0
    %v3072 = vadd.f32 0.0, %v3071
    %v3073 = vpop.f32.mrf.mxu0
    %v3074 = vadd.f32 0.0, %v3073
    %v3075 = vpop.f32.mrf.mxu0
    %v3076 = vpop.f32.mrf.mxu0
    %3077 = vdwg.mxu0
    %3078 = vmatprep.subr.bf16.mxu0 %v993
    %3079 = vmatpush1.bf16.msra.mxu0 %v992
    %3080 = vmatprep.subr.bf16.mxu0 %v987
    %3081 = vmatpush1.bf16.msra.mxu0 %v986
    %3082 = vmatprep.subr.bf16.mxu0 %v981
    %3083 = vmatpush1.bf16.msra.mxu0 %v980
    %3084 = vmatprep.subr.bf16.mxu0 %v975
    %3085 = vmatpush1.bf16.msra.mxu0 %v974
    %3086 = vmatprep.subr.bf16.mxu0 %v969
    %3087 = vmatpush1.bf16.msra.mxu0 %v968
    %3088 = vmatprep.subr.bf16.mxu0 %v963
    %3089 = vmatpush1.bf16.msra.mxu0 %v962
    %3090 = vmatprep.subr.bf16.mxu0 %v957
    %3091 = vmatpush1.bf16.msra.mxu0 %v956
    %3092 = vmatprep.subr.bf16.mxu0 %v951
    %3093 = vmatpush1.bf16.msra.mxu0 %v950
    %3094 = vmatprep.subr.bf16.mxu0 %v1041
    %3095 = vmatpush2.bf16.msra.mxu0 %v1040
    %3096 = vmatprep.subr.bf16.mxu0 %v1035
    %3097 = vmatpush2.bf16.msra.mxu0 %v1034
    %3098 = vmatprep.subr.bf16.mxu0 %v1029
    %3099 = vmatpush2.bf16.msra.mxu0 %v1028
    %3100 = vmatprep.subr.bf16.mxu0 %v1023
    %3101 = vmatpush2.bf16.msra.mxu0 %v1022
    %3102 = vmatprep.subr.bf16.mxu0 %v1017
    %3103 = vmatpush2.bf16.msra.mxu0 %v1016
    %3104 = vmatprep.subr.bf16.mxu0 %v1011
    %3105 = vmatpush2.bf16.msra.mxu0 %v1010
    %3106 = vmatprep.subr.bf16.mxu0 %v1005
    %3107 = vmatpush2.bf16.msra.mxu0 %v1004
    %3108 = vmatprep.subr.bf16.mxu0 %v999
    %3109 = vmatpush2.bf16.msra.mxu0 %v998
    %3110 = vmatprep.mubr.bf16.mxu0 %v2703
    %3111 = vmatmul.mubr.bf16.gmra.mxu0 %v2702
    %v3112 = vpop.f32.mrf.mxu0
    %v3113 = vadd.f32 0.0, %v3112
    %v3114 = vpop.f32.mrf.mxu0
    %v3115 = vadd.f32 0.0, %v3114
    %v3116 = vpop.f32.mrf.mxu0
    %v3117 = vpop.f32.mrf.mxu0
    %3118 = vdwg.mxu0
    %v3119 = vadd.f32 %v570, %v3031
    %v3120 = vadd.f32 %v572, %v3033
    %v3121 = vadd.f32 %v611, %v3072
    %v3122 = vadd.f32 %v613, %v3074
    %v3123 = vmul.f32 %v3119, 0.5
    %v3124 = vmul.f32 %v3120, 0.5
    %v3125 = vmul.f32 %v3121, 0.5
    %v3126 = vmul.f32 %v3122, 0.5
    %v3127 = vtanh.pop %v3123
    %v3128 = vtanh.pop %v3124
    %v3129 = vtanh.pop %v3125
    %v3130 = vtanh.pop %v3126
    %v3131 = vadd.f32 %v3127, 1.0
    %v3132 = vadd.f32 %v3128, 1.0
    %v3133 = vadd.f32 %v3129, 1.0
    %v3134 = vadd.f32 %v3130, 1.0
    %v3135 = vmul.f32 %v3131, 0.5
    %v3136 = vmul.f32 %v3132, 0.5
    %v3137 = vmul.f32 %v3133, 0.5
    %v3138 = vmul.f32 %v3134, 0.5
    %v3139 = vadd.f32 %v3113, %v448
    %v3140 = vadd.f32 %v3115, %v452
    %v3141 = vmul.f32 %v3135, %v3139
    %v3142 = vmul.f32 %v3136, %v3140
    %v3143 = vadd.f32 %v652, %v3141
    %v3144 = vadd.f32 %v654, %v3142
    %v3145 = vtanh.pop %v3143
    %v3146 = vtanh.pop %v3144
    %v3147 = vsub.f32 1.0, %v3137
    %v3148 = vsub.f32 1.0, %v3138
    %v3149 = vmul.f32 %v3147, %v3145
    %v3150 = vmul.f32 %v3148, %v3146
    %v3151 = vmul.f32 %v3137, %v2700
    %v3152 = vmul.f32 %v3138, %v2701
    %v3153 = vadd.f32 %v3149, %v3151
    %v3154 = vadd.f32 %v3150, %v3152
    %v3155 = vpack.c.bf16 %v3153, %v3153
    %v3156 = vpack.c.bf16 %v3154, %v3154
    %3157 = vmatprep.subr.bf16.mxu0 %v1630
    %3158 = vmatpush1.bf16.msra.mxu0 %v1629
    %3159 = vmatprep.subr.bf16.mxu0 %v1624
    %3160 = vmatpush1.bf16.msra.mxu0 %v1623
    %3161 = vmatprep.subr.bf16.mxu0 %v1618
    %3162 = vmatpush1.bf16.msra.mxu0 %v1617
    %3163 = vmatprep.subr.bf16.mxu0 %v1612
    %3164 = vmatpush1.bf16.msra.mxu0 %v1611
    %3165 = vmatprep.subr.bf16.mxu0 %v1606
    %3166 = vmatpush1.bf16.msra.mxu0 %v1605
    %3167 = vmatprep.subr.bf16.mxu0 %v1600
    %3168 = vmatpush1.bf16.msra.mxu0 %v1599
    %3169 = vmatprep.subr.bf16.mxu0 %v1594
    %3170 = vmatpush1.bf16.msra.mxu0 %v1593
    %3171 = vmatprep.subr.bf16.mxu0 %v1588
    %3172 = vmatpush1.bf16.msra.mxu0 %v1587
    %3173 = vmatprep.subr.bf16.mxu0 %v1678
    %3174 = vmatpush2.bf16.msra.mxu0 %v1677
    %3175 = vmatprep.subr.bf16.mxu0 %v1672
    %3176 = vmatpush2.bf16.msra.mxu0 %v1671
    %3177 = vmatprep.subr.bf16.mxu0 %v1666
    %3178 = vmatpush2.bf16.msra.mxu0 %v1665
    %3179 = vmatprep.subr.bf16.mxu0 %v1660
    %3180 = vmatpush2.bf16.msra.mxu0 %v1659
    %3181 = vmatprep.subr.bf16.mxu0 %v1654
    %3182 = vmatpush2.bf16.msra.mxu0 %v1653
    %3183 = vmatprep.subr.bf16.mxu0 %v1648
    %3184 = vmatpush2.bf16.msra.mxu0 %v1647
    %3185 = vmatprep.subr.bf16.mxu0 %v1642
    %3186 = vmatpush2.bf16.msra.mxu0 %v1641
    %3187 = vmatprep.subr.bf16.mxu0 %v1636
    %3188 = vmatpush2.bf16.msra.mxu0 %v1635
    %3189 = vmatprep.mubr.bf16.mxu0 %v3156
    %3190 = vmatmul.mubr.bf16.gmra.mxu0 %v3155
    %v3191 = vpop.f32.mrf.mxu0
    %v3192 = vadd.f32 %v415, %v3191
    %v3193 = vpop.f32.mrf.mxu0
    %v3194 = vadd.f32 %v419, %v3193
    %v3195 = vpop.f32.mrf.mxu0
    %v3196 = vpop.f32.mrf.mxu0
    %3197 = vdwg.mxu0
    %3198 = vmatprep.subr.bf16.mxu0 %v1632
    %3199 = vmatpush1.bf16.msra.mxu0 %v1631
    %3200 = vmatprep.subr.bf16.mxu0 %v1626
    %3201 = vmatpush1.bf16.msra.mxu0 %v1625
    %3202 = vmatprep.subr.bf16.mxu0 %v1620
    %3203 = vmatpush1.bf16.msra.mxu0 %v1619
    %3204 = vmatprep.subr.bf16.mxu0 %v1614
    %3205 = vmatpush1.bf16.msra.mxu0 %v1613
    %3206 = vmatprep.subr.bf16.mxu0 %v1608
    %3207 = vmatpush1.bf16.msra.mxu0 %v1607
    %3208 = vmatprep.subr.bf16.mxu0 %v1602
    %3209 = vmatpush1.bf16.msra.mxu0 %v1601
    %3210 = vmatprep.subr.bf16.mxu0 %v1596
    %3211 = vmatpush1.bf16.msra.mxu0 %v1595
    %3212 = vmatprep.subr.bf16.mxu0 %v1590
    %3213 = vmatpush1.bf16.msra.mxu0 %v1589
    %3214 = vmatprep.subr.bf16.mxu0 %v1680
    %3215 = vmatpush2.bf16.msra.mxu0 %v1679
    %3216 = vmatprep.subr.bf16.mxu0 %v1674
    %3217 = vmatpush2.bf16.msra.mxu0 %v1673
    %3218 = vmatprep.subr.bf16.mxu0 %v1668
    %3219 = vmatpush2.bf16.msra.mxu0 %v1667
    %3220 = vmatprep.subr.bf16.mxu0 %v1662
    %3221 = vmatpush2.bf16.msra.mxu0 %v1661
    %3222 = vmatprep.subr.bf16.mxu0 %v1656
    %3223 = vmatpush2.bf16.msra.mxu0 %v1655
    %3224 = vmatprep.subr.bf16.mxu0 %v1650
    %3225 = vmatpush2.bf16.msra.mxu0 %v1649
    %3226 = vmatprep.subr.bf16.mxu0 %v1644
    %3227 = vmatpush2.bf16.msra.mxu0 %v1643
    %3228 = vmatprep.subr.bf16.mxu0 %v1638
    %3229 = vmatpush2.bf16.msra.mxu0 %v1637
    %3230 = vmatprep.mubr.bf16.mxu0 %v3156
    %3231 = vmatmul.mubr.bf16.gmra.mxu0 %v3155
    %v3232 = vpop.f32.mrf.mxu0
    %v3233 = vadd.f32 %v423, %v3232
    %v3234 = vpop.f32.mrf.mxu0
    %v3235 = vadd.f32 %v427, %v3234
    %v3236 = vpop.f32.mrf.mxu0
    %v3237 = vpop.f32.mrf.mxu0
    %3238 = vdwg.mxu0
    %3239 = vmatprep.subr.bf16.mxu0 %v1634
    %3240 = vmatpush1.bf16.msra.mxu0 %v1633
    %3241 = vmatprep.subr.bf16.mxu0 %v1628
    %3242 = vmatpush1.bf16.msra.mxu0 %v1627
    %3243 = vmatprep.subr.bf16.mxu0 %v1622
    %3244 = vmatpush1.bf16.msra.mxu0 %v1621
    %3245 = vmatprep.subr.bf16.mxu0 %v1616
    %3246 = vmatpush1.bf16.msra.mxu0 %v1615
    %3247 = vmatprep.subr.bf16.mxu0 %v1610
    %3248 = vmatpush1.bf16.msra.mxu0 %v1609
    %3249 = vmatprep.subr.bf16.mxu0 %v1604
    %3250 = vmatpush1.bf16.msra.mxu0 %v1603
    %3251 = vmatprep.subr.bf16.mxu0 %v1598
    %3252 = vmatpush1.bf16.msra.mxu0 %v1597
    %3253 = vmatprep.subr.bf16.mxu0 %v1592
    %3254 = vmatpush1.bf16.msra.mxu0 %v1591
    %3255 = vmatprep.subr.bf16.mxu0 %v1682
    %3256 = vmatpush2.bf16.msra.mxu0 %v1681
    %3257 = vmatprep.subr.bf16.mxu0 %v1676
    %3258 = vmatpush2.bf16.msra.mxu0 %v1675
    %3259 = vmatprep.subr.bf16.mxu0 %v1670
    %3260 = vmatpush2.bf16.msra.mxu0 %v1669
    %3261 = vmatprep.subr.bf16.mxu0 %v1664
    %3262 = vmatpush2.bf16.msra.mxu0 %v1663
    %3263 = vmatprep.subr.bf16.mxu0 %v1658
    %3264 = vmatpush2.bf16.msra.mxu0 %v1657
    %3265 = vmatprep.subr.bf16.mxu0 %v1652
    %3266 = vmatpush2.bf16.msra.mxu0 %v1651
    %3267 = vmatprep.subr.bf16.mxu0 %v1646
    %3268 = vmatpush2.bf16.msra.mxu0 %v1645
    %3269 = vmatprep.subr.bf16.mxu0 %v1640
    %3270 = vmatpush2.bf16.msra.mxu0 %v1639
    %3271 = vmatprep.mubr.bf16.mxu0 %v3156
    %3272 = vmatmul.mubr.bf16.gmra.mxu0 %v3155
    %v3273 = vpop.f32.mrf.mxu0
    %v3274 = vadd.f32 %v431, %v3273
    %v3275 = vpop.f32.mrf.mxu0
    %v3276 = vadd.f32 %v435, %v3275
    %v3277 = vpop.f32.mrf.mxu0
    %v3278 = vpop.f32.mrf.mxu0
    %3279 = vdwg.mxu0
    %v3280 = vpack.c.bf16 %v2986, %v2986
    %v3281 = vpack.c.bf16 %v2987, %v2987
    %3282 = vmatprep.subr.bf16.mxu0 %v2233
    %3283 = vmatpush1.bf16.msra.mxu0 %v2232
    %3284 = vmatprep.subr.bf16.mxu0 %v2227
    %3285 = vmatpush1.bf16.msra.mxu0 %v2226
    %3286 = vmatprep.subr.bf16.mxu0 %v2221
    %3287 = vmatpush1.bf16.msra.mxu0 %v2220
    %3288 = vmatprep.subr.bf16.mxu0 %v2215
    %3289 = vmatpush1.bf16.msra.mxu0 %v2214
    %3290 = vmatprep.subr.bf16.mxu0 %v2209
    %3291 = vmatpush1.bf16.msra.mxu0 %v2208
    %3292 = vmatprep.subr.bf16.mxu0 %v2203
    %3293 = vmatpush1.bf16.msra.mxu0 %v2202
    %3294 = vmatprep.subr.bf16.mxu0 %v2197
    %3295 = vmatpush1.bf16.msra.mxu0 %v2196
    %3296 = vmatprep.subr.bf16.mxu0 %v2191
    %3297 = vmatpush1.bf16.msra.mxu0 %v2190
    %3298 = vmatprep.subr.bf16.mxu0 %v2281
    %3299 = vmatpush2.bf16.msra.mxu0 %v2280
    %3300 = vmatprep.subr.bf16.mxu0 %v2275
    %3301 = vmatpush2.bf16.msra.mxu0 %v2274
    %3302 = vmatprep.subr.bf16.mxu0 %v2269
    %3303 = vmatpush2.bf16.msra.mxu0 %v2268
    %3304 = vmatprep.subr.bf16.mxu0 %v2263
    %3305 = vmatpush2.bf16.msra.mxu0 %v2262
    %3306 = vmatprep.subr.bf16.mxu0 %v2257
    %3307 = vmatpush2.bf16.msra.mxu0 %v2256
    %3308 = vmatprep.subr.bf16.mxu0 %v2251
    %3309 = vmatpush2.bf16.msra.mxu0 %v2250
    %3310 = vmatprep.subr.bf16.mxu0 %v2245
    %3311 = vmatpush2.bf16.msra.mxu0 %v2244
    %3312 = vmatprep.subr.bf16.mxu0 %v2239
    %3313 = vmatpush2.bf16.msra.mxu0 %v2238
    %3314 = vmatprep.mubr.bf16.mxu0 %v3281
    %3315 = vmatmul.mubr.bf16.gmra.mxu0 %v3280
    %v3316 = vpop.f32.mrf.mxu0
    %v3317 = vadd.f32 0.0, %v3316
    %v3318 = vpop.f32.mrf.mxu0
    %v3319 = vadd.f32 0.0, %v3318
    %v3320 = vpop.f32.mrf.mxu0
    %v3321 = vpop.f32.mrf.mxu0
    %3322 = vdwg.mxu0
    %3323 = vmatprep.subr.bf16.mxu0 %v2235
    %3324 = vmatpush1.bf16.msra.mxu0 %v2234
    %3325 = vmatprep.subr.bf16.mxu0 %v2229
    %3326 = vmatpush1.bf16.msra.mxu0 %v2228
    %3327 = vmatprep.subr.bf16.mxu0 %v2223
    %3328 = vmatpush1.bf16.msra.mxu0 %v2222
    %3329 = vmatprep.subr.bf16.mxu0 %v2217
    %3330 = vmatpush1.bf16.msra.mxu0 %v2216
    %3331 = vmatprep.subr.bf16.mxu0 %v2211
    %3332 = vmatpush1.bf16.msra.mxu0 %v2210
    %3333 = vmatprep.subr.bf16.mxu0 %v2205
    %3334 = vmatpush1.bf16.msra.mxu0 %v2204
    %3335 = vmatprep.subr.bf16.mxu0 %v2199
    %3336 = vmatpush1.bf16.msra.mxu0 %v2198
    %3337 = vmatprep.subr.bf16.mxu0 %v2193
    %3338 = vmatpush1.bf16.msra.mxu0 %v2192
    %3339 = vmatprep.subr.bf16.mxu0 %v2283
    %3340 = vmatpush2.bf16.msra.mxu0 %v2282
    %3341 = vmatprep.subr.bf16.mxu0 %v2277
    %3342 = vmatpush2.bf16.msra.mxu0 %v2276
    %3343 = vmatprep.subr.bf16.mxu0 %v2271
    %3344 = vmatpush2.bf16.msra.mxu0 %v2270
    %3345 = vmatprep.subr.bf16.mxu0 %v2265
    %3346 = vmatpush2.bf16.msra.mxu0 %v2264
    %3347 = vmatprep.subr.bf16.mxu0 %v2259
    %3348 = vmatpush2.bf16.msra.mxu0 %v2258
    %3349 = vmatprep.subr.bf16.mxu0 %v2253
    %3350 = vmatpush2.bf16.msra.mxu0 %v2252
    %3351 = vmatprep.subr.bf16.mxu0 %v2247
    %3352 = vmatpush2.bf16.msra.mxu0 %v2246
    %3353 = vmatprep.subr.bf16.mxu0 %v2241
    %3354 = vmatpush2.bf16.msra.mxu0 %v2240
    %3355 = vmatprep.mubr.bf16.mxu0 %v3281
    %3356 = vmatmul.mubr.bf16.gmra.mxu0 %v3280
    %v3357 = vpop.f32.mrf.mxu0
    %v3358 = vadd.f32 0.0, %v3357
    %v3359 = vpop.f32.mrf.mxu0
    %v3360 = vadd.f32 0.0, %v3359
    %v3361 = vpop.f32.mrf.mxu0
    %v3362 = vpop.f32.mrf.mxu0
    %3363 = vdwg.mxu0
    %3364 = vmatprep.subr.bf16.mxu0 %v2237
    %3365 = vmatpush1.bf16.msra.mxu0 %v2236
    %3366 = vmatprep.subr.bf16.mxu0 %v2231
    %3367 = vmatpush1.bf16.msra.mxu0 %v2230
    %3368 = vmatprep.subr.bf16.mxu0 %v2225
    %3369 = vmatpush1.bf16.msra.mxu0 %v2224
    %3370 = vmatprep.subr.bf16.mxu0 %v2219
    %3371 = vmatpush1.bf16.msra.mxu0 %v2218
    %3372 = vmatprep.subr.bf16.mxu0 %v2213
    %3373 = vmatpush1.bf16.msra.mxu0 %v2212
    %3374 = vmatprep.subr.bf16.mxu0 %v2207
    %3375 = vmatpush1.bf16.msra.mxu0 %v2206
    %3376 = vmatprep.subr.bf16.mxu0 %v2201
    %3377 = vmatpush1.bf16.msra.mxu0 %v2200
    %3378 = vmatprep.subr.bf16.mxu0 %v2195
    %3379 = vmatpush1.bf16.msra.mxu0 %v2194
    %3380 = vmatprep.subr.bf16.mxu0 %v2285
    %3381 = vmatpush2.bf16.msra.mxu0 %v2284
    %3382 = vmatprep.subr.bf16.mxu0 %v2279
    %3383 = vmatpush2.bf16.msra.mxu0 %v2278
    %3384 = vmatprep.subr.bf16.mxu0 %v2273
    %3385 = vmatpush2.bf16.msra.mxu0 %v2272
    %3386 = vmatprep.subr.bf16.mxu0 %v2267
    %3387 = vmatpush2.bf16.msra.mxu0 %v2266
    %3388 = vmatprep.subr.bf16.mxu0 %v2261
    %3389 = vmatpush2.bf16.msra.mxu0 %v2260
    %3390 = vmatprep.subr.bf16.mxu0 %v2255
    %3391 = vmatpush2.bf16.msra.mxu0 %v2254
    %3392 = vmatprep.subr.bf16.mxu0 %v2249
    %3393 = vmatpush2.bf16.msra.mxu0 %v2248
    %3394 = vmatprep.subr.bf16.mxu0 %v2243
    %3395 = vmatpush2.bf16.msra.mxu0 %v2242
    %3396 = vmatprep.mubr.bf16.mxu0 %v3281
    %3397 = vmatmul.mubr.bf16.gmra.mxu0 %v3280
    %v3398 = vpop.f32.mrf.mxu0
    %v3399 = vadd.f32 0.0, %v3398
    %v3400 = vpop.f32.mrf.mxu0
    %v3401 = vadd.f32 0.0, %v3400
    %v3402 = vpop.f32.mrf.mxu0
    %v3403 = vpop.f32.mrf.mxu0
    %3404 = vdwg.mxu0
    %v3405 = vadd.f32 %v3192, %v3317
    %v3406 = vadd.f32 %v3194, %v3319
    %v3407 = vadd.f32 %v3233, %v3358
    %v3408 = vadd.f32 %v3235, %v3360
    %v3409 = vmul.f32 %v3405, 0.5
    %v3410 = vmul.f32 %v3406, 0.5
    %v3411 = vmul.f32 %v3407, 0.5
    %v3412 = vmul.f32 %v3408, 0.5
    %v3413 = vtanh.pop %v3409
    %v3414 = vtanh.pop %v3410
    %v3415 = vtanh.pop %v3411
    %v3416 = vtanh.pop %v3412
    %v3417 = vadd.f32 %v3413, 1.0
    %v3418 = vadd.f32 %v3414, 1.0
    %v3419 = vadd.f32 %v3415, 1.0
    %v3420 = vadd.f32 %v3416, 1.0
    %v3421 = vmul.f32 %v3417, 0.5
    %v3422 = vmul.f32 %v3418, 0.5
    %v3423 = vmul.f32 %v3419, 0.5
    %v3424 = vmul.f32 %v3420, 0.5
    %v3425 = vadd.f32 %v3399, %v461
    %v3426 = vadd.f32 %v3401, %v465
    %v3427 = vmul.f32 %v3421, %v3425
    %v3428 = vmul.f32 %v3422, %v3426
    %v3429 = vadd.f32 %v3274, %v3427
    %v3430 = vadd.f32 %v3276, %v3428
    %v3431 = vtanh.pop %v3429
    %v3432 = vtanh.pop %v3430
    %v3433 = vsub.f32 1.0, %v3423
    %v3434 = vsub.f32 1.0, %v3424
    %v3435 = vmul.f32 %v3433, %v3431
    %v3436 = vmul.f32 %v3434, %v3432
    %v3437 = vmul.f32 %v3423, %v2986
    %v3438 = vmul.f32 %v3424, %v2987
    %v3439 = vadd.f32 %v3435, %v3437
    %v3440 = vadd.f32 %v3436, %v3438
    %v3443 = vrot.slane %v3439, 4
    %v3444 = vrot.slane %v3440, 4
    %3447 = vst [vmem:[#allocation2] sm:$0x30] %v3443
    %3448 = vst [vmem:[#allocation2 + $0x8] sm:$0x30] %v3444
    %3449 = vmatprep.subr.bf16.mxu0 %v989
    %3450 = vmatpush1.bf16.msra.mxu0 %v988
    %3451 = vmatprep.subr.bf16.mxu0 %v983
    %3452 = vmatpush1.bf16.msra.mxu0 %v982
    %3453 = vmatprep.subr.bf16.mxu0 %v977
    %3454 = vmatpush1.bf16.msra.mxu0 %v976
    %3455 = vmatprep.subr.bf16.mxu0 %v971
    %3456 = vmatpush1.bf16.msra.mxu0 %v970
    %3457 = vmatprep.subr.bf16.mxu0 %v965
    %3458 = vmatpush1.bf16.msra.mxu0 %v964
    %3459 = vmatprep.subr.bf16.mxu0 %v959
    %3460 = vmatpush1.bf16.msra.mxu0 %v958
    %3461 = vmatprep.subr.bf16.mxu0 %v953
    %3462 = vmatpush1.bf16.msra.mxu0 %v952
    %3463 = vmatprep.subr.bf16.mxu0 %v947
    %3464 = vmatpush1.bf16.msra.mxu0 %v946
    %3465 = vmatprep.subr.bf16.mxu0 %v1037
    %3466 = vmatpush2.bf16.msra.mxu0 %v1036
    %3467 = vmatprep.subr.bf16.mxu0 %v1031
    %3468 = vmatpush2.bf16.msra.mxu0 %v1030
    %3469 = vmatprep.subr.bf16.mxu0 %v1025
    %3470 = vmatpush2.bf16.msra.mxu0 %v1024
    %3471 = vmatprep.subr.bf16.mxu0 %v1019
    %3472 = vmatpush2.bf16.msra.mxu0 %v1018
    %3473 = vmatprep.subr.bf16.mxu0 %v1013
    %3474 = vmatpush2.bf16.msra.mxu0 %v1012
    %3475 = vmatprep.subr.bf16.mxu0 %v1007
    %3476 = vmatpush2.bf16.msra.mxu0 %v1006
    %3477 = vmatprep.subr.bf16.mxu0 %v1001
    %3478 = vmatpush2.bf16.msra.mxu0 %v1000
    %3479 = vmatprep.subr.bf16.mxu0 %v995
    %3480 = vmatpush2.bf16.msra.mxu0 %v994
    %3481 = vmatprep.mubr.bf16.mxu0 %v3156
    %3482 = vmatmul.mubr.bf16.gmra.mxu0 %v3155
    %v3483 = vpop.f32.mrf.mxu0
    %v3484 = vadd.f32 0.0, %v3483
    %v3485 = vpop.f32.mrf.mxu0
    %v3486 = vadd.f32 0.0, %v3485
    %v3487 = vpop.f32.mrf.mxu0
    %v3488 = vpop.f32.mrf.mxu0
    %3489 = vdwg.mxu0
    %3490 = vmatprep.subr.bf16.mxu0 %v991
    %3491 = vmatpush1.bf16.msra.mxu0 %v990
    %3492 = vmatprep.subr.bf16.mxu0 %v985
    %3493 = vmatpush1.bf16.msra.mxu0 %v984
    %3494 = vmatprep.subr.bf16.mxu0 %v979
    %3495 = vmatpush1.bf16.msra.mxu0 %v978
    %3496 = vmatprep.subr.bf16.mxu0 %v973
    %3497 = vmatpush1.bf16.msra.mxu0 %v972
    %3498 = vmatprep.subr.bf16.mxu0 %v967
    %3499 = vmatpush1.bf16.msra.mxu0 %v966
    %3500 = vmatprep.subr.bf16.mxu0 %v961
    %3501 = vmatpush1.bf16.msra.mxu0 %v960
    %3502 = vmatprep.subr.bf16.mxu0 %v955
    %3503 = vmatpush1.bf16.msra.mxu0 %v954
    %3504 = vmatprep.subr.bf16.mxu0 %v949
    %3505 = vmatpush1.bf16.msra.mxu0 %v948
    %3506 = vmatprep.subr.bf16.mxu0 %v1039
    %3507 = vmatpush2.bf16.msra.mxu0 %v1038
    %3508 = vmatprep.subr.bf16.mxu0 %v1033
    %3509 = vmatpush2.bf16.msra.mxu0 %v1032
    %3510 = vmatprep.subr.bf16.mxu0 %v1027
    %3511 = vmatpush2.bf16.msra.mxu0 %v1026
    %3512 = vmatprep.subr.bf16.mxu0 %v1021
    %3513 = vmatpush2.bf16.msra.mxu0 %v1020
    %3514 = vmatprep.subr.bf16.mxu0 %v1015
    %3515 = vmatpush2.bf16.msra.mxu0 %v1014
    %3516 = vmatprep.subr.bf16.mxu0 %v1009
    %3517 = vmatpush2.bf16.msra.mxu0 %v1008
    %3518 = vmatprep.subr.bf16.mxu0 %v1003
    %3519 = vmatpush2.bf16.msra.mxu0 %v1002
    %3520 = vmatprep.subr.bf16.mxu0 %v997
    %3521 = vmatpush2.bf16.msra.mxu0 %v996
    %3522 = vmatprep.mubr.bf16.mxu0 %v3156
    %3523 = vmatmul.mubr.bf16.gmra.mxu0 %v3155
    %v3524 = vpop.f32.mrf.mxu0
    %v3525 = vadd.f32 0.0, %v3524
    %v3526 = vpop.f32.mrf.mxu0
    %v3527 = vadd.f32 0.0, %v3526
    %v3528 = vpop.f32.mrf.mxu0
    %v3529 = vpop.f32.mrf.mxu0
    %3530 = vdwg.mxu0
    %3531 = vmatprep.subr.bf16.mxu0 %v993
    %3532 = vmatpush1.bf16.msra.mxu0 %v992
    %3533 = vmatprep.subr.bf16.mxu0 %v987
    %3534 = vmatpush1.bf16.msra.mxu0 %v986
    %3535 = vmatprep.subr.bf16.mxu0 %v981
    %3536 = vmatpush1.bf16.msra.mxu0 %v980
    %3537 = vmatprep.subr.bf16.mxu0 %v975
    %3538 = vmatpush1.bf16.msra.mxu0 %v974
    %3539 = vmatprep.subr.bf16.mxu0 %v969
    %3540 = vmatpush1.bf16.msra.mxu0 %v968
    %3541 = vmatprep.subr.bf16.mxu0 %v963
    %3542 = vmatpush1.bf16.msra.mxu0 %v962
    %3543 = vmatprep.subr.bf16.mxu0 %v957
    %3544 = vmatpush1.bf16.msra.mxu0 %v956
    %3545 = vmatprep.subr.bf16.mxu0 %v951
    %3546 = vmatpush1.bf16.msra.mxu0 %v950
    %3547 = vmatprep.subr.bf16.mxu0 %v1041
    %3548 = vmatpush2.bf16.msra.mxu0 %v1040
    %3549 = vmatprep.subr.bf16.mxu0 %v1035
    %3550 = vmatpush2.bf16.msra.mxu0 %v1034
    %3551 = vmatprep.subr.bf16.mxu0 %v1029
    %3552 = vmatpush2.bf16.msra.mxu0 %v1028
    %3553 = vmatprep.subr.bf16.mxu0 %v1023
    %3554 = vmatpush2.bf16.msra.mxu0 %v1022
    %3555 = vmatprep.subr.bf16.mxu0 %v1017
    %3556 = vmatpush2.bf16.msra.mxu0 %v1016
    %3557 = vmatprep.subr.bf16.mxu0 %v1011
    %3558 = vmatpush2.bf16.msra.mxu0 %v1010
    %3559 = vmatprep.subr.bf16.mxu0 %v1005
    %3560 = vmatpush2.bf16.msra.mxu0 %v1004
    %3561 = vmatprep.subr.bf16.mxu0 %v999
    %3562 = vmatpush2.bf16.msra.mxu0 %v998
    %3563 = vmatprep.mubr.bf16.mxu0 %v3156
    %3564 = vmatmul.mubr.bf16.gmra.mxu0 %v3155
    %v3565 = vpop.f32.mrf.mxu0
    %v3566 = vadd.f32 0.0, %v3565
    %v3567 = vpop.f32.mrf.mxu0
    %v3568 = vadd.f32 0.0, %v3567
    %v3569 = vpop.f32.mrf.mxu0
    %v3570 = vpop.f32.mrf.mxu0
    %3571 = vdwg.mxu0
    %v3572 = vadd.f32 %v570, %v3484
    %v3573 = vadd.f32 %v572, %v3486
    %v3574 = vadd.f32 %v611, %v3525
    %v3575 = vadd.f32 %v613, %v3527
    %v3576 = vmul.f32 %v3572, 0.5
    %v3577 = vmul.f32 %v3573, 0.5
    %v3578 = vmul.f32 %v3574, 0.5
    %v3579 = vmul.f32 %v3575, 0.5
    %v3580 = vtanh.pop %v3576
    %v3581 = vtanh.pop %v3577
    %v3582 = vtanh.pop %v3578
    %v3583 = vtanh.pop %v3579
    %v3584 = vadd.f32 %v3580, 1.0
    %v3585 = vadd.f32 %v3581, 1.0
    %v3586 = vadd.f32 %v3582, 1.0
    %v3587 = vadd.f32 %v3583, 1.0
    %v3588 = vmul.f32 %v3584, 0.5
    %v3589 = vmul.f32 %v3585, 0.5
    %v3590 = vmul.f32 %v3586, 0.5
    %v3591 = vmul.f32 %v3587, 0.5
    %v3592 = vadd.f32 %v3566, %v448
    %v3593 = vadd.f32 %v3568, %v452
    %v3594 = vmul.f32 %v3588, %v3592
    %v3595 = vmul.f32 %v3589, %v3593
    %v3596 = vadd.f32 %v652, %v3594
    %v3597 = vadd.f32 %v654, %v3595
    %v3598 = vtanh.pop %v3596
    %v3599 = vtanh.pop %v3597
    %v3600 = vsub.f32 1.0, %v3590
    %v3601 = vsub.f32 1.0, %v3591
    %v3602 = vmul.f32 %v3600, %v3598
    %v3603 = vmul.f32 %v3601, %v3599
    %v3604 = vmul.f32 %v3590, %v3153
    %v3605 = vmul.f32 %v3591, %v3154
    %v3606 = vadd.f32 %v3602, %v3604
    %v3607 = vadd.f32 %v3603, %v3605
    %v3608 = vpack.c.bf16 %v3606, %v3606
    %v3609 = vpack.c.bf16 %v3607, %v3607
    %3610 = vmatprep.subr.bf16.mxu0 %v1630
    %3611 = vmatpush1.bf16.msra.mxu0 %v1629
    %3612 = vmatprep.subr.bf16.mxu0 %v1624
    %3613 = vmatpush1.bf16.msra.mxu0 %v1623
    %3614 = vmatprep.subr.bf16.mxu0 %v1618
    %3615 = vmatpush1.bf16.msra.mxu0 %v1617
    %3616 = vmatprep.subr.bf16.mxu0 %v1612
    %3617 = vmatpush1.bf16.msra.mxu0 %v1611
    %3618 = vmatprep.subr.bf16.mxu0 %v1606
    %3619 = vmatpush1.bf16.msra.mxu0 %v1605
    %3620 = vmatprep.subr.bf16.mxu0 %v1600
    %3621 = vmatpush1.bf16.msra.mxu0 %v1599
    %3622 = vmatprep.subr.bf16.mxu0 %v1594
    %3623 = vmatpush1.bf16.msra.mxu0 %v1593
    %3624 = vmatprep.subr.bf16.mxu0 %v1588
    %3625 = vmatpush1.bf16.msra.mxu0 %v1587
    %3626 = vmatprep.subr.bf16.mxu0 %v1678
    %3627 = vmatpush2.bf16.msra.mxu0 %v1677
    %3628 = vmatprep.subr.bf16.mxu0 %v1672
    %3629 = vmatpush2.bf16.msra.mxu0 %v1671
    %3630 = vmatprep.subr.bf16.mxu0 %v1666
    %3631 = vmatpush2.bf16.msra.mxu0 %v1665
    %3632 = vmatprep.subr.bf16.mxu0 %v1660
    %3633 = vmatpush2.bf16.msra.mxu0 %v1659
    %3634 = vmatprep.subr.bf16.mxu0 %v1654
    %3635 = vmatpush2.bf16.msra.mxu0 %v1653
    %3636 = vmatprep.subr.bf16.mxu0 %v1648
    %3637 = vmatpush2.bf16.msra.mxu0 %v1647
    %3638 = vmatprep.subr.bf16.mxu0 %v1642
    %3639 = vmatpush2.bf16.msra.mxu0 %v1641
    %3640 = vmatprep.subr.bf16.mxu0 %v1636
    %3641 = vmatpush2.bf16.msra.mxu0 %v1635
    %3642 = vmatprep.mubr.bf16.mxu0 %v3609
    %3643 = vmatmul.mubr.bf16.gmra.mxu0 %v3608
    %v3644 = vpop.f32.mrf.mxu0
    %v3645 = vadd.f32 %v415, %v3644
    %v3646 = vpop.f32.mrf.mxu0
    %v3647 = vadd.f32 %v419, %v3646
    %v3648 = vpop.f32.mrf.mxu0
    %v3649 = vpop.f32.mrf.mxu0
    %3650 = vdwg.mxu0
    %3651 = vmatprep.subr.bf16.mxu0 %v1632
    %3652 = vmatpush1.bf16.msra.mxu0 %v1631
    %3653 = vmatprep.subr.bf16.mxu0 %v1626
    %3654 = vmatpush1.bf16.msra.mxu0 %v1625
    %3655 = vmatprep.subr.bf16.mxu0 %v1620
    %3656 = vmatpush1.bf16.msra.mxu0 %v1619
    %3657 = vmatprep.subr.bf16.mxu0 %v1614
    %3658 = vmatpush1.bf16.msra.mxu0 %v1613
    %3659 = vmatprep.subr.bf16.mxu0 %v1608
    %3660 = vmatpush1.bf16.msra.mxu0 %v1607
    %3661 = vmatprep.subr.bf16.mxu0 %v1602
    %3662 = vmatpush1.bf16.msra.mxu0 %v1601
    %3663 = vmatprep.subr.bf16.mxu0 %v1596
    %3664 = vmatpush1.bf16.msra.mxu0 %v1595
    %3665 = vmatprep.subr.bf16.mxu0 %v1590
    %3666 = vmatpush1.bf16.msra.mxu0 %v1589
    %3667 = vmatprep.subr.bf16.mxu0 %v1680
    %3668 = vmatpush2.bf16.msra.mxu0 %v1679
    %3669 = vmatprep.subr.bf16.mxu0 %v1674
    %3670 = vmatpush2.bf16.msra.mxu0 %v1673
    %3671 = vmatprep.subr.bf16.mxu0 %v1668
    %3672 = vmatpush2.bf16.msra.mxu0 %v1667
    %3673 = vmatprep.subr.bf16.mxu0 %v1662
    %3674 = vmatpush2.bf16.msra.mxu0 %v1661
    %3675 = vmatprep.subr.bf16.mxu0 %v1656
    %3676 = vmatpush2.bf16.msra.mxu0 %v1655
    %3677 = vmatprep.subr.bf16.mxu0 %v1650
    %3678 = vmatpush2.bf16.msra.mxu0 %v1649
    %3679 = vmatprep.subr.bf16.mxu0 %v1644
    %3680 = vmatpush2.bf16.msra.mxu0 %v1643
    %3681 = vmatprep.subr.bf16.mxu0 %v1638
    %3682 = vmatpush2.bf16.msra.mxu0 %v1637
    %3683 = vmatprep.mubr.bf16.mxu0 %v3609
    %3684 = vmatmul.mubr.bf16.gmra.mxu0 %v3608
    %v3685 = vpop.f32.mrf.mxu0
    %v3686 = vadd.f32 %v423, %v3685
    %v3687 = vpop.f32.mrf.mxu0
    %v3688 = vadd.f32 %v427, %v3687
    %v3689 = vpop.f32.mrf.mxu0
    %v3690 = vpop.f32.mrf.mxu0
    %3691 = vdwg.mxu0
    %3692 = vmatprep.subr.bf16.mxu0 %v1634
    %3693 = vmatpush1.bf16.msra.mxu0 %v1633
    %3694 = vmatprep.subr.bf16.mxu0 %v1628
    %3695 = vmatpush1.bf16.msra.mxu0 %v1627
    %3696 = vmatprep.subr.bf16.mxu0 %v1622
    %3697 = vmatpush1.bf16.msra.mxu0 %v1621
    %3698 = vmatprep.subr.bf16.mxu0 %v1616
    %3699 = vmatpush1.bf16.msra.mxu0 %v1615
    %3700 = vmatprep.subr.bf16.mxu0 %v1610
    %3701 = vmatpush1.bf16.msra.mxu0 %v1609
    %3702 = vmatprep.subr.bf16.mxu0 %v1604
    %3703 = vmatpush1.bf16.msra.mxu0 %v1603
    %3704 = vmatprep.subr.bf16.mxu0 %v1598
    %3705 = vmatpush1.bf16.msra.mxu0 %v1597
    %3706 = vmatprep.subr.bf16.mxu0 %v1592
    %3707 = vmatpush1.bf16.msra.mxu0 %v1591
    %3708 = vmatprep.subr.bf16.mxu0 %v1682
    %3709 = vmatpush2.bf16.msra.mxu0 %v1681
    %3710 = vmatprep.subr.bf16.mxu0 %v1676
    %3711 = vmatpush2.bf16.msra.mxu0 %v1675
    %3712 = vmatprep.subr.bf16.mxu0 %v1670
    %3713 = vmatpush2.bf16.msra.mxu0 %v1669
    %3714 = vmatprep.subr.bf16.mxu0 %v1664
    %3715 = vmatpush2.bf16.msra.mxu0 %v1663
    %3716 = vmatprep.subr.bf16.mxu0 %v1658
    %3717 = vmatpush2.bf16.msra.mxu0 %v1657
    %3718 = vmatprep.subr.bf16.mxu0 %v1652
    %3719 = vmatpush2.bf16.msra.mxu0 %v1651
    %3720 = vmatprep.subr.bf16.mxu0 %v1646
    %3721 = vmatpush2.bf16.msra.mxu0 %v1645
    %3722 = vmatprep.subr.bf16.mxu0 %v1640
    %3723 = vmatpush2.bf16.msra.mxu0 %v1639
    %3724 = vmatprep.mubr.bf16.mxu0 %v3609
    %3725 = vmatmul.mubr.bf16.gmra.mxu0 %v3608
    %v3726 = vpop.f32.mrf.mxu0
    %v3727 = vadd.f32 %v431, %v3726
    %v3728 = vpop.f32.mrf.mxu0
    %v3729 = vadd.f32 %v435, %v3728
    %v3730 = vpop.f32.mrf.mxu0
    %v3731 = vpop.f32.mrf.mxu0
    %3732 = vdwg.mxu0
    %v3733 = vpack.c.bf16 %v3439, %v3439
    %v3734 = vpack.c.bf16 %v3440, %v3440
    %3735 = vmatprep.subr.bf16.mxu0 %v2233
    %3736 = vmatpush1.bf16.msra.mxu0 %v2232
    %3737 = vmatprep.subr.bf16.mxu0 %v2227
    %3738 = vmatpush1.bf16.msra.mxu0 %v2226
    %3739 = vmatprep.subr.bf16.mxu0 %v2221
    %3740 = vmatpush1.bf16.msra.mxu0 %v2220
    %3741 = vmatprep.subr.bf16.mxu0 %v2215
    %3742 = vmatpush1.bf16.msra.mxu0 %v2214
    %3743 = vmatprep.subr.bf16.mxu0 %v2209
    %3744 = vmatpush1.bf16.msra.mxu0 %v2208
    %3745 = vmatprep.subr.bf16.mxu0 %v2203
    %3746 = vmatpush1.bf16.msra.mxu0 %v2202
    %3747 = vmatprep.subr.bf16.mxu0 %v2197
    %3748 = vmatpush1.bf16.msra.mxu0 %v2196
    %3749 = vmatprep.subr.bf16.mxu0 %v2191
    %3750 = vmatpush1.bf16.msra.mxu0 %v2190
    %3751 = vmatprep.subr.bf16.mxu0 %v2281
    %3752 = vmatpush2.bf16.msra.mxu0 %v2280
    %3753 = vmatprep.subr.bf16.mxu0 %v2275
    %3754 = vmatpush2.bf16.msra.mxu0 %v2274
    %3755 = vmatprep.subr.bf16.mxu0 %v2269
    %3756 = vmatpush2.bf16.msra.mxu0 %v2268
    %3757 = vmatprep.subr.bf16.mxu0 %v2263
    %3758 = vmatpush2.bf16.msra.mxu0 %v2262
    %3759 = vmatprep.subr.bf16.mxu0 %v2257
    %3760 = vmatpush2.bf16.msra.mxu0 %v2256
    %3761 = vmatprep.subr.bf16.mxu0 %v2251
    %3762 = vmatpush2.bf16.msra.mxu0 %v2250
    %3763 = vmatprep.subr.bf16.mxu0 %v2245
    %3764 = vmatpush2.bf16.msra.mxu0 %v2244
    %3765 = vmatprep.subr.bf16.mxu0 %v2239
    %3766 = vmatpush2.bf16.msra.mxu0 %v2238
    %3767 = vmatprep.mubr.bf16.mxu0 %v3734
    %3768 = vmatmul.mubr.bf16.gmra.mxu0 %v3733
    %v3769 = vpop.f32.mrf.mxu0
    %v3770 = vadd.f32 0.0, %v3769
    %v3771 = vpop.f32.mrf.mxu0
    %v3772 = vadd.f32 0.0, %v3771
    %v3773 = vpop.f32.mrf.mxu0
    %v3774 = vpop.f32.mrf.mxu0
    %3775 = vdwg.mxu0
    %3776 = vmatprep.subr.bf16.mxu0 %v2235
    %3777 = vmatpush1.bf16.msra.mxu0 %v2234
    %3778 = vmatprep.subr.bf16.mxu0 %v2229
    %3779 = vmatpush1.bf16.msra.mxu0 %v2228
    %3780 = vmatprep.subr.bf16.mxu0 %v2223
    %3781 = vmatpush1.bf16.msra.mxu0 %v2222
    %3782 = vmatprep.subr.bf16.mxu0 %v2217
    %3783 = vmatpush1.bf16.msra.mxu0 %v2216
    %3784 = vmatprep.subr.bf16.mxu0 %v2211
    %3785 = vmatpush1.bf16.msra.mxu0 %v2210
    %3786 = vmatprep.subr.bf16.mxu0 %v2205
    %3787 = vmatpush1.bf16.msra.mxu0 %v2204
    %3788 = vmatprep.subr.bf16.mxu0 %v2199
    %3789 = vmatpush1.bf16.msra.mxu0 %v2198
    %3790 = vmatprep.subr.bf16.mxu0 %v2193
    %3791 = vmatpush1.bf16.msra.mxu0 %v2192
    %3792 = vmatprep.subr.bf16.mxu0 %v2283
    %3793 = vmatpush2.bf16.msra.mxu0 %v2282
    %3794 = vmatprep.subr.bf16.mxu0 %v2277
    %3795 = vmatpush2.bf16.msra.mxu0 %v2276
    %3796 = vmatprep.subr.bf16.mxu0 %v2271
    %3797 = vmatpush2.bf16.msra.mxu0 %v2270
    %3798 = vmatprep.subr.bf16.mxu0 %v2265
    %3799 = vmatpush2.bf16.msra.mxu0 %v2264
    %3800 = vmatprep.subr.bf16.mxu0 %v2259
    %3801 = vmatpush2.bf16.msra.mxu0 %v2258
    %3802 = vmatprep.subr.bf16.mxu0 %v2253
    %3803 = vmatpush2.bf16.msra.mxu0 %v2252
    %3804 = vmatprep.subr.bf16.mxu0 %v2247
    %3805 = vmatpush2.bf16.msra.mxu0 %v2246
    %3806 = vmatprep.subr.bf16.mxu0 %v2241
    %3807 = vmatpush2.bf16.msra.mxu0 %v2240
    %3808 = vmatprep.mubr.bf16.mxu0 %v3734
    %3809 = vmatmul.mubr.bf16.gmra.mxu0 %v3733
    %v3810 = vpop.f32.mrf.mxu0
    %v3811 = vadd.f32 0.0, %v3810
    %v3812 = vpop.f32.mrf.mxu0
    %v3813 = vadd.f32 0.0, %v3812
    %v3814 = vpop.f32.mrf.mxu0
    %v3815 = vpop.f32.mrf.mxu0
    %3816 = vdwg.mxu0
    %3817 = vmatprep.subr.bf16.mxu0 %v2237
    %3818 = vmatpush1.bf16.msra.mxu0 %v2236
    %3819 = vmatprep.subr.bf16.mxu0 %v2231
    %3820 = vmatpush1.bf16.msra.mxu0 %v2230
    %3821 = vmatprep.subr.bf16.mxu0 %v2225
    %3822 = vmatpush1.bf16.msra.mxu0 %v2224
    %3823 = vmatprep.subr.bf16.mxu0 %v2219
    %3824 = vmatpush1.bf16.msra.mxu0 %v2218
    %3825 = vmatprep.subr.bf16.mxu0 %v2213
    %3826 = vmatpush1.bf16.msra.mxu0 %v2212
    %3827 = vmatprep.subr.bf16.mxu0 %v2207
    %3828 = vmatpush1.bf16.msra.mxu0 %v2206
    %3829 = vmatprep.subr.bf16.mxu0 %v2201
    %3830 = vmatpush1.bf16.msra.mxu0 %v2200
    %3831 = vmatprep.subr.bf16.mxu0 %v2195
    %3832 = vmatpush1.bf16.msra.mxu0 %v2194
    %3833 = vmatprep.subr.bf16.mxu0 %v2285
    %3834 = vmatpush2.bf16.msra.mxu0 %v2284
    %3835 = vmatprep.subr.bf16.mxu0 %v2279
    %3836 = vmatpush2.bf16.msra.mxu0 %v2278
    %3837 = vmatprep.subr.bf16.mxu0 %v2273
    %3838 = vmatpush2.bf16.msra.mxu0 %v2272
    %3839 = vmatprep.subr.bf16.mxu0 %v2267
    %3840 = vmatpush2.bf16.msra.mxu0 %v2266
    %3841 = vmatprep.subr.bf16.mxu0 %v2261
    %3842 = vmatpush2.bf16.msra.mxu0 %v2260
    %3843 = vmatprep.subr.bf16.mxu0 %v2255
    %3844 = vmatpush2.bf16.msra.mxu0 %v2254
    %3845 = vmatprep.subr.bf16.mxu0 %v2249
    %3846 = vmatpush2.bf16.msra.mxu0 %v2248
    %3847 = vmatprep.subr.bf16.mxu0 %v2243
    %3848 = vmatpush2.bf16.msra.mxu0 %v2242
    %3849 = vmatprep.mubr.bf16.mxu0 %v3734
    %3850 = vmatmul.mubr.bf16.gmra.mxu0 %v3733
    %v3851 = vpop.f32.mrf.mxu0
    %v3852 = vadd.f32 0.0, %v3851
    %v3853 = vpop.f32.mrf.mxu0
    %v3854 = vadd.f32 0.0, %v3853
    %v3855 = vpop.f32.mrf.mxu0
    %v3856 = vpop.f32.mrf.mxu0
    %3857 = vdwg.mxu0
    %v3858 = vadd.f32 %v3645, %v3770
    %v3859 = vadd.f32 %v3647, %v3772
    %v3860 = vadd.f32 %v3686, %v3811
    %v3861 = vadd.f32 %v3688, %v3813
    %v3862 = vmul.f32 %v3858, 0.5
    %v3863 = vmul.f32 %v3859, 0.5
    %v3864 = vmul.f32 %v3860, 0.5
    %v3865 = vmul.f32 %v3861, 0.5
    %v3866 = vtanh.pop %v3862
    %v3867 = vtanh.pop %v3863
    %v3868 = vtanh.pop %v3864
    %v3869 = vtanh.pop %v3865
    %v3870 = vadd.f32 %v3866, 1.0
    %v3871 = vadd.f32 %v3867, 1.0
    %v3872 = vadd.f32 %v3868, 1.0
    %v3873 = vadd.f32 %v3869, 1.0
    %v3874 = vmul.f32 %v3870, 0.5
    %v3875 = vmul.f32 %v3871, 0.5
    %v3876 = vmul.f32 %v3872, 0.5
    %v3877 = vmul.f32 %v3873, 0.5
    %v3878 = vadd.f32 %v3852, %v461
    %v3879 = vadd.f32 %v3854, %v465
    %v3880 = vmul.f32 %v3874, %v3878
    %v3881 = vmul.f32 %v3875, %v3879
    %v3882 = vadd.f32 %v3727, %v3880
    %v3883 = vadd.f32 %v3729, %v3881
    %v3884 = vtanh.pop %v3882
    %v3885 = vtanh.pop %v3883
    %v3886 = vsub.f32 1.0, %v3876
    %v3887 = vsub.f32 1.0, %v3877
    %v3888 = vmul.f32 %v3886, %v3884
    %v3889 = vmul.f32 %v3887, %v3885
    %v3890 = vmul.f32 %v3876, %v3439
    %v3891 = vmul.f32 %v3877, %v3440
    %v3892 = vadd.f32 %v3888, %v3890
    %v3893 = vadd.f32 %v3889, %v3891
    %v3896 = vrot.slane %v3892, 2
    %v3897 = vrot.slane %v3893, 2
    %3900 = vst [vmem:[#allocation2] sm:$0xc0] %v3896
    %3901 = vst [vmem:[#allocation2 + $0x8] sm:$0xc0] %v3897
    %3902 = vmatprep.subr.bf16.mxu0 %v989
    %3903 = vmatpush1.bf16.msra.mxu0 %v988
    %3904 = vmatprep.subr.bf16.mxu0 %v983
    %3905 = vmatpush1.bf16.msra.mxu0 %v982
    %3906 = vmatprep.subr.bf16.mxu0 %v977
    %3907 = vmatpush1.bf16.msra.mxu0 %v976
    %3908 = vmatprep.subr.bf16.mxu0 %v971
    %3909 = vmatpush1.bf16.msra.mxu0 %v970
    %3910 = vmatprep.subr.bf16.mxu0 %v965
    %3911 = vmatpush1.bf16.msra.mxu0 %v964
    %3912 = vmatprep.subr.bf16.mxu0 %v959
    %3913 = vmatpush1.bf16.msra.mxu0 %v958
    %3914 = vmatprep.subr.bf16.mxu0 %v953
    %3915 = vmatpush1.bf16.msra.mxu0 %v952
    %3916 = vmatprep.subr.bf16.mxu0 %v947
    %3917 = vmatpush1.bf16.msra.mxu0 %v946
    %3918 = vmatprep.subr.bf16.mxu0 %v1037
    %3919 = vmatpush2.bf16.msra.mxu0 %v1036
    %3920 = vmatprep.subr.bf16.mxu0 %v1031
    %3921 = vmatpush2.bf16.msra.mxu0 %v1030
    %3922 = vmatprep.subr.bf16.mxu0 %v1025
    %3923 = vmatpush2.bf16.msra.mxu0 %v1024
    %3924 = vmatprep.subr.bf16.mxu0 %v1019
    %3925 = vmatpush2.bf16.msra.mxu0 %v1018
    %3926 = vmatprep.subr.bf16.mxu0 %v1013
    %3927 = vmatpush2.bf16.msra.mxu0 %v1012
    %3928 = vmatprep.subr.bf16.mxu0 %v1007
    %3929 = vmatpush2.bf16.msra.mxu0 %v1006
    %3930 = vmatprep.subr.bf16.mxu0 %v1001
    %3931 = vmatpush2.bf16.msra.mxu0 %v1000
    %3932 = vmatprep.subr.bf16.mxu0 %v995
    %3933 = vmatpush2.bf16.msra.mxu0 %v994
    %3934 = vmatprep.mubr.bf16.mxu0 %v3609
    %3935 = vmatmul.mubr.bf16.gmra.mxu0 %v3608
    %v3936 = vpop.f32.mrf.mxu0
    %v3937 = vadd.f32 0.0, %v3936
    %v3938 = vpop.f32.mrf.mxu0
    %v3939 = vadd.f32 0.0, %v3938
    %v3940 = vpop.f32.mrf.mxu0
    %v3941 = vpop.f32.mrf.mxu0
    %3942 = vdwg.mxu0
    %3943 = vmatprep.subr.bf16.mxu0 %v991
    %3944 = vmatpush1.bf16.msra.mxu0 %v990
    %3945 = vmatprep.subr.bf16.mxu0 %v985
    %3946 = vmatpush1.bf16.msra.mxu0 %v984
    %3947 = vmatprep.subr.bf16.mxu0 %v979
    %3948 = vmatpush1.bf16.msra.mxu0 %v978
    %3949 = vmatprep.subr.bf16.mxu0 %v973
    %3950 = vmatpush1.bf16.msra.mxu0 %v972
    %3951 = vmatprep.subr.bf16.mxu0 %v967
    %3952 = vmatpush1.bf16.msra.mxu0 %v966
    %3953 = vmatprep.subr.bf16.mxu0 %v961
    %3954 = vmatpush1.bf16.msra.mxu0 %v960
    %3955 = vmatprep.subr.bf16.mxu0 %v955
    %3956 = vmatpush1.bf16.msra.mxu0 %v954
    %3957 = vmatprep.subr.bf16.mxu0 %v949
    %3958 = vmatpush1.bf16.msra.mxu0 %v948
    %3959 = vmatprep.subr.bf16.mxu0 %v1039
    %3960 = vmatpush2.bf16.msra.mxu0 %v1038
    %3961 = vmatprep.subr.bf16.mxu0 %v1033
    %3962 = vmatpush2.bf16.msra.mxu0 %v1032
    %3963 = vmatprep.subr.bf16.mxu0 %v1027
    %3964 = vmatpush2.bf16.msra.mxu0 %v1026
    %3965 = vmatprep.subr.bf16.mxu0 %v1021
    %3966 = vmatpush2.bf16.msra.mxu0 %v1020
    %3967 = vmatprep.subr.bf16.mxu0 %v1015
    %3968 = vmatpush2.bf16.msra.mxu0 %v1014
    %3969 = vmatprep.subr.bf16.mxu0 %v1009
    %3970 = vmatpush2.bf16.msra.mxu0 %v1008
    %3971 = vmatprep.subr.bf16.mxu0 %v1003
    %3972 = vmatpush2.bf16.msra.mxu0 %v1002
    %3973 = vmatprep.subr.bf16.mxu0 %v997
    %3974 = vmatpush2.bf16.msra.mxu0 %v996
    %3975 = vmatprep.mubr.bf16.mxu0 %v3609
    %3976 = vmatmul.mubr.bf16.gmra.mxu0 %v3608
    %v3977 = vpop.f32.mrf.mxu0
    %v3978 = vadd.f32 0.0, %v3977
    %v3979 = vpop.f32.mrf.mxu0
    %v3980 = vadd.f32 0.0, %v3979
    %v3981 = vpop.f32.mrf.mxu0
    %v3982 = vpop.f32.mrf.mxu0
    %3983 = vdwg.mxu0
    %3984 = vmatprep.subr.bf16.mxu0 %v993
    %3985 = vmatpush1.bf16.msra.mxu0 %v992
    %3986 = vmatprep.subr.bf16.mxu0 %v987
    %3987 = vmatpush1.bf16.msra.mxu0 %v986
    %3988 = vmatprep.subr.bf16.mxu0 %v981
    %3989 = vmatpush1.bf16.msra.mxu0 %v980
    %3990 = vmatprep.subr.bf16.mxu0 %v975
    %3991 = vmatpush1.bf16.msra.mxu0 %v974
    %3992 = vmatprep.subr.bf16.mxu0 %v969
    %3993 = vmatpush1.bf16.msra.mxu0 %v968
    %3994 = vmatprep.subr.bf16.mxu0 %v963
    %3995 = vmatpush1.bf16.msra.mxu0 %v962
    %3996 = vmatprep.subr.bf16.mxu0 %v957
    %3997 = vmatpush1.bf16.msra.mxu0 %v956
    %3998 = vmatprep.subr.bf16.mxu0 %v951
    %3999 = vmatpush1.bf16.msra.mxu0 %v950
    %4000 = vmatprep.subr.bf16.mxu0 %v1041
    %4001 = vmatpush2.bf16.msra.mxu0 %v1040
    %4002 = vmatprep.subr.bf16.mxu0 %v1035
    %4003 = vmatpush2.bf16.msra.mxu0 %v1034
    %4004 = vmatprep.subr.bf16.mxu0 %v1029
    %4005 = vmatpush2.bf16.msra.mxu0 %v1028
    %4006 = vmatprep.subr.bf16.mxu0 %v1023
    %4007 = vmatpush2.bf16.msra.mxu0 %v1022
    %4008 = vmatprep.subr.bf16.mxu0 %v1017
    %4009 = vmatpush2.bf16.msra.mxu0 %v1016
    %4010 = vmatprep.subr.bf16.mxu0 %v1011
    %4011 = vmatpush2.bf16.msra.mxu0 %v1010
    %4012 = vmatprep.subr.bf16.mxu0 %v1005
    %4013 = vmatpush2.bf16.msra.mxu0 %v1004
    %4014 = vmatprep.subr.bf16.mxu0 %v999
    %4015 = vmatpush2.bf16.msra.mxu0 %v998
    %4016 = vmatprep.mubr.bf16.mxu0 %v3609
    %4017 = vmatmul.mubr.bf16.gmra.mxu0 %v3608
    %v4018 = vpop.f32.mrf.mxu0
    %v4019 = vadd.f32 0.0, %v4018
    %v4020 = vpop.f32.mrf.mxu0
    %v4021 = vadd.f32 0.0, %v4020
    %v4022 = vpop.f32.mrf.mxu0
    %v4023 = vpop.f32.mrf.mxu0
    %4024 = vdwg.mxu0
    %v4025 = vadd.f32 %v570, %v3937
    %v4026 = vadd.f32 %v572, %v3939
    %v4027 = vadd.f32 %v611, %v3978
    %v4028 = vadd.f32 %v613, %v3980
    %v4029 = vmul.f32 %v4025, 0.5
    %v4030 = vmul.f32 %v4026, 0.5
    %v4031 = vmul.f32 %v4027, 0.5
    %v4032 = vmul.f32 %v4028, 0.5
    %v4033 = vtanh.pop %v4029
    %v4034 = vtanh.pop %v4030
    %v4035 = vtanh.pop %v4031
    %v4036 = vtanh.pop %v4032
    %v4037 = vadd.f32 %v4033, 1.0
    %v4038 = vadd.f32 %v4034, 1.0
    %v4039 = vadd.f32 %v4035, 1.0
    %v4040 = vadd.f32 %v4036, 1.0
    %v4041 = vmul.f32 %v4037, 0.5
    %v4042 = vmul.f32 %v4038, 0.5
    %v4043 = vmul.f32 %v4039, 0.5
    %v4044 = vmul.f32 %v4040, 0.5
    %v4045 = vadd.f32 %v4019, %v448
    %v4046 = vadd.f32 %v4021, %v452
    %v4047 = vmul.f32 %v4041, %v4045
    %v4048 = vmul.f32 %v4042, %v4046
    %v4049 = vadd.f32 %v652, %v4047
    %v4050 = vadd.f32 %v654, %v4048
    %v4051 = vtanh.pop %v4049
    %v4052 = vtanh.pop %v4050
    %v4053 = vsub.f32 1.0, %v4043
    %v4054 = vsub.f32 1.0, %v4044
    %v4055 = vmul.f32 %v4053, %v4051
    %v4056 = vmul.f32 %v4054, %v4052
    %v4057 = vmul.f32 %v4043, %v3606
    %v4058 = vmul.f32 %v4044, %v3607
    %v4059 = vadd.f32 %v4055, %v4057
    %v4060 = vadd.f32 %v4056, %v4058
    %v4061 = vpack.c.bf16 %v4059, %v4059
    %v4062 = vpack.c.bf16 %v4060, %v4060
    %4063 = vmatprep.subr.bf16.mxu0 %v1630
    %4064 = vmatpush1.bf16.msra.mxu0 %v1629
    %4065 = vmatprep.subr.bf16.mxu0 %v1624
    %4066 = vmatpush1.bf16.msra.mxu0 %v1623
    %4067 = vmatprep.subr.bf16.mxu0 %v1618
    %4068 = vmatpush1.bf16.msra.mxu0 %v1617
    %4069 = vmatprep.subr.bf16.mxu0 %v1612
    %4070 = vmatpush1.bf16.msra.mxu0 %v1611
    %4071 = vmatprep.subr.bf16.mxu0 %v1606
    %4072 = vmatpush1.bf16.msra.mxu0 %v1605
    %4073 = vmatprep.subr.bf16.mxu0 %v1600
    %4074 = vmatpush1.bf16.msra.mxu0 %v1599
    %4075 = vmatprep.subr.bf16.mxu0 %v1594
    %4076 = vmatpush1.bf16.msra.mxu0 %v1593
    %4077 = vmatprep.subr.bf16.mxu0 %v1588
    %4078 = vmatpush1.bf16.msra.mxu0 %v1587
    %4079 = vmatprep.subr.bf16.mxu0 %v1678
    %4080 = vmatpush2.bf16.msra.mxu0 %v1677
    %4081 = vmatprep.subr.bf16.mxu0 %v1672
    %4082 = vmatpush2.bf16.msra.mxu0 %v1671
    %4083 = vmatprep.subr.bf16.mxu0 %v1666
    %4084 = vmatpush2.bf16.msra.mxu0 %v1665
    %4085 = vmatprep.subr.bf16.mxu0 %v1660
    %4086 = vmatpush2.bf16.msra.mxu0 %v1659
    %4087 = vmatprep.subr.bf16.mxu0 %v1654
    %4088 = vmatpush2.bf16.msra.mxu0 %v1653
    %4089 = vmatprep.subr.bf16.mxu0 %v1648
    %4090 = vmatpush2.bf16.msra.mxu0 %v1647
    %4091 = vmatprep.subr.bf16.mxu0 %v1642
    %4092 = vmatpush2.bf16.msra.mxu0 %v1641
    %4093 = vmatprep.subr.bf16.mxu0 %v1636
    %4094 = vmatpush2.bf16.msra.mxu0 %v1635
    %4095 = vmatprep.mubr.bf16.mxu0 %v4062
    %4096 = vmatmul.mubr.bf16.gmra.mxu0 %v4061
    %v4097 = vpop.f32.mrf.mxu0
    %v4098 = vadd.f32 %v415, %v4097
    %v4099 = vpop.f32.mrf.mxu0
    %v4100 = vadd.f32 %v419, %v4099
    %v4101 = vpop.f32.mrf.mxu0
    %v4102 = vpop.f32.mrf.mxu0
    %4103 = vdwg.mxu0
    %4104 = vmatprep.subr.bf16.mxu0 %v1632
    %4105 = vmatpush1.bf16.msra.mxu0 %v1631
    %4106 = vmatprep.subr.bf16.mxu0 %v1626
    %4107 = vmatpush1.bf16.msra.mxu0 %v1625
    %4108 = vmatprep.subr.bf16.mxu0 %v1620
    %4109 = vmatpush1.bf16.msra.mxu0 %v1619
    %4110 = vmatprep.subr.bf16.mxu0 %v1614
    %4111 = vmatpush1.bf16.msra.mxu0 %v1613
    %4112 = vmatprep.subr.bf16.mxu0 %v1608
    %4113 = vmatpush1.bf16.msra.mxu0 %v1607
    %4114 = vmatprep.subr.bf16.mxu0 %v1602
    %4115 = vmatpush1.bf16.msra.mxu0 %v1601
    %4116 = vmatprep.subr.bf16.mxu0 %v1596
    %4117 = vmatpush1.bf16.msra.mxu0 %v1595
    %4118 = vmatprep.subr.bf16.mxu0 %v1590
    %4119 = vmatpush1.bf16.msra.mxu0 %v1589
    %4120 = vmatprep.subr.bf16.mxu0 %v1680
    %4121 = vmatpush2.bf16.msra.mxu0 %v1679
    %4122 = vmatprep.subr.bf16.mxu0 %v1674
    %4123 = vmatpush2.bf16.msra.mxu0 %v1673
    %4124 = vmatprep.subr.bf16.mxu0 %v1668
    %4125 = vmatpush2.bf16.msra.mxu0 %v1667
    %4126 = vmatprep.subr.bf16.mxu0 %v1662
    %4127 = vmatpush2.bf16.msra.mxu0 %v1661
    %4128 = vmatprep.subr.bf16.mxu0 %v1656
    %4129 = vmatpush2.bf16.msra.mxu0 %v1655
    %4130 = vmatprep.subr.bf16.mxu0 %v1650
    %4131 = vmatpush2.bf16.msra.mxu0 %v1649
    %4132 = vmatprep.subr.bf16.mxu0 %v1644
    %4133 = vmatpush2.bf16.msra.mxu0 %v1643
    %4134 = vmatprep.subr.bf16.mxu0 %v1638
    %4135 = vmatpush2.bf16.msra.mxu0 %v1637
    %4136 = vmatprep.mubr.bf16.mxu0 %v4062
    %4137 = vmatmul.mubr.bf16.gmra.mxu0 %v4061
    %v4138 = vpop.f32.mrf.mxu0
    %v4139 = vadd.f32 %v423, %v4138
    %v4140 = vpop.f32.mrf.mxu0
    %v4141 = vadd.f32 %v427, %v4140
    %v4142 = vpop.f32.mrf.mxu0
    %v4143 = vpop.f32.mrf.mxu0
    %4144 = vdwg.mxu0
    %4145 = vmatprep.subr.bf16.mxu0 %v1634
    %4146 = vmatpush1.bf16.msra.mxu0 %v1633
    %4147 = vmatprep.subr.bf16.mxu0 %v1628
    %4148 = vmatpush1.bf16.msra.mxu0 %v1627
    %4149 = vmatprep.subr.bf16.mxu0 %v1622
    %4150 = vmatpush1.bf16.msra.mxu0 %v1621
    %4151 = vmatprep.subr.bf16.mxu0 %v1616
    %4152 = vmatpush1.bf16.msra.mxu0 %v1615
    %4153 = vmatprep.subr.bf16.mxu0 %v1610
    %4154 = vmatpush1.bf16.msra.mxu0 %v1609
    %4155 = vmatprep.subr.bf16.mxu0 %v1604
    %4156 = vmatpush1.bf16.msra.mxu0 %v1603
    %4157 = vmatprep.subr.bf16.mxu0 %v1598
    %4158 = vmatpush1.bf16.msra.mxu0 %v1597
    %4159 = vmatprep.subr.bf16.mxu0 %v1592
    %4160 = vmatpush1.bf16.msra.mxu0 %v1591
    %4161 = vmatprep.subr.bf16.mxu0 %v1682
    %4162 = vmatpush2.bf16.msra.mxu0 %v1681
    %4163 = vmatprep.subr.bf16.mxu0 %v1676
    %4164 = vmatpush2.bf16.msra.mxu0 %v1675
    %4165 = vmatprep.subr.bf16.mxu0 %v1670
    %4166 = vmatpush2.bf16.msra.mxu0 %v1669
    %4167 = vmatprep.subr.bf16.mxu0 %v1664
    %4168 = vmatpush2.bf16.msra.mxu0 %v1663
    %4169 = vmatprep.subr.bf16.mxu0 %v1658
    %4170 = vmatpush2.bf16.msra.mxu0 %v1657
    %4171 = vmatprep.subr.bf16.mxu0 %v1652
    %4172 = vmatpush2.bf16.msra.mxu0 %v1651
    %4173 = vmatprep.subr.bf16.mxu0 %v1646
    %4174 = vmatpush2.bf16.msra.mxu0 %v1645
    %4175 = vmatprep.subr.bf16.mxu0 %v1640
    %4176 = vmatpush2.bf16.msra.mxu0 %v1639
    %4177 = vmatprep.mubr.bf16.mxu0 %v4062
    %4178 = vmatmul.mubr.bf16.gmra.mxu0 %v4061
    %v4179 = vpop.f32.mrf.mxu0
    %v4180 = vadd.f32 %v431, %v4179
    %v4181 = vpop.f32.mrf.mxu0
    %v4182 = vadd.f32 %v435, %v4181
    %v4183 = vpop.f32.mrf.mxu0
    %v4184 = vpop.f32.mrf.mxu0
    %4185 = vdwg.mxu0
    %v4186 = vpack.c.bf16 %v3892, %v3892
    %v4187 = vpack.c.bf16 %v3893, %v3893
    %4188 = vmatprep.subr.bf16.mxu0 %v2233
    %4189 = vmatpush1.bf16.msra.mxu0 %v2232
    %4190 = vmatprep.subr.bf16.mxu0 %v2227
    %4191 = vmatpush1.bf16.msra.mxu0 %v2226
    %4192 = vmatprep.subr.bf16.mxu0 %v2221
    %4193 = vmatpush1.bf16.msra.mxu0 %v2220
    %4194 = vmatprep.subr.bf16.mxu0 %v2215
    %4195 = vmatpush1.bf16.msra.mxu0 %v2214
    %4196 = vmatprep.subr.bf16.mxu0 %v2209
    %4197 = vmatpush1.bf16.msra.mxu0 %v2208
    %4198 = vmatprep.subr.bf16.mxu0 %v2203
    %4199 = vmatpush1.bf16.msra.mxu0 %v2202
    %4200 = vmatprep.subr.bf16.mxu0 %v2197
    %4201 = vmatpush1.bf16.msra.mxu0 %v2196
    %4202 = vmatprep.subr.bf16.mxu0 %v2191
    %4203 = vmatpush1.bf16.msra.mxu0 %v2190
    %4204 = vmatprep.subr.bf16.mxu0 %v2281
    %4205 = vmatpush2.bf16.msra.mxu0 %v2280
    %4206 = vmatprep.subr.bf16.mxu0 %v2275
    %4207 = vmatpush2.bf16.msra.mxu0 %v2274
    %4208 = vmatprep.subr.bf16.mxu0 %v2269
    %4209 = vmatpush2.bf16.msra.mxu0 %v2268
    %4210 = vmatprep.subr.bf16.mxu0 %v2263
    %4211 = vmatpush2.bf16.msra.mxu0 %v2262
    %4212 = vmatprep.subr.bf16.mxu0 %v2257
    %4213 = vmatpush2.bf16.msra.mxu0 %v2256
    %4214 = vmatprep.subr.bf16.mxu0 %v2251
    %4215 = vmatpush2.bf16.msra.mxu0 %v2250
    %4216 = vmatprep.subr.bf16.mxu0 %v2245
    %4217 = vmatpush2.bf16.msra.mxu0 %v2244
    %4218 = vmatprep.subr.bf16.mxu0 %v2239
    %4219 = vmatpush2.bf16.msra.mxu0 %v2238
    %4220 = vmatprep.mubr.bf16.mxu0 %v4187
    %4221 = vmatmul.mubr.bf16.gmra.mxu0 %v4186
    %v4222 = vpop.f32.mrf.mxu0
    %v4223 = vadd.f32 0.0, %v4222
    %v4224 = vpop.f32.mrf.mxu0
    %v4225 = vadd.f32 0.0, %v4224
    %v4226 = vpop.f32.mrf.mxu0
    %v4227 = vpop.f32.mrf.mxu0
    %4228 = vdwg.mxu0
    %4229 = vmatprep.subr.bf16.mxu0 %v2235
    %4230 = vmatpush1.bf16.msra.mxu0 %v2234
    %4231 = vmatprep.subr.bf16.mxu0 %v2229
    %4232 = vmatpush1.bf16.msra.mxu0 %v2228
    %4233 = vmatprep.subr.bf16.mxu0 %v2223
    %4234 = vmatpush1.bf16.msra.mxu0 %v2222
    %4235 = vmatprep.subr.bf16.mxu0 %v2217
    %4236 = vmatpush1.bf16.msra.mxu0 %v2216
    %4237 = vmatprep.subr.bf16.mxu0 %v2211
    %4238 = vmatpush1.bf16.msra.mxu0 %v2210
    %4239 = vmatprep.subr.bf16.mxu0 %v2205
    %4240 = vmatpush1.bf16.msra.mxu0 %v2204
    %4241 = vmatprep.subr.bf16.mxu0 %v2199
    %4242 = vmatpush1.bf16.msra.mxu0 %v2198
    %4243 = vmatprep.subr.bf16.mxu0 %v2193
    %4244 = vmatpush1.bf16.msra.mxu0 %v2192
    %4245 = vmatprep.subr.bf16.mxu0 %v2283
    %4246 = vmatpush2.bf16.msra.mxu0 %v2282
    %4247 = vmatprep.subr.bf16.mxu0 %v2277
    %4248 = vmatpush2.bf16.msra.mxu0 %v2276
    %4249 = vmatprep.subr.bf16.mxu0 %v2271
    %4250 = vmatpush2.bf16.msra.mxu0 %v2270
    %4251 = vmatprep.subr.bf16.mxu0 %v2265
    %4252 = vmatpush2.bf16.msra.mxu0 %v2264
    %4253 = vmatprep.subr.bf16.mxu0 %v2259
    %4254 = vmatpush2.bf16.msra.mxu0 %v2258
    %4255 = vmatprep.subr.bf16.mxu0 %v2253
    %4256 = vmatpush2.bf16.msra.mxu0 %v2252
    %4257 = vmatprep.subr.bf16.mxu0 %v2247
    %4258 = vmatpush2.bf16.msra.mxu0 %v2246
    %4259 = vmatprep.subr.bf16.mxu0 %v2241
    %4260 = vmatpush2.bf16.msra.mxu0 %v2240
    %4261 = vmatprep.mubr.bf16.mxu0 %v4187
    %4262 = vmatmul.mubr.bf16.gmra.mxu0 %v4186
    %v4263 = vpop.f32.mrf.mxu0
    %v4264 = vadd.f32 0.0, %v4263
    %v4265 = vpop.f32.mrf.mxu0
    %v4266 = vadd.f32 0.0, %v4265
    %v4267 = vpop.f32.mrf.mxu0
    %v4268 = vpop.f32.mrf.mxu0
    %4269 = vdwg.mxu0
    %4270 = vmatprep.subr.bf16.mxu0 %v2237
    %4271 = vmatpush1.bf16.msra.mxu0 %v2236
    %4272 = vmatprep.subr.bf16.mxu0 %v2231
    %4273 = vmatpush1.bf16.msra.mxu0 %v2230
    %4274 = vmatprep.subr.bf16.mxu0 %v2225
    %4275 = vmatpush1.bf16.msra.mxu0 %v2224
    %4276 = vmatprep.subr.bf16.mxu0 %v2219
    %4277 = vmatpush1.bf16.msra.mxu0 %v2218
    %4278 = vmatprep.subr.bf16.mxu0 %v2213
    %4279 = vmatpush1.bf16.msra.mxu0 %v2212
    %4280 = vmatprep.subr.bf16.mxu0 %v2207
    %4281 = vmatpush1.bf16.msra.mxu0 %v2206
    %4282 = vmatprep.subr.bf16.mxu0 %v2201
    %4283 = vmatpush1.bf16.msra.mxu0 %v2200
    %4284 = vmatprep.subr.bf16.mxu0 %v2195
    %4285 = vmatpush1.bf16.msra.mxu0 %v2194
    %4286 = vmatprep.subr.bf16.mxu0 %v2285
    %4287 = vmatpush2.bf16.msra.mxu0 %v2284
    %4288 = vmatprep.subr.bf16.mxu0 %v2279
    %4289 = vmatpush2.bf16.msra.mxu0 %v2278
    %4290 = vmatprep.subr.bf16.mxu0 %v2273
    %4291 = vmatpush2.bf16.msra.mxu0 %v2272
    %4292 = vmatprep.subr.bf16.mxu0 %v2267
    %4293 = vmatpush2.bf16.msra.mxu0 %v2266
    %4294 = vmatprep.subr.bf16.mxu0 %v2261
    %4295 = vmatpush2.bf16.msra.mxu0 %v2260
    %4296 = vmatprep.subr.bf16.mxu0 %v2255
    %4297 = vmatpush2.bf16.msra.mxu0 %v2254
    %4298 = vmatprep.subr.bf16.mxu0 %v2249
    %4299 = vmatpush2.bf16.msra.mxu0 %v2248
    %4300 = vmatprep.subr.bf16.mxu0 %v2243
    %4301 = vmatpush2.bf16.msra.mxu0 %v2242
    %4302 = vmatprep.mubr.bf16.mxu0 %v4187
    %4303 = vmatmul.mubr.bf16.gmra.mxu0 %v4186
    %v4304 = vpop.f32.mrf.mxu0
    %v4305 = vadd.f32 0.0, %v4304
    %v4306 = vpop.f32.mrf.mxu0
    %v4307 = vadd.f32 0.0, %v4306
    %v4308 = vpop.f32.mrf.mxu0
    %v4309 = vpop.f32.mrf.mxu0
    %4310 = vdwg.mxu0
    %v4311 = vadd.f32 %v4098, %v4223
    %v4312 = vadd.f32 %v4100, %v4225
    %v4313 = vadd.f32 %v4139, %v4264
    %v4314 = vadd.f32 %v4141, %v4266
    %v4315 = vmul.f32 %v4311, 0.5
    %v4316 = vmul.f32 %v4312, 0.5
    %v4317 = vmul.f32 %v4313, 0.5
    %v4318 = vmul.f32 %v4314, 0.5
    %v4319 = vtanh.pop %v4315
    %v4320 = vtanh.pop %v4316
    %v4321 = vtanh.pop %v4317
    %v4322 = vtanh.pop %v4318
    %v4323 = vadd.f32 %v4319, 1.0
    %v4324 = vadd.f32 %v4320, 1.0
    %v4325 = vadd.f32 %v4321, 1.0
    %v4326 = vadd.f32 %v4322, 1.0
    %v4327 = vmul.f32 %v4323, 0.5
    %v4328 = vmul.f32 %v4324, 0.5
    %v4329 = vmul.f32 %v4325, 0.5
    %v4330 = vmul.f32 %v4326, 0.5
    %v4331 = vadd.f32 %v4305, %v461
    %v4332 = vadd.f32 %v4307, %v465
    %v4333 = vmul.f32 %v4327, %v4331
    %v4334 = vmul.f32 %v4328, %v4332
    %v4335 = vadd.f32 %v4180, %v4333
    %v4336 = vadd.f32 %v4182, %v4334
    %v4337 = vtanh.pop %v4335
    %v4338 = vtanh.pop %v4336
    %v4339 = vsub.f32 1.0, %v4329
    %v4340 = vsub.f32 1.0, %v4330
    %v4341 = vmul.f32 %v4339, %v4337
    %v4342 = vmul.f32 %v4340, %v4338
    %v4343 = vmul.f32 %v4329, %v3892
    %v4344 = vmul.f32 %v4330, %v3893
    %v4345 = vadd.f32 %v4341, %v4343
    %v4346 = vadd.f32 %v4342, %v4344
    %4347 = vst [vmem:[#allocation2 + $0x10] sm:$0x3] %v4345
    %4348 = vst [vmem:[#allocation2 + $0x18] sm:$0x3] %v4346
    %4349 = vmatprep.subr.bf16.mxu0 %v989
    %4350 = vmatpush1.bf16.msra.mxu0 %v988
    %4351 = vmatprep.subr.bf16.mxu0 %v983
    %4352 = vmatpush1.bf16.msra.mxu0 %v982
    %4353 = vmatprep.subr.bf16.mxu0 %v977
    %4354 = vmatpush1.bf16.msra.mxu0 %v976
    %4355 = vmatprep.subr.bf16.mxu0 %v971
    %4356 = vmatpush1.bf16.msra.mxu0 %v970
    %4357 = vmatprep.subr.bf16.mxu0 %v965
    %4358 = vmatpush1.bf16.msra.mxu0 %v964
    %4359 = vmatprep.subr.bf16.mxu0 %v959
    %4360 = vmatpush1.bf16.msra.mxu0 %v958
    %4361 = vmatprep.subr.bf16.mxu0 %v953
    %4362 = vmatpush1.bf16.msra.mxu0 %v952
    %4363 = vmatprep.subr.bf16.mxu0 %v947
    %4364 = vmatpush1.bf16.msra.mxu0 %v946
    %4365 = vmatprep.subr.bf16.mxu0 %v1037
    %4366 = vmatpush2.bf16.msra.mxu0 %v1036
    %4367 = vmatprep.subr.bf16.mxu0 %v1031
    %4368 = vmatpush2.bf16.msra.mxu0 %v1030
    %4369 = vmatprep.subr.bf16.mxu0 %v1025
    %4370 = vmatpush2.bf16.msra.mxu0 %v1024
    %4371 = vmatprep.subr.bf16.mxu0 %v1019
    %4372 = vmatpush2.bf16.msra.mxu0 %v1018
    %4373 = vmatprep.subr.bf16.mxu0 %v1013
    %4374 = vmatpush2.bf16.msra.mxu0 %v1012
    %4375 = vmatprep.subr.bf16.mxu0 %v1007
    %4376 = vmatpush2.bf16.msra.mxu0 %v1006
    %4377 = vmatprep.subr.bf16.mxu0 %v1001
    %4378 = vmatpush2.bf16.msra.mxu0 %v1000
    %4379 = vmatprep.subr.bf16.mxu0 %v995
    %4380 = vmatpush2.bf16.msra.mxu0 %v994
    %4381 = vmatprep.mubr.bf16.mxu0 %v4062
    %4382 = vmatmul.mubr.bf16.gmra.mxu0 %v4061
    %v4383 = vpop.f32.mrf.mxu0
    %v4384 = vadd.f32 0.0, %v4383
    %v4385 = vpop.f32.mrf.mxu0
    %v4386 = vadd.f32 0.0, %v4385
    %v4387 = vpop.f32.mrf.mxu0
    %v4388 = vpop.f32.mrf.mxu0
    %4389 = vdwg.mxu0
    %4390 = vmatprep.subr.bf16.mxu0 %v991
    %4391 = vmatpush1.bf16.msra.mxu0 %v990
    %4392 = vmatprep.subr.bf16.mxu0 %v985
    %4393 = vmatpush1.bf16.msra.mxu0 %v984
    %4394 = vmatprep.subr.bf16.mxu0 %v979
    %4395 = vmatpush1.bf16.msra.mxu0 %v978
    %4396 = vmatprep.subr.bf16.mxu0 %v973
    %4397 = vmatpush1.bf16.msra.mxu0 %v972
    %4398 = vmatprep.subr.bf16.mxu0 %v967
    %4399 = vmatpush1.bf16.msra.mxu0 %v966
    %4400 = vmatprep.subr.bf16.mxu0 %v961
    %4401 = vmatpush1.bf16.msra.mxu0 %v960
    %4402 = vmatprep.subr.bf16.mxu0 %v955
    %4403 = vmatpush1.bf16.msra.mxu0 %v954
    %4404 = vmatprep.subr.bf16.mxu0 %v949
    %4405 = vmatpush1.bf16.msra.mxu0 %v948
    %4406 = vmatprep.subr.bf16.mxu0 %v1039
    %4407 = vmatpush2.bf16.msra.mxu0 %v1038
    %4408 = vmatprep.subr.bf16.mxu0 %v1033
    %4409 = vmatpush2.bf16.msra.mxu0 %v1032
    %4410 = vmatprep.subr.bf16.mxu0 %v1027
    %4411 = vmatpush2.bf16.msra.mxu0 %v1026
    %4412 = vmatprep.subr.bf16.mxu0 %v1021
    %4413 = vmatpush2.bf16.msra.mxu0 %v1020
    %4414 = vmatprep.subr.bf16.mxu0 %v1015
    %4415 = vmatpush2.bf16.msra.mxu0 %v1014
    %4416 = vmatprep.subr.bf16.mxu0 %v1009
    %4417 = vmatpush2.bf16.msra.mxu0 %v1008
    %4418 = vmatprep.subr.bf16.mxu0 %v1003
    %4419 = vmatpush2.bf16.msra.mxu0 %v1002
    %4420 = vmatprep.subr.bf16.mxu0 %v997
    %4421 = vmatpush2.bf16.msra.mxu0 %v996
    %4422 = vmatprep.mubr.bf16.mxu0 %v4062
    %4423 = vmatmul.mubr.bf16.gmra.mxu0 %v4061
    %v4424 = vpop.f32.mrf.mxu0
    %v4425 = vadd.f32 0.0, %v4424
    %v4426 = vpop.f32.mrf.mxu0
    %v4427 = vadd.f32 0.0, %v4426
    %v4428 = vpop.f32.mrf.mxu0
    %v4429 = vpop.f32.mrf.mxu0
    %4430 = vdwg.mxu0
    %4431 = vmatprep.subr.bf16.mxu0 %v993
    %4432 = vmatpush1.bf16.msra.mxu0 %v992
    %4433 = vmatprep.subr.bf16.mxu0 %v987
    %4434 = vmatpush1.bf16.msra.mxu0 %v986
    %4435 = vmatprep.subr.bf16.mxu0 %v981
    %4436 = vmatpush1.bf16.msra.mxu0 %v980
    %4437 = vmatprep.subr.bf16.mxu0 %v975
    %4438 = vmatpush1.bf16.msra.mxu0 %v974
    %4439 = vmatprep.subr.bf16.mxu0 %v969
    %4440 = vmatpush1.bf16.msra.mxu0 %v968
    %4441 = vmatprep.subr.bf16.mxu0 %v963
    %4442 = vmatpush1.bf16.msra.mxu0 %v962
    %4443 = vmatprep.subr.bf16.mxu0 %v957
    %4444 = vmatpush1.bf16.msra.mxu0 %v956
    %4445 = vmatprep.subr.bf16.mxu0 %v951
    %4446 = vmatpush1.bf16.msra.mxu0 %v950
    %4447 = vmatprep.subr.bf16.mxu0 %v1041
    %4448 = vmatpush2.bf16.msra.mxu0 %v1040
    %4449 = vmatprep.subr.bf16.mxu0 %v1035
    %4450 = vmatpush2.bf16.msra.mxu0 %v1034
    %4451 = vmatprep.subr.bf16.mxu0 %v1029
    %4452 = vmatpush2.bf16.msra.mxu0 %v1028
    %4453 = vmatprep.subr.bf16.mxu0 %v1023
    %4454 = vmatpush2.bf16.msra.mxu0 %v1022
    %4455 = vmatprep.subr.bf16.mxu0 %v1017
    %4456 = vmatpush2.bf16.msra.mxu0 %v1016
    %4457 = vmatprep.subr.bf16.mxu0 %v1011
    %4458 = vmatpush2.bf16.msra.mxu0 %v1010
    %4459 = vmatprep.subr.bf16.mxu0 %v1005
    %4460 = vmatpush2.bf16.msra.mxu0 %v1004
    %4461 = vmatprep.subr.bf16.mxu0 %v999
    %4462 = vmatpush2.bf16.msra.mxu0 %v998
    %4463 = vmatprep.mubr.bf16.mxu0 %v4062
    %4464 = vmatmul.mubr.bf16.gmra.mxu0 %v4061
    %v4465 = vpop.f32.mrf.mxu0
    %v4466 = vadd.f32 0.0, %v4465
    %v4467 = vpop.f32.mrf.mxu0
    %v4468 = vadd.f32 0.0, %v4467
    %v4469 = vpop.f32.mrf.mxu0
    %v4470 = vpop.f32.mrf.mxu0
    %4471 = vdwg.mxu0
    %v4472 = vadd.f32 %v570, %v4384
    %v4473 = vadd.f32 %v572, %v4386
    %v4474 = vadd.f32 %v611, %v4425
    %v4475 = vadd.f32 %v613, %v4427
    %v4476 = vmul.f32 %v4472, 0.5
    %v4477 = vmul.f32 %v4473, 0.5
    %v4478 = vmul.f32 %v4474, 0.5
    %v4479 = vmul.f32 %v4475, 0.5
    %v4480 = vtanh.pop %v4476
    %v4481 = vtanh.pop %v4477
    %v4482 = vtanh.pop %v4478
    %v4483 = vtanh.pop %v4479
    %v4484 = vadd.f32 %v4480, 1.0
    %v4485 = vadd.f32 %v4481, 1.0
    %v4486 = vadd.f32 %v4482, 1.0
    %v4487 = vadd.f32 %v4483, 1.0
    %v4488 = vmul.f32 %v4484, 0.5
    %v4489 = vmul.f32 %v4485, 0.5
    %v4490 = vmul.f32 %v4486, 0.5
    %v4491 = vmul.f32 %v4487, 0.5
    %v4492 = vadd.f32 %v4466, %v448
    %v4493 = vadd.f32 %v4468, %v452
    %v4494 = vmul.f32 %v4488, %v4492
    %v4495 = vmul.f32 %v4489, %v4493
    %v4496 = vadd.f32 %v652, %v4494
    %v4497 = vadd.f32 %v654, %v4495
    %v4498 = vtanh.pop %v4496
    %v4499 = vtanh.pop %v4497
    %v4500 = vsub.f32 1.0, %v4490
    %v4501 = vsub.f32 1.0, %v4491
    %v4502 = vmul.f32 %v4500, %v4498
    %v4503 = vmul.f32 %v4501, %v4499
    %v4504 = vmul.f32 %v4490, %v4059
    %v4505 = vmul.f32 %v4491, %v4060
    %v4506 = vadd.f32 %v4502, %v4504
    %v4507 = vadd.f32 %v4503, %v4505
    %v4508 = vpack.c.bf16 %v4506, %v4506
    %v4509 = vpack.c.bf16 %v4507, %v4507
    %4510 = vmatprep.subr.bf16.mxu0 %v1630
    %4511 = vmatpush1.bf16.msra.mxu0 %v1629
    %4512 = vmatprep.subr.bf16.mxu0 %v1624
    %4513 = vmatpush1.bf16.msra.mxu0 %v1623
    %4514 = vmatprep.subr.bf16.mxu0 %v1618
    %4515 = vmatpush1.bf16.msra.mxu0 %v1617
    %4516 = vmatprep.subr.bf16.mxu0 %v1612
    %4517 = vmatpush1.bf16.msra.mxu0 %v1611
    %4518 = vmatprep.subr.bf16.mxu0 %v1606
    %4519 = vmatpush1.bf16.msra.mxu0 %v1605
    %4520 = vmatprep.subr.bf16.mxu0 %v1600
    %4521 = vmatpush1.bf16.msra.mxu0 %v1599
    %4522 = vmatprep.subr.bf16.mxu0 %v1594
    %4523 = vmatpush1.bf16.msra.mxu0 %v1593
    %4524 = vmatprep.subr.bf16.mxu0 %v1588
    %4525 = vmatpush1.bf16.msra.mxu0 %v1587
    %4526 = vmatprep.subr.bf16.mxu0 %v1678
    %4527 = vmatpush2.bf16.msra.mxu0 %v1677
    %4528 = vmatprep.subr.bf16.mxu0 %v1672
    %4529 = vmatpush2.bf16.msra.mxu0 %v1671
    %4530 = vmatprep.subr.bf16.mxu0 %v1666
    %4531 = vmatpush2.bf16.msra.mxu0 %v1665
    %4532 = vmatprep.subr.bf16.mxu0 %v1660
    %4533 = vmatpush2.bf16.msra.mxu0 %v1659
    %4534 = vmatprep.subr.bf16.mxu0 %v1654
    %4535 = vmatpush2.bf16.msra.mxu0 %v1653
    %4536 = vmatprep.subr.bf16.mxu0 %v1648
    %4537 = vmatpush2.bf16.msra.mxu0 %v1647
    %4538 = vmatprep.subr.bf16.mxu0 %v1642
    %4539 = vmatpush2.bf16.msra.mxu0 %v1641
    %4540 = vmatprep.subr.bf16.mxu0 %v1636
    %4541 = vmatpush2.bf16.msra.mxu0 %v1635
    %4542 = vmatprep.mubr.bf16.mxu0 %v4509
    %4543 = vmatmul.mubr.bf16.gmra.mxu0 %v4508
    %v4544 = vpop.f32.mrf.mxu0
    %v4545 = vadd.f32 %v415, %v4544
    %v4546 = vpop.f32.mrf.mxu0
    %v4547 = vadd.f32 %v419, %v4546
    %v4548 = vpop.f32.mrf.mxu0
    %v4549 = vpop.f32.mrf.mxu0
    %4550 = vdwg.mxu0
    %4551 = vmatprep.subr.bf16.mxu0 %v1632
    %4552 = vmatpush1.bf16.msra.mxu0 %v1631
    %4553 = vmatprep.subr.bf16.mxu0 %v1626
    %4554 = vmatpush1.bf16.msra.mxu0 %v1625
    %4555 = vmatprep.subr.bf16.mxu0 %v1620
    %4556 = vmatpush1.bf16.msra.mxu0 %v1619
    %4557 = vmatprep.subr.bf16.mxu0 %v1614
    %4558 = vmatpush1.bf16.msra.mxu0 %v1613
    %4559 = vmatprep.subr.bf16.mxu0 %v1608
    %4560 = vmatpush1.bf16.msra.mxu0 %v1607
    %4561 = vmatprep.subr.bf16.mxu0 %v1602
    %4562 = vmatpush1.bf16.msra.mxu0 %v1601
    %4563 = vmatprep.subr.bf16.mxu0 %v1596
    %4564 = vmatpush1.bf16.msra.mxu0 %v1595
    %4565 = vmatprep.subr.bf16.mxu0 %v1590
    %4566 = vmatpush1.bf16.msra.mxu0 %v1589
    %4567 = vmatprep.subr.bf16.mxu0 %v1680
    %4568 = vmatpush2.bf16.msra.mxu0 %v1679
    %4569 = vmatprep.subr.bf16.mxu0 %v1674
    %4570 = vmatpush2.bf16.msra.mxu0 %v1673
    %4571 = vmatprep.subr.bf16.mxu0 %v1668
    %4572 = vmatpush2.bf16.msra.mxu0 %v1667
    %4573 = vmatprep.subr.bf16.mxu0 %v1662
    %4574 = vmatpush2.bf16.msra.mxu0 %v1661
    %4575 = vmatprep.subr.bf16.mxu0 %v1656
    %4576 = vmatpush2.bf16.msra.mxu0 %v1655
    %4577 = vmatprep.subr.bf16.mxu0 %v1650
    %4578 = vmatpush2.bf16.msra.mxu0 %v1649
    %4579 = vmatprep.subr.bf16.mxu0 %v1644
    %4580 = vmatpush2.bf16.msra.mxu0 %v1643
    %4581 = vmatprep.subr.bf16.mxu0 %v1638
    %4582 = vmatpush2.bf16.msra.mxu0 %v1637
    %4583 = vmatprep.mubr.bf16.mxu0 %v4509
    %4584 = vmatmul.mubr.bf16.gmra.mxu0 %v4508
    %v4585 = vpop.f32.mrf.mxu0
    %v4586 = vadd.f32 %v423, %v4585
    %v4587 = vpop.f32.mrf.mxu0
    %v4588 = vadd.f32 %v427, %v4587
    %v4589 = vpop.f32.mrf.mxu0
    %v4590 = vpop.f32.mrf.mxu0
    %4591 = vdwg.mxu0
    %4592 = vmatprep.subr.bf16.mxu0 %v1634
    %4593 = vmatpush1.bf16.msra.mxu0 %v1633
    %4594 = vmatprep.subr.bf16.mxu0 %v1628
    %4595 = vmatpush1.bf16.msra.mxu0 %v1627
    %4596 = vmatprep.subr.bf16.mxu0 %v1622
    %4597 = vmatpush1.bf16.msra.mxu0 %v1621
    %4598 = vmatprep.subr.bf16.mxu0 %v1616
    %4599 = vmatpush1.bf16.msra.mxu0 %v1615
    %4600 = vmatprep.subr.bf16.mxu0 %v1610
    %4601 = vmatpush1.bf16.msra.mxu0 %v1609
    %4602 = vmatprep.subr.bf16.mxu0 %v1604
    %4603 = vmatpush1.bf16.msra.mxu0 %v1603
    %4604 = vmatprep.subr.bf16.mxu0 %v1598
    %4605 = vmatpush1.bf16.msra.mxu0 %v1597
    %4606 = vmatprep.subr.bf16.mxu0 %v1592
    %4607 = vmatpush1.bf16.msra.mxu0 %v1591
    %4608 = vmatprep.subr.bf16.mxu0 %v1682
    %4609 = vmatpush2.bf16.msra.mxu0 %v1681
    %4610 = vmatprep.subr.bf16.mxu0 %v1676
    %4611 = vmatpush2.bf16.msra.mxu0 %v1675
    %4612 = vmatprep.subr.bf16.mxu0 %v1670
    %4613 = vmatpush2.bf16.msra.mxu0 %v1669
    %4614 = vmatprep.subr.bf16.mxu0 %v1664
    %4615 = vmatpush2.bf16.msra.mxu0 %v1663
    %4616 = vmatprep.subr.bf16.mxu0 %v1658
    %4617 = vmatpush2.bf16.msra.mxu0 %v1657
    %4618 = vmatprep.subr.bf16.mxu0 %v1652
    %4619 = vmatpush2.bf16.msra.mxu0 %v1651
    %4620 = vmatprep.subr.bf16.mxu0 %v1646
    %4621 = vmatpush2.bf16.msra.mxu0 %v1645
    %4622 = vmatprep.subr.bf16.mxu0 %v1640
    %4623 = vmatpush2.bf16.msra.mxu0 %v1639
    %4624 = vmatprep.mubr.bf16.mxu0 %v4509
    %4625 = vmatmul.mubr.bf16.gmra.mxu0 %v4508
    %v4626 = vpop.f32.mrf.mxu0
    %v4627 = vadd.f32 %v431, %v4626
    %v4628 = vpop.f32.mrf.mxu0
    %v4629 = vadd.f32 %v435, %v4628
    %v4630 = vpop.f32.mrf.mxu0
    %v4631 = vpop.f32.mrf.mxu0
    %4632 = vdwg.mxu0
    %v4633 = vpack.c.bf16 %v4345, %v4345
    %v4634 = vpack.c.bf16 %v4346, %v4346
    %4635 = vmatprep.subr.bf16.mxu0 %v2233
    %4636 = vmatpush1.bf16.msra.mxu0 %v2232
    %4637 = vmatprep.subr.bf16.mxu0 %v2227
    %4638 = vmatpush1.bf16.msra.mxu0 %v2226
    %4639 = vmatprep.subr.bf16.mxu0 %v2221
    %4640 = vmatpush1.bf16.msra.mxu0 %v2220
    %4641 = vmatprep.subr.bf16.mxu0 %v2215
    %4642 = vmatpush1.bf16.msra.mxu0 %v2214
    %4643 = vmatprep.subr.bf16.mxu0 %v2209
    %4644 = vmatpush1.bf16.msra.mxu0 %v2208
    %4645 = vmatprep.subr.bf16.mxu0 %v2203
    %4646 = vmatpush1.bf16.msra.mxu0 %v2202
    %4647 = vmatprep.subr.bf16.mxu0 %v2197
    %4648 = vmatpush1.bf16.msra.mxu0 %v2196
    %4649 = vmatprep.subr.bf16.mxu0 %v2191
    %4650 = vmatpush1.bf16.msra.mxu0 %v2190
    %4651 = vmatprep.subr.bf16.mxu0 %v2281
    %4652 = vmatpush2.bf16.msra.mxu0 %v2280
    %4653 = vmatprep.subr.bf16.mxu0 %v2275
    %4654 = vmatpush2.bf16.msra.mxu0 %v2274
    %4655 = vmatprep.subr.bf16.mxu0 %v2269
    %4656 = vmatpush2.bf16.msra.mxu0 %v2268
    %4657 = vmatprep.subr.bf16.mxu0 %v2263
    %4658 = vmatpush2.bf16.msra.mxu0 %v2262
    %4659 = vmatprep.subr.bf16.mxu0 %v2257
    %4660 = vmatpush2.bf16.msra.mxu0 %v2256
    %4661 = vmatprep.subr.bf16.mxu0 %v2251
    %4662 = vmatpush2.bf16.msra.mxu0 %v2250
    %4663 = vmatprep.subr.bf16.mxu0 %v2245
    %4664 = vmatpush2.bf16.msra.mxu0 %v2244
    %4665 = vmatprep.subr.bf16.mxu0 %v2239
    %4666 = vmatpush2.bf16.msra.mxu0 %v2238
    %4667 = vmatprep.mubr.bf16.mxu0 %v4634
    %4668 = vmatmul.mubr.bf16.gmra.mxu0 %v4633
    %v4669 = vpop.f32.mrf.mxu0
    %v4670 = vadd.f32 0.0, %v4669
    %v4671 = vpop.f32.mrf.mxu0
    %v4672 = vadd.f32 0.0, %v4671
    %v4673 = vpop.f32.mrf.mxu0
    %v4674 = vpop.f32.mrf.mxu0
    %4675 = vdwg.mxu0
    %4676 = vmatprep.subr.bf16.mxu0 %v2235
    %4677 = vmatpush1.bf16.msra.mxu0 %v2234
    %4678 = vmatprep.subr.bf16.mxu0 %v2229
    %4679 = vmatpush1.bf16.msra.mxu0 %v2228
    %4680 = vmatprep.subr.bf16.mxu0 %v2223
    %4681 = vmatpush1.bf16.msra.mxu0 %v2222
    %4682 = vmatprep.subr.bf16.mxu0 %v2217
    %4683 = vmatpush1.bf16.msra.mxu0 %v2216
    %4684 = vmatprep.subr.bf16.mxu0 %v2211
    %4685 = vmatpush1.bf16.msra.mxu0 %v2210
    %4686 = vmatprep.subr.bf16.mxu0 %v2205
    %4687 = vmatpush1.bf16.msra.mxu0 %v2204
    %4688 = vmatprep.subr.bf16.mxu0 %v2199
    %4689 = vmatpush1.bf16.msra.mxu0 %v2198
    %4690 = vmatprep.subr.bf16.mxu0 %v2193
    %4691 = vmatpush1.bf16.msra.mxu0 %v2192
    %4692 = vmatprep.subr.bf16.mxu0 %v2283
    %4693 = vmatpush2.bf16.msra.mxu0 %v2282
    %4694 = vmatprep.subr.bf16.mxu0 %v2277
    %4695 = vmatpush2.bf16.msra.mxu0 %v2276
    %4696 = vmatprep.subr.bf16.mxu0 %v2271
    %4697 = vmatpush2.bf16.msra.mxu0 %v2270
    %4698 = vmatprep.subr.bf16.mxu0 %v2265
    %4699 = vmatpush2.bf16.msra.mxu0 %v2264
    %4700 = vmatprep.subr.bf16.mxu0 %v2259
    %4701 = vmatpush2.bf16.msra.mxu0 %v2258
    %4702 = vmatprep.subr.bf16.mxu0 %v2253
    %4703 = vmatpush2.bf16.msra.mxu0 %v2252
    %4704 = vmatprep.subr.bf16.mxu0 %v2247
    %4705 = vmatpush2.bf16.msra.mxu0 %v2246
    %4706 = vmatprep.subr.bf16.mxu0 %v2241
    %4707 = vmatpush2.bf16.msra.mxu0 %v2240
    %4708 = vmatprep.mubr.bf16.mxu0 %v4634
    %4709 = vmatmul.mubr.bf16.gmra.mxu0 %v4633
    %v4710 = vpop.f32.mrf.mxu0
    %v4711 = vadd.f32 0.0, %v4710
    %v4712 = vpop.f32.mrf.mxu0
    %v4713 = vadd.f32 0.0, %v4712
    %v4714 = vpop.f32.mrf.mxu0
    %v4715 = vpop.f32.mrf.mxu0
    %4716 = vdwg.mxu0
    %4717 = vmatprep.subr.bf16.mxu0 %v2237
    %4718 = vmatpush1.bf16.msra.mxu0 %v2236
    %4719 = vmatprep.subr.bf16.mxu0 %v2231
    %4720 = vmatpush1.bf16.msra.mxu0 %v2230
    %4721 = vmatprep.subr.bf16.mxu0 %v2225
    %4722 = vmatpush1.bf16.msra.mxu0 %v2224
    %4723 = vmatprep.subr.bf16.mxu0 %v2219
    %4724 = vmatpush1.bf16.msra.mxu0 %v2218
    %4725 = vmatprep.subr.bf16.mxu0 %v2213
    %4726 = vmatpush1.bf16.msra.mxu0 %v2212
    %4727 = vmatprep.subr.bf16.mxu0 %v2207
    %4728 = vmatpush1.bf16.msra.mxu0 %v2206
    %4729 = vmatprep.subr.bf16.mxu0 %v2201
    %4730 = vmatpush1.bf16.msra.mxu0 %v2200
    %4731 = vmatprep.subr.bf16.mxu0 %v2195
    %4732 = vmatpush1.bf16.msra.mxu0 %v2194
    %4733 = vmatprep.subr.bf16.mxu0 %v2285
    %4734 = vmatpush2.bf16.msra.mxu0 %v2284
    %4735 = vmatprep.subr.bf16.mxu0 %v2279
    %4736 = vmatpush2.bf16.msra.mxu0 %v2278
    %4737 = vmatprep.subr.bf16.mxu0 %v2273
    %4738 = vmatpush2.bf16.msra.mxu0 %v2272
    %4739 = vmatprep.subr.bf16.mxu0 %v2267
    %4740 = vmatpush2.bf16.msra.mxu0 %v2266
    %4741 = vmatprep.subr.bf16.mxu0 %v2261
    %4742 = vmatpush2.bf16.msra.mxu0 %v2260
    %4743 = vmatprep.subr.bf16.mxu0 %v2255
    %4744 = vmatpush2.bf16.msra.mxu0 %v2254
    %4745 = vmatprep.subr.bf16.mxu0 %v2249
    %4746 = vmatpush2.bf16.msra.mxu0 %v2248
    %4747 = vmatprep.subr.bf16.mxu0 %v2243
    %4748 = vmatpush2.bf16.msra.mxu0 %v2242
    %4749 = vmatprep.mubr.bf16.mxu0 %v4634
    %4750 = vmatmul.mubr.bf16.gmra.mxu0 %v4633
    %v4751 = vpop.f32.mrf.mxu0
    %v4752 = vadd.f32 0.0, %v4751
    %v4753 = vpop.f32.mrf.mxu0
    %v4754 = vadd.f32 0.0, %v4753
    %v4755 = vpop.f32.mrf.mxu0
    %v4756 = vpop.f32.mrf.mxu0
    %4757 = vdwg.mxu0
    %v4758 = vadd.f32 %v4545, %v4670
    %v4759 = vadd.f32 %v4547, %v4672
    %v4760 = vadd.f32 %v4586, %v4711
    %v4761 = vadd.f32 %v4588, %v4713
    %v4762 = vmul.f32 %v4758, 0.5
    %v4763 = vmul.f32 %v4759, 0.5
    %v4764 = vmul.f32 %v4760, 0.5
    %v4765 = vmul.f32 %v4761, 0.5
    %v4766 = vtanh.pop %v4762
    %v4767 = vtanh.pop %v4763
    %v4768 = vtanh.pop %v4764
    %v4769 = vtanh.pop %v4765
    %v4770 = vadd.f32 %v4766, 1.0
    %v4771 = vadd.f32 %v4767, 1.0
    %v4772 = vadd.f32 %v4768, 1.0
    %v4773 = vadd.f32 %v4769, 1.0
    %v4774 = vmul.f32 %v4770, 0.5
    %v4775 = vmul.f32 %v4771, 0.5
    %v4776 = vmul.f32 %v4772, 0.5
    %v4777 = vmul.f32 %v4773, 0.5
    %v4778 = vadd.f32 %v4752, %v461
    %v4779 = vadd.f32 %v4754, %v465
    %v4780 = vmul.f32 %v4774, %v4778
    %v4781 = vmul.f32 %v4775, %v4779
    %v4782 = vadd.f32 %v4627, %v4780
    %v4783 = vadd.f32 %v4629, %v4781
    %v4784 = vtanh.pop %v4782
    %v4785 = vtanh.pop %v4783
    %v4786 = vsub.f32 1.0, %v4776
    %v4787 = vsub.f32 1.0, %v4777
    %v4788 = vmul.f32 %v4786, %v4784
    %v4789 = vmul.f32 %v4787, %v4785
    %v4790 = vmul.f32 %v4776, %v4345
    %v4791 = vmul.f32 %v4777, %v4346
    %v4792 = vadd.f32 %v4788, %v4790
    %v4793 = vadd.f32 %v4789, %v4791
    %v4796 = vrot.slane %v4792, 6
    %v4797 = vrot.slane %v4793, 6
    %4800 = vst [vmem:[#allocation2 + $0x10] sm:$0xc] %v4796
    %4801 = vst [vmem:[#allocation2 + $0x18] sm:$0xc] %v4797
    %v4802 = vld [vmem:[#allocation2] sm:$0xff]
    %v4803 = vld [vmem:[#allocation2 + $0x8] sm:$0xff]
    %v4804 = vld [vmem:[#allocation2 + $0x10] sm:$0xf]
    %v4805 = vld [vmem:[#allocation2 + $0x18] sm:$0xf]
    %v4806 = vpack.c.bf16 %v4804, %v4802
    %v4807 = vpack.c.bf16 %v4805, %v4803
    %v4808 = vld [vmem:[#allocation8] sm:$0xf]
    %v4809 = vld [vmem:[#allocation8 + $0x4] sm:$0xf]
    %v4810 = vld [vmem:[#allocation8 + $0x8] sm:$0xf]
    %v4811 = vld [vmem:[#allocation8 + $0xc] sm:$0xf]
    %v4812 = vld [vmem:[#allocation8 + $0x10] sm:$0xf]
    %v4813 = vld [vmem:[#allocation8 + $0x14] sm:$0xf]
    %v4814 = vld [vmem:[#allocation8 + $0x18] sm:$0xf]
    %v4815 = vld [vmem:[#allocation8 + $0x1c] sm:$0xf]
    %v4816 = vld [vmem:[#allocation8 + $0x20] sm:$0xf]
    %v4817 = vld [vmem:[#allocation8 + $0x24] sm:$0xf]
    %v4818 = vld [vmem:[#allocation8 + $0x28] sm:$0xf]
    %v4819 = vld [vmem:[#allocation8 + $0x2c] sm:$0xf]
    %v4820 = vld [vmem:[#allocation8 + $0x30] sm:$0xf]
    %v4821 = vld [vmem:[#allocation8 + $0x34] sm:$0xf]
    %v4822 = vld [vmem:[#allocation8 + $0x38] sm:$0xf]
    %v4823 = vld [vmem:[#allocation8 + $0x3c] sm:$0xf]
    %v4824 = vld [vmem:[#allocation8 + $0x40] sm:$0xf]
    %v4825 = vld [vmem:[#allocation8 + $0x44] sm:$0xf]
    %v4826 = vld [vmem:[#allocation8 + $0x48] sm:$0xf]
    %v4827 = vld [vmem:[#allocation8 + $0x4c] sm:$0xf]
    %v4828 = vld [vmem:[#allocation8 + $0x50] sm:$0xf]
    %v4829 = vld [vmem:[#allocation8 + $0x54] sm:$0xf]
    %v4830 = vld [vmem:[#allocation8 + $0x58] sm:$0xf]
    %v4831 = vld [vmem:[#allocation8 + $0x5c] sm:$0xf]
    %v4832 = vld [vmem:[#allocation8 + $0x60] sm:$0xf]
    %v4833 = vld [vmem:[#allocation8 + $0x64] sm:$0xf]
    %v4834 = vld [vmem:[#allocation8 + $0x68] sm:$0xf]
    %v4835 = vld [vmem:[#allocation8 + $0x6c] sm:$0xf]
    %v4836 = vld [vmem:[#allocation8 + $0x70] sm:$0xf]
    %v4837 = vld [vmem:[#allocation8 + $0x74] sm:$0xf]
    %v4838 = vld [vmem:[#allocation8 + $0x78] sm:$0xf]
    %v4839 = vld [vmem:[#allocation8 + $0x7c] sm:$0xf]
    %v4872 = vunpack.c.l.b16 %v4808
    %v4873 = vunpack.c.l.b16 %v4809
    %v4874 = vunpack.c.l.b16 %v4810
    %v4875 = vunpack.c.l.b16 %v4811
    %v4876 = vunpack.c.l.b16 %v4812
    %v4877 = vunpack.c.l.b16 %v4813
    %v4878 = vunpack.c.l.b16 %v4814
    %v4879 = vunpack.c.l.b16 %v4815
    %v4880 = vunpack.c.l.b16 %v4816
    %v4881 = vunpack.c.l.b16 %v4817
    %v4882 = vunpack.c.l.b16 %v4818
    %v4883 = vunpack.c.l.b16 %v4819
    %v4884 = vunpack.c.l.b16 %v4820
    %v4885 = vunpack.c.l.b16 %v4821
    %v4886 = vunpack.c.l.b16 %v4822
    %v4887 = vunpack.c.l.b16 %v4823
    %v4888 = vunpack.c.l.b16 %v4824
    %v4889 = vunpack.c.l.b16 %v4825
    %v4890 = vunpack.c.l.b16 %v4826
    %v4891 = vunpack.c.l.b16 %v4827
    %v4892 = vunpack.c.l.b16 %v4828
    %v4893 = vunpack.c.l.b16 %v4829
    %v4894 = vunpack.c.l.b16 %v4830
    %v4895 = vunpack.c.l.b16 %v4831
    %v4896 = vunpack.c.l.b16 %v4832
    %v4897 = vunpack.c.l.b16 %v4833
    %v4898 = vunpack.c.l.b16 %v4834
    %v4899 = vunpack.c.l.b16 %v4835
    %v4900 = vunpack.c.l.b16 %v4836
    %v4901 = vunpack.c.l.b16 %v4837
    %v4902 = vunpack.c.l.b16 %v4838
    %v4903 = vunpack.c.l.b16 %v4839
    %v4904 = vpack.c.b16 %v4873, %v4872
    %v4905 = vpack.c.b16 %v4875, %v4874
    %v4906 = vpack.c.b16 %v4877, %v4876
    %v4907 = vpack.c.b16 %v4879, %v4878
    %v4908 = vpack.c.b16 %v4881, %v4880
    %v4909 = vpack.c.b16 %v4883, %v4882
    %v4910 = vpack.c.b16 %v4885, %v4884
    %v4911 = vpack.c.b16 %v4887, %v4886
    %v4912 = vpack.c.b16 %v4889, %v4888
    %v4913 = vpack.c.b16 %v4891, %v4890
    %v4914 = vpack.c.b16 %v4893, %v4892
    %v4915 = vpack.c.b16 %v4895, %v4894
    %v4916 = vpack.c.b16 %v4897, %v4896
    %v4917 = vpack.c.b16 %v4899, %v4898
    %v4918 = vpack.c.b16 %v4901, %v4900
    %v4919 = vpack.c.b16 %v4903, %v4902
    %4936 = vmatprep.subr.bf16.mxu0 0
    %4937 = vmatpush1.bf16.msra.mxu0 %v4911
    %4938 = vmatprep.subr.bf16.mxu0 0
    %4939 = vmatpush1.bf16.msra.mxu0 %v4910
    %4940 = vmatprep.subr.bf16.mxu0 0
    %4941 = vmatpush1.bf16.msra.mxu0 %v4909
    %4942 = vmatprep.subr.bf16.mxu0 0
    %4943 = vmatpush1.bf16.msra.mxu0 %v4908
    %4944 = vmatprep.subr.bf16.mxu0 0
    %4945 = vmatpush1.bf16.msra.mxu0 %v4907
    %4946 = vmatprep.subr.bf16.mxu0 0
    %4947 = vmatpush1.bf16.msra.mxu0 %v4906
    %4948 = vmatprep.subr.bf16.mxu0 0
    %4949 = vmatpush1.bf16.msra.mxu0 %v4905
    %4950 = vmatprep.subr.bf16.mxu0 0
    %4951 = vmatpush1.bf16.msra.mxu0 %v4904
    %4952 = vmatprep.subr.bf16.mxu0 0
    %4953 = vmatpush2.bf16.msra.mxu0 %v4919
    %4954 = vmatprep.subr.bf16.mxu0 0
    %4955 = vmatpush2.bf16.msra.mxu0 %v4918
    %4956 = vmatprep.subr.bf16.mxu0 0
    %4957 = vmatpush2.bf16.msra.mxu0 %v4917
    %4958 = vmatprep.subr.bf16.mxu0 0
    %4959 = vmatpush2.bf16.msra.mxu0 %v4916
    %4960 = vmatprep.subr.bf16.mxu0 0
    %4961 = vmatpush2.bf16.msra.mxu0 %v4915
    %4962 = vmatprep.subr.bf16.mxu0 0
    %4963 = vmatpush2.bf16.msra.mxu0 %v4914
    %4964 = vmatprep.subr.bf16.mxu0 0
    %4965 = vmatpush2.bf16.msra.mxu0 %v4913
    %4966 = vmatprep.subr.bf16.mxu0 0
    %4967 = vmatpush2.bf16.msra.mxu0 %v4912
    %4968 = vmatprep.mubr.bf16.mxu0 %v4807
    %4969 = vmatmul.mubr.bf16.gmra.mxu0 %v4806
    %v4970 = vpop.f32.mrf.mxu0
    %v4971 = vadd.f32 %v468, %v4970
    %v4972 = vpop.f32.mrf.mxu0
    %v4973 = vpop.f32.mrf.mxu0
    %v4974 = vadd.f32 %v468, %v4973
    %v4975 = vpop.f32.mrf.mxu0
    %4976 = vdwg.mxu0
    %vm4977 = vcmp.ge.f32.partialorder %v4971, 0.0
    %vm4978 = vcmp.ge.f32.partialorder %v4974, 0.0
    %v4979 = vmul.f32 %v4971, 0.01
    %v4980 = vmul.f32 %v4974, 0.01
    %v4981 = vsel %vm4977, %v4971, %v4979
    %v4982 = vsel %vm4978, %v4974, %v4980
    %4983 = vst [vmem:[#allocation11] sm:$0xff] %v4981
    %4984 = vst [vmem:[#allocation11 + $0x8] sm:$0xf] %v4982
    %v4987 = vcombine.low %v4506, %v4507
    %v4988 = vcombine.low %v4792, %v4793
    %v4990 = vunpack.c.l.s4 1983009808
    %v4991 = vunpack.c.0.s8 %v4990
    %v4992 = vlaneseq
    %v4993 = vshrl.u32 %v4992, 7
    %v4994 = vsub.s32 %v4991, %v4993
    %v4995 = vrot.slane %v4987, %v4994
    %v4997 = vunpack.c.l.s4 1983009808
    %v4998 = vunpack.c.0.s8 %v4997
    %v4999 = vlaneseq
    %v5000 = vshrl.u32 %v4999, 7
    %v5001 = vsub.s32 %v4998, %v5000
    %v5002 = vrot.slane %v4988, %v5001
    %v5003 = vcombine.low %v4995, %v5002
    %5005 = vst [vmem:[#allocation12] sm:$0xff] %v5003
    // Predicated region
    $region34: #{tpu_custom_call.1} parent=1 // pred_check
      _
    $region35: #{tpu_custom_call.1} parent=1 // pred_check_branch
      %5007 = sbr.rel (0) target = $region37
    $region36: #{tpu_custom_call.1} parent=1 // pred_region
      %s5009 = ssub.s32 256, 256
      %5010 = vsyncadd [#allocation5], %s5009
      %s5011 = sshll.u32 [#allocation11], 4
      %s5012 = int_to_ptr.vmem [resolvable:$true] %s5011
      %5017 = dma.vmem_to_hbm [thread:$0]  %s5012, 256, %s4, [#allocation5], 128, 128, 8
    $region37: #{tpu_custom_call.1} parent=1 // pred_fallthru
      _
    // Predicated region
    $region38: #{tpu_custom_call.1} parent=1 // pred_check
      _
    $region39: #{tpu_custom_call.1} parent=1 // pred_check_branch
      %5019 = sbr.rel (0) target = $region41
    $region40: #{tpu_custom_call.1} parent=1 // pred_region
      %s5021 = ssub.s32 128, 128
      %5022 = vsyncadd [#allocation13], %s5021
      %s5024 = sshll.u32 [#allocation12], 4
      %s5025 = int_to_ptr.vmem [resolvable:$true] %s5024
      %5027 = dma.vmem_to_hbm [thread:$0]  %s5025, 128, %s5, [#allocation13]
    $region41: #{tpu_custom_call.1} parent=1 // pred_fallthru
      _
    // Predicated region
    $region42: #{tpu_custom_call.1} parent=1 // pred_check
      _
    $region43: #{tpu_custom_call.1} parent=1 // pred_check_branch
      %5029 = sbr.rel (0) target = $region45
    $region44: #{tpu_custom_call.1} parent=1 // pred_region
      %5030 = dma.done [#allocation5], 256
    $region45: #{tpu_custom_call.1} parent=1 // pred_fallthru
      _
    // Predicated region
    $region46: #{tpu_custom_call.1} parent=1 // pred_check
      _
    $region47: #{tpu_custom_call.1} parent=1 // pred_check_branch
      %5032 = sbr.rel (0) target = $region49
    $region48: #{tpu_custom_call.1} parent=1 // pred_region
      %5033 = dma.done [#allocation13], 128
    $region49: #{tpu_custom_call.1} parent=1 // pred_fallthru
      _
    %5034 = vsyncpa [#allocation4], 1
    %5035 = vsyncpa [#allocation7], 1
    %5036 = vsyncpa [#allocation10], 1
    %5037 = vsyncpa [#allocation5], 1
    %5038 = vsyncpa [#allocation13], 1

</llo_original>
